<compile_context>
chip_gen: v7x
topology: tpu7x:2x2x1
jax: 0.10.0
libtpu: 0.0.40
codegen_flags: <defaults>
</compile_context>

<pallas_src>
import numpy as np
import jax
import jax.numpy as jnp
from jax.experimental import pallas as pl
from jax.experimental.pallas import tpu as pltpu

POOL_SIZES = (1, 2, 3, 6)
BN_EPS = 1e-5
LANE = 128


def _round_up(x, m):
    return (x + m - 1) // m * m


# ---------------------------------------------------------------------------
# Pallas kernel: fused 3x3 conv (pad=1, no bias) + residual + folded BN + ReLU
# ---------------------------------------------------------------------------
def _conv3x3_bn_relu_kernel(x_ref, w_ref, scale_ref, shift_ref, res_ref, o_ref,
                            xpad_ref, acc_ref):
    """One (batch, Cin-tile) grid step.

    x_ref:     (H, W, TK)      bf16 input-channel tile (un-padded)
    w_ref:     (9, TK, Cp)     bf16 tap-major HWIO weights, Cout padded to Cp
    scale_ref: (1, Cp)         f32 folded BN scale  (gamma / sqrt(var + eps))
    shift_ref: (1, Cp)         f32 folded BN shift  (beta  - mean * scale)
    res_ref:   (H, W, Cp)      f32 pyramid-stage contribution to the conv
    o_ref:     (H, W, Cp)      f32 output
    xpad_ref:  (H+2, W+2, TK)  bf16 VMEM scratch (halo built in VMEM)
    acc_ref:   (H, W, Cp)      f32 VMEM accumulator
    """
    h, w, _ = x_ref.shape
    k = pl.program_id(1)
    nk = pl.num_programs(1)

    @pl.when(k == 0)
    def _init():
        acc_ref[...] = jnp.zeros_like(acc_ref)

    # Build the zero-padded halo copy of this channel tile in VMEM (avoids the
    # previous full-tensor jnp.pad through HBM).
    xpad_ref[...] = jnp.zeros_like(xpad_ref)
    xpad_ref[1:h + 1, 1:w + 1, :] = x_ref[...]

    for kh in range(3):
        for kw in range(3):
            patch = xpad_ref[kh:kh + h, kw:kw + w, :]           # (H, W, TK) bf16
            acc_ref[...] += jax.lax.dot_general(
                patch, w_ref[3 * kh + kw],
                dimension_numbers=(((2,), (0,)), ((), ())),
                preferred_element_type=jnp.float32)

    @pl.when(k == nk - 1)
    def _finalize():
        y = (acc_ref[...] + res_ref[...]) * scale_ref[0] + shift_ref[0]
        o_ref[...] = jnp.maximum(y, 0.0).astype(o_ref.dtype)


def conv3x3_bn_relu(x_nhwc, w_hwio, scale, shift, res):
    """Fused: relu((conv3x3(x, w) + res) * scale + shift).

    x_nhwc: (N,H,W,Cin) f32; w_hwio: (3,3,Cin,Cout); scale/shift: (Cout,);
    res:    (N,H,W,Cout) f32 residual added to the conv output before BN+ReLU.
    """
    n, h, wd, cin = x_nhwc.shape
    cout = w_hwio.shape[-1]
    cp = _round_up(cout, LANE)

    # Channel (reduction) tiling — bounds VMEM per grid step on v7x's 64 MiB.
    if cin % 256 == 0:
        tk = 256
    elif cin % LANE == 0:
        tk = LANE
    else:
        tk = cin                         # tiny configs: single K step
    kt = cin // tk

    x_bf = x_nhwc.astype(jnp.bfloat16)
    w_p = jnp.zeros((3, 3, cin, cp), jnp.float32).at[..., :cout].set(w_hwio)
    w_p = w_p.reshape(9, cin, cp).astype(jnp.bfloat16)
    scale_p = jnp.zeros((1, cp), jnp.float32).at[0, :cout].set(scale)
    shift_p = jnp.zeros((1, cp), jnp.float32).at[0, :cout].set(shift)
    res_p = jnp.zeros((n, h, wd, cp), jnp.float32).at[..., :cout].set(res)

    # Explicit VMEM budget (double-buffered blocks + scratch) with headroom.
    in_bytes = h * wd * tk * 2 + 9 * tk * cp * 2 + 2 * cp * 4 + h * wd * cp * 4
    out_bytes = h * wd * cp * 4
    scratch_bytes = (h + 2) * (wd + 2) * tk * 2 + h * wd * cp * 4
    vmem_limit = int(min(max(2 * (in_bytes + out_bytes) + scratch_bytes + (8 << 20),
                             32 << 20), 100 << 20))

    out = pl.pallas_call(
        _conv3x3_bn_relu_kernel,
        out_shape=jax.ShapeDtypeStruct((n, h, wd, cp), jnp.float32),
        grid=(n, kt),
        in_specs=[
            pl.BlockSpec((None, h, wd, tk), lambda b, k: (b, 0, 0, k)),
            pl.BlockSpec((9, tk, cp), lambda b, k: (0, k, 0)),
            pl.BlockSpec((1, cp), lambda b, k: (0, 0)),
            pl.BlockSpec((1, cp), lambda b, k: (0, 0)),
            pl.BlockSpec((None, h, wd, cp), lambda b, k: (b, 0, 0, 0)),
        ],
        out_specs=pl.BlockSpec((None, h, wd, cp), lambda b, k: (b, 0, 0, 0)),
        scratch_shapes=[
            pltpu.VMEM((h + 2, wd + 2, tk), jnp.bfloat16),
            pltpu.VMEM((h, wd, cp), jnp.float32),
        ],
        compiler_params=pltpu.CompilerParams(
            dimension_semantics=("parallel", "arbitrary"),
            vmem_limit_bytes=vmem_limit),
    )(x_bf, w_p, scale_p, shift_p, res_p)
    # TODO(synk): add a row-tile "parallel" grid axis (with in-kernel row halo)
    # for finer v7x 2-TC load balance when N is small.
    return out[..., :cout]


# ---------------------------------------------------------------------------
# Linear-operator matrices (adaptive pool / bilinear upsample), host-side numpy
# ---------------------------------------------------------------------------
def adaptive_avg_pool_matrix(in_size, out_size):
    """(out_size, in_size) matrix reproducing PyTorch AdaptiveAvgPool2d bins."""
    m = np.zeros((out_size, in_size), np.float32)
    for i in range(out_size):
        start = (i * in_size) // out_size
        end = -((-(i + 1) * in_size) // out_size)   # ceil((i+1)*in/out)
        m[i, start:end] = 1.0 / (end - start)
    return m


def bilinear_upsample_matrix(out_size, in_size):
    """(out_size, in_size) matrix for bilinear interp, align_corners=True."""
    m = np.zeros((out_size, in_size), np.float32)
    if in_size == 1:
        m[:, 0] = 1.0
        return m
    for o in range(out_size):
        src = 0.0 if out_size == 1 else o * (in_size - 1) / (out_size - 1)
        lo = int(np.floor(src))
        hi = min(lo + 1, in_size - 1)
        frac = src - lo
        m[o, lo] += 1.0 - frac
        m[o, hi] += frac
    return m


def _shifted_upsample_maps(out_size, in_size):
    """(3, out_size, in_size): A[kh, y, i] = L[y + kh - 1, i], zero outside.

    Encodes (zero-padded 3x3 conv tap offset) o (bilinear upsample) as a single
    linear map per tap, so stage contributions never need full-res upsampling.
    """
    L = bilinear_upsample_matrix(out_size, in_size)
    Lp = np.zeros((out_size + 2, in_size), np.float32)
    Lp[1:out_size + 1] = L
    return jnp.asarray(np.stack([Lp[kh:kh + out_size] for kh in range(3)], 0))


# ---------------------------------------------------------------------------
# Parameters (deterministic synthetic init; BN folded in eval mode:
# running_mean=0, running_var=1, deterministic random gamma/beta)
# ---------------------------------------------------------------------------
def init_params(key, in_channels, pool_sizes):
    out_channels = in_channels // len(pool_sizes)
    keys = jax.random.split(key, 3 * len(pool_sizes) + 3)
    ki = 0
    params = {"pool_sizes": tuple(pool_sizes), "stages": []}
    for _ in pool_sizes:
        w = jax.random.normal(keys[ki], (in_channels, out_channels),
                              jnp.float32) / np.sqrt(in_channels); ki += 1
        gamma = 1.0 + 0.1 * jax.random.normal(keys[ki], (out_channels,), jnp.float32); ki += 1
        beta = 0.1 * jax.random.normal(keys[ki], (out_channels,), jnp.float32); ki += 1
        scale = (gamma / jnp.sqrt(1.0 + BN_EPS)).reshape(1, out_channels)
        shift = beta.reshape(1, out_channels)
        params["stages"].append({"w": w, "scale": scale, "shift": shift})
    cat_ch = in_channels + out_channels * len(pool_sizes)
    w3 = jax.random.normal(keys[ki], (3, 3, cat_ch, out_channels),
                           jnp.float32) / np.sqrt(9 * cat_ch); ki += 1
    gamma3 = 1.0 + 0.1 * jax.random.normal(keys[ki], (out_channels,), jnp.float32); ki += 1
    beta3 = 0.1 * jax.random.normal(keys[ki], (out_channels,), jnp.float32); ki += 1
    params["bottleneck"] = {
        "w": w3,
        "scale": (gamma3 / jnp.sqrt(1.0 + BN_EPS)).reshape(1, out_channels),
        "shift": beta3.reshape(1, out_channels),
    }
    return params


# ---------------------------------------------------------------------------
# Forward pass (Pallas) and pure-JAX reference
# ---------------------------------------------------------------------------
def psp_module_forward(x_nchw, params):
    x = jnp.transpose(x_nchw, (0, 2, 3, 1)).astype(jnp.float32)   # NCHW -> NHWC
    n, h, w, cin = x.shape
    bp = params["bottleneck"]
    w3 = bp["w"]                                                  # (3,3,cat_ch,Cout)
    cout = w3.shape[-1]

    # Pyramid stages (bin <= 6 -> tiny) in plain XLA, folded analytically into
    # a single (N,H,W,Cout) residual for the bottleneck conv.  Full-res
    # upsampled maps / channel concat / padded concat never hit HBM.
    res = jnp.zeros((n, h, w, cout), jnp.float32)
    off = cin
    for bin_sz, sp in zip(params["pool_sizes"], params["stages"]):
        cs = sp["w"].shape[1]
        ph = jnp.asarray(adaptive_avg_pool_matrix(h, bin_sz))
        pw = jnp.asarray(adaptive_avg_pool_matrix(w, bin_sz))
        pooled = jnp.einsum('iy,jx,nyxc->nijc', ph, pw, x)        # adaptive avg-pool
        t = jnp.einsum('nijc,co->nijo', pooled, sp["w"])          # 1x1 conv
        t = jnp.maximum(t * sp["scale"][0] + sp["shift"][0], 0.0) # BN + ReLU
        w3s = w3[:, :, off:off + cs, :]                           # (3,3,cs,Cout)
        ay = _shifted_upsample_maps(h, bin_sz)                    # (3,H,bin)
        ax = _shifted_upsample_maps(w, bin_sz)                    # (3,W,bin)
        g = jnp.einsum('nijc,pqco->npqijo', t, w3s)               # tiny
        res = res + jnp.einsum('pyi,qxj,npqijo->nyxo', ay, ax, g)
        off += cs

    # Heavy path: fused 3x3 conv + residual + BN + ReLU over original features.
    out = conv3x3_bn_relu(x, w3[:, :, :cin, :], bp["scale"][0], bp["shift"][0], res)
    # TODO(synk): nn.Dropout2d(0.1) is inference-mode identity (no train RNG drop).
    return jnp.transpose(out, (0, 3, 1, 2))                       # NHWC -> NCHW


def psp_module_reference(x_nchw, params):
    x = jnp.transpose(x_nchw, (0, 2, 3, 1)).astype(jnp.float32)
    n, h, w, cin = x.shape
    pyramids = [x]
    for bin_sz, sp in zip(params["pool_sizes"], params["stages"]):
        ph = jnp.asarray(adaptive_avg_pool_matrix(h, bin_sz))
        pw = jnp.asarray(adaptive_avg_pool_matrix(w, bin_sz))
        pooled = jnp.einsum('iy,jx,nyxc->nijc', ph, pw, x)
        t = jnp.einsum('nijc,co->nijo', pooled, sp["w"])
        t = jnp.maximum(t * sp["scale"][0] + sp["shift"][0], 0.0)
        lh = jnp.asarray(bilinear_upsample_matrix(h, bin_sz))
        lw = jnp.asarray(bilinear_upsample_matrix(w, bin_sz))
        pyramids.append(jnp.einsum('yi,xj,nijo->nyxo', lh, lw, t))
    cat = jnp.concatenate(pyramids, axis=-1)
    bp = params["bottleneck"]
    y = jax.lax.conv_general_dilated(cat, bp["w"], (1, 1), ((1, 1), (1, 1)),
                                     dimension_numbers=('NHWC', 'HWIO', 'NHWC'))
    y = jnp.maximum(y * bp["scale"][0] + bp["shift"][0], 0.0)
    return jnp.transpose(y, (0, 3, 1, 2))


if __name__ == "__main__":
    key = jax.random.PRNGKey(0)
    k_param, k_x = jax.random.split(key)

    in_channels = 8                               # out_channels = 8 // 4 = 2
    params = init_params(k_param, in_channels, POOL_SIZES)
    x = jax.random.normal(k_x, (2, in_channels, 16, 16), jnp.float32)  # NCHW

    out = jax.block_until_ready(psp_module_forward(x, params))
    ref = jax.block_until_ready(psp_module_reference(x, params))

    assert out.shape == (2, in_channels // len(POOL_SIZES), 16, 16), out.shape
    # The Pallas path feeds the MXU bf16 activations/weights (f32 accumulate),
    # so compare against the f32 reference with a bf16-appropriate tolerance.
    assert jnp.allclose(out, ref, rtol=5e-2, atol=5e-2), \
        float(jnp.max(jnp.abs(out - ref)))
    print("KERNEL_OK")
</pallas_src>

<mosaic_0001>
module attributes {stable_mosaic.version = 11 : i64} {
  func.func @_conv3x3_bn_relu_kernel(%arg0: i32, %arg1: i32, %arg2: memref<1x16x16x8xbf16, #tpu.memory_space<vmem>>, %arg3: memref<9x8x128xbf16, #tpu.memory_space<vmem>>, %arg4: memref<1x128xf32, #tpu.memory_space<vmem>>, %arg5: memref<1x128xf32, #tpu.memory_space<vmem>>, %arg6: memref<1x16x16x128xf32, #tpu.memory_space<vmem>>, %arg7: memref<1x16x16x128xf32, #tpu.memory_space<vmem>>, %arg8: memref<18x18x8xbf16, #tpu.memory_space<vmem>>, %arg9: memref<16x16x128xf32, #tpu.memory_space<vmem>>) attributes {dimension_semantics = [#tpu.dimension_semantics<parallel>, #tpu.dimension_semantics<arbitrary>], iteration_bounds = array<i64: 2, 1>, scalar_prefetch = 0 : i64, scratch_operands = 2 : i64, tpu.core_type = #tpu.core_type<tc>, window_params = [{transform_indices = @transform_0, window_bounds = array<i64: 1, 16, 16, 8>}, {transform_indices = @transform_1, window_bounds = array<i64: 9, 8, 128>}, {pipeline_mode = #tpu.pipeline_mode<synchronous>, transform_indices = @transform_2, window_bounds = array<i64: 1, 128>}, {pipeline_mode = #tpu.pipeline_mode<synchronous>, transform_indices = @transform_3, window_bounds = array<i64: 1, 128>}, {transform_indices = @transform_4, window_bounds = array<i64: 1, 16, 16, 128>}, {transform_indices = @transform_5, window_bounds = array<i64: 1, 16, 16, 128>}]} {
    %c0_i32 = arith.constant 0 : i32
    %0 = arith.cmpi eq, %arg1, %c0_i32 : i32
    %1 = arith.extui %0 : i1 to i32
    %c0_i32_0 = arith.constant 0 : i32
    %2 = arith.cmpi ne, %1, %c0_i32_0 : i32
    scf.if %2 {
      %cst_121 = arith.constant 0.000000e+00 : f32
      %74 = vector.broadcast %cst_121 : f32 to vector<16x16x128xf32>
      %c0_122 = arith.constant 0 : index
      %c0_123 = arith.constant 0 : index
      %c0_124 = arith.constant 0 : index
      %75 = vector.load %arg9[%c0_122, %c0_123, %c0_124] : memref<16x16x128xf32, #tpu.memory_space<vmem>>, vector<16x16x128xf32>
      tpu.vector_store %arg9[%c0_122, %c0_123, %c0_124], %74 {strides = array<i32>} : memref<16x16x128xf32, #tpu.memory_space<vmem>>, vector<16x16x128xf32>,
    } else {
    }
    %cst = arith.constant 0.000000e+00 : bf16
    %3 = vector.broadcast %cst : bf16 to vector<18x18x8xbf16>
    %c0 = arith.constant 0 : index
    %c0_1 = arith.constant 0 : index
    %c0_2 = arith.constant 0 : index
    %4 = vector.load %arg8[%c0, %c0_1, %c0_2] : memref<18x18x8xbf16, #tpu.memory_space<vmem>>, vector<18x18x8xbf16>
    tpu.vector_store %arg8[%c0, %c0_1, %c0_2], %3 {strides = array<i32>} : memref<18x18x8xbf16, #tpu.memory_space<vmem>>, vector<18x18x8xbf16>,
    %c0_3 = arith.constant 0 : index
    %c0_4 = arith.constant 0 : index
    %c0_5 = arith.constant 0 : index
    %c0_6 = arith.constant 0 : index
    %5 = vector.load %arg2[%c0_3, %c0_4, %c0_5, %c0_6] : memref<1x16x16x8xbf16, #tpu.memory_space<vmem>>, vector<1x16x16x8xbf16>
    %6 = vector.shape_cast %5 : vector<1x16x16x8xbf16> to vector<16x16x8xbf16>
    %c1 = arith.constant 1 : index
    %c1_7 = arith.constant 1 : index
    %c0_8 = arith.constant 0 : index
    %7 = vector.load %arg8[%c1, %c1_7, %c0_8] : memref<18x18x8xbf16, #tpu.memory_space<vmem>>, vector<16x16x8xbf16>
    tpu.vector_store %arg8[%c1, %c1_7, %c0_8], %6 {strides = array<i32>} : memref<18x18x8xbf16, #tpu.memory_space<vmem>>, vector<16x16x8xbf16>,
    %c0_9 = arith.constant 0 : index
    %c0_10 = arith.constant 0 : index
    %c0_11 = arith.constant 0 : index
    %8 = vector.load %arg8[%c0_9, %c0_10, %c0_11] : memref<18x18x8xbf16, #tpu.memory_space<vmem>>, vector<16x16x8xbf16>
    %c0_12 = arith.constant 0 : index
    %c0_13 = arith.constant 0 : index
    %c0_14 = arith.constant 0 : index
    %9 = vector.load %arg9[%c0_12, %c0_13, %c0_14] : memref<16x16x128xf32, #tpu.memory_space<vmem>>, vector<16x16x128xf32>
    %c0_15 = arith.constant 0 : index
    %c0_16 = arith.constant 0 : index
    %c0_17 = arith.constant 0 : index
    %10 = vector.load %arg3[%c0_15, %c0_16, %c0_17] : memref<9x8x128xbf16, #tpu.memory_space<vmem>>, vector<1x8x128xbf16>
    %11 = vector.shape_cast %10 : vector<1x8x128xbf16> to vector<8x128xbf16>
    %cst_18 = arith.constant dense<0.000000e+00> : vector<16x16x128xf32>
    %12 = tpu.matmul %8, %11, %cst_18 {dimension_numbers = #tpu.dot_dimension_numbers<[2], [0], [0, 1], [1], [0, 0, 0, 1, 1, 1], [], []>} : vector<16x16x8xbf16>, vector<8x128xbf16>, vector<16x16x128xf32> -> vector<16x16x128xf32>
    %13 = arith.addf %9, %12 : vector<16x16x128xf32>
    %c0_19 = arith.constant 0 : index
    %c0_20 = arith.constant 0 : index
    %c0_21 = arith.constant 0 : index
    %14 = vector.load %arg9[%c0_19, %c0_20, %c0_21] : memref<16x16x128xf32, #tpu.memory_space<vmem>>, vector<16x16x128xf32>
    tpu.vector_store %arg9[%c0_19, %c0_20, %c0_21], %13 {strides = array<i32>} : memref<16x16x128xf32, #tpu.memory_space<vmem>>, vector<16x16x128xf32>,
    %c0_22 = arith.constant 0 : index
    %c1_23 = arith.constant 1 : index
    %c0_24 = arith.constant 0 : index
    %15 = vector.load %arg8[%c0_22, %c1_23, %c0_24] : memref<18x18x8xbf16, #tpu.memory_space<vmem>>, vector<16x16x8xbf16>
    %c0_25 = arith.constant 0 : index
    %c0_26 = arith.constant 0 : index
    %c0_27 = arith.constant 0 : index
    %16 = vector.load %arg9[%c0_25, %c0_26, %c0_27] : memref<16x16x128xf32, #tpu.memory_space<vmem>>, vector<16x16x128xf32>
    %c1_28 = arith.constant 1 : index
    %c0_29 = arith.constant 0 : index
    %c0_30 = arith.constant 0 : index
    %17 = vector.load %arg3[%c1_28, %c0_29, %c0_30] : memref<9x8x128xbf16, #tpu.memory_space<vmem>>, vector<1x8x128xbf16>
    %18 = vector.shape_cast %17 : vector<1x8x128xbf16> to vector<8x128xbf16>
    %cst_31 = arith.constant dense<0.000000e+00> : vector<16x16x128xf32>
    %19 = tpu.matmul %15, %18, %cst_31 {dimension_numbers = #tpu.dot_dimension_numbers<[2], [0], [0, 1], [1], [0, 0, 0, 1, 1, 1], [], []>} : vector<16x16x8xbf16>, vector<8x128xbf16>, vector<16x16x128xf32> -> vector<16x16x128xf32>
    %20 = arith.addf %16, %19 : vector<16x16x128xf32>
    %c0_32 = arith.constant 0 : index
    %c0_33 = arith.constant 0 : index
    %c0_34 = arith.constant 0 : index
    %21 = vector.load %arg9[%c0_32, %c0_33, %c0_34] : memref<16x16x128xf32, #tpu.memory_space<vmem>>, vector<16x16x128xf32>
    tpu.vector_store %arg9[%c0_32, %c0_33, %c0_34], %20 {strides = array<i32>} : memref<16x16x128xf32, #tpu.memory_space<vmem>>, vector<16x16x128xf32>,
    %c0_35 = arith.constant 0 : index
    %c2 = arith.constant 2 : index
    %c0_36 = arith.constant 0 : index
    %22 = vector.load %arg8[%c0_35, %c2, %c0_36] : memref<18x18x8xbf16, #tpu.memory_space<vmem>>, vector<16x16x8xbf16>
    %c0_37 = arith.constant 0 : index
    %c0_38 = arith.constant 0 : index
    %c0_39 = arith.constant 0 : index
    %23 = vector.load %arg9[%c0_37, %c0_38, %c0_39] : memref<16x16x128xf32, #tpu.memory_space<vmem>>, vector<16x16x128xf32>
    %c2_40 = arith.constant 2 : index
    %c0_41 = arith.constant 0 : index
    %c0_42 = arith.constant 0 : index
    %24 = vector.load %arg3[%c2_40, %c0_41, %c0_42] : memref<9x8x128xbf16, #tpu.memory_space<vmem>>, vector<1x8x128xbf16>
    %25 = vector.shape_cast %24 : vector<1x8x128xbf16> to vector<8x128xbf16>
    %cst_43 = arith.constant dense<0.000000e+00> : vector<16x16x128xf32>
    %26 = tpu.matmul %22, %25, %cst_43 {dimension_numbers = #tpu.dot_dimension_numbers<[2], [0], [0, 1], [1], [0, 0, 0, 1, 1, 1], [], []>} : vector<16x16x8xbf16>, vector<8x128xbf16>, vector<16x16x128xf32> -> vector<16x16x128xf32>
    %27 = arith.addf %23, %26 : vector<16x16x128xf32>
    %c0_44 = arith.constant 0 : index
    %c0_45 = arith.constant 0 : index
    %c0_46 = arith.constant 0 : index
    %28 = vector.load %arg9[%c0_44, %c0_45, %c0_46] : memref<16x16x128xf32, #tpu.memory_space<vmem>>, vector<16x16x128xf32>
    tpu.vector_store %arg9[%c0_44, %c0_45, %c0_46], %27 {strides = array<i32>} : memref<16x16x128xf32, #tpu.memory_space<vmem>>, vector<16x16x128xf32>,
    %c1_47 = arith.constant 1 : index
    %c0_48 = arith.constant 0 : index
    %c0_49 = arith.constant 0 : index
    %29 = vector.load %arg8[%c1_47, %c0_48, %c0_49] : memref<18x18x8xbf16, #tpu.memory_space<vmem>>, vector<16x16x8xbf16>
    %c0_50 = arith.constant 0 : index
    %c0_51 = arith.constant 0 : index
    %c0_52 = arith.constant 0 : index
    %30 = vector.load %arg9[%c0_50, %c0_51, %c0_52] : memref<16x16x128xf32, #tpu.memory_space<vmem>>, vector<16x16x128xf32>
    %c3 = arith.constant 3 : index
    %c0_53 = arith.constant 0 : index
    %c0_54 = arith.constant 0 : index
    %31 = vector.load %arg3[%c3, %c0_53, %c0_54] : memref<9x8x128xbf16, #tpu.memory_space<vmem>>, vector<1x8x128xbf16>
    %32 = vector.shape_cast %31 : vector<1x8x128xbf16> to vector<8x128xbf16>
    %cst_55 = arith.constant dense<0.000000e+00> : vector<16x16x128xf32>
    %33 = tpu.matmul %29, %32, %cst_55 {dimension_numbers = #tpu.dot_dimension_numbers<[2], [0], [0, 1], [1], [0, 0, 0, 1, 1, 1], [], []>} : vector<16x16x8xbf16>, vector<8x128xbf16>, vector<16x16x128xf32> -> vector<16x16x128xf32>
    %34 = arith.addf %30, %33 : vector<16x16x128xf32>
    %c0_56 = arith.constant 0 : index
    %c0_57 = arith.constant 0 : index
    %c0_58 = arith.constant 0 : index
    %35 = vector.load %arg9[%c0_56, %c0_57, %c0_58] : memref<16x16x128xf32, #tpu.memory_space<vmem>>, vector<16x16x128xf32>
    tpu.vector_store %arg9[%c0_56, %c0_57, %c0_58], %34 {strides = array<i32>} : memref<16x16x128xf32, #tpu.memory_space<vmem>>, vector<16x16x128xf32>,
    %c1_59 = arith.constant 1 : index
    %c1_60 = arith.constant 1 : index
    %c0_61 = arith.constant 0 : index
    %36 = vector.load %arg8[%c1_59, %c1_60, %c0_61] : memref<18x18x8xbf16, #tpu.memory_space<vmem>>, vector<16x16x8xbf16>
    %c0_62 = arith.constant 0 : index
    %c0_63 = arith.constant 0 : index
    %c0_64 = arith.constant 0 : index
    %37 = vector.load %arg9[%c0_62, %c0_63, %c0_64] : memref<16x16x128xf32, #tpu.memory_space<vmem>>, vector<16x16x128xf32>
    %c4 = arith.constant 4 : index
    %c0_65 = arith.constant 0 : index
    %c0_66 = arith.constant 0 : index
    %38 = vector.load %arg3[%c4, %c0_65, %c0_66] : memref<9x8x128xbf16, #tpu.memory_space<vmem>>, vector<1x8x128xbf16>
    %39 = vector.shape_cast %38 : vector<1x8x128xbf16> to vector<8x128xbf16>
    %cst_67 = arith.constant dense<0.000000e+00> : vector<16x16x128xf32>
    %40 = tpu.matmul %36, %39, %cst_67 {dimension_numbers = #tpu.dot_dimension_numbers<[2], [0], [0, 1], [1], [0, 0, 0, 1, 1, 1], [], []>} : vector<16x16x8xbf16>, vector<8x128xbf16>, vector<16x16x128xf32> -> vector<16x16x128xf32>
    %41 = arith.addf %37, %40 : vector<16x16x128xf32>
    %c0_68 = arith.constant 0 : index
    %c0_69 = arith.constant 0 : index
    %c0_70 = arith.constant 0 : index
    %42 = vector.load %arg9[%c0_68, %c0_69, %c0_70] : memref<16x16x128xf32, #tpu.memory_space<vmem>>, vector<16x16x128xf32>
    tpu.vector_store %arg9[%c0_68, %c0_69, %c0_70], %41 {strides = array<i32>} : memref<16x16x128xf32, #tpu.memory_space<vmem>>, vector<16x16x128xf32>,
    %c1_71 = arith.constant 1 : index
    %c2_72 = arith.constant 2 : index
    %c0_73 = arith.constant 0 : index
    %43 = vector.load %arg8[%c1_71, %c2_72, %c0_73] : memref<18x18x8xbf16, #tpu.memory_space<vmem>>, vector<16x16x8xbf16>
    %c0_74 = arith.constant 0 : index
    %c0_75 = arith.constant 0 : index
    %c0_76 = arith.constant 0 : index
    %44 = vector.load %arg9[%c0_74, %c0_75, %c0_76] : memref<16x16x128xf32, #tpu.memory_space<vmem>>, vector<16x16x128xf32>
    %c5 = arith.constant 5 : index
    %c0_77 = arith.constant 0 : index
    %c0_78 = arith.constant 0 : index
    %45 = vector.load %arg3[%c5, %c0_77, %c0_78] : memref<9x8x128xbf16, #tpu.memory_space<vmem>>, vector<1x8x128xbf16>
    %46 = vector.shape_cast %45 : vector<1x8x128xbf16> to vector<8x128xbf16>
    %cst_79 = arith.constant dense<0.000000e+00> : vector<16x16x128xf32>
    %47 = tpu.matmul %43, %46, %cst_79 {dimension_numbers = #tpu.dot_dimension_numbers<[2], [0], [0, 1], [1], [0, 0, 0, 1, 1, 1], [], []>} : vector<16x16x8xbf16>, vector<8x128xbf16>, vector<16x16x128xf32> -> vector<16x16x128xf32>
    %48 = arith.addf %44, %47 : vector<16x16x128xf32>
    %c0_80 = arith.constant 0 : index
    %c0_81 = arith.constant 0 : index
    %c0_82 = arith.constant 0 : index
    %49 = vector.load %arg9[%c0_80, %c0_81, %c0_82] : memref<16x16x128xf32, #tpu.memory_space<vmem>>, vector<16x16x128xf32>
    tpu.vector_store %arg9[%c0_80, %c0_81, %c0_82], %48 {strides = array<i32>} : memref<16x16x128xf32, #tpu.memory_space<vmem>>, vector<16x16x128xf32>,
    %c2_83 = arith.constant 2 : index
    %c0_84 = arith.constant 0 : index
    %c0_85 = arith.constant 0 : index
    %50 = vector.load %arg8[%c2_83, %c0_84, %c0_85] : memref<18x18x8xbf16, #tpu.memory_space<vmem>>, vector<16x16x8xbf16>
    %c0_86 = arith.constant 0 : index
    %c0_87 = arith.constant 0 : index
    %c0_88 = arith.constant 0 : index
    %51 = vector.load %arg9[%c0_86, %c0_87, %c0_88] : memref<16x16x128xf32, #tpu.memory_space<vmem>>, vector<16x16x128xf32>
    %c6 = arith.constant 6 : index
    %c0_89 = arith.constant 0 : index
    %c0_90 = arith.constant 0 : index
    %52 = vector.load %arg3[%c6, %c0_89, %c0_90] : memref<9x8x128xbf16, #tpu.memory_space<vmem>>, vector<1x8x128xbf16>
    %53 = vector.shape_cast %52 : vector<1x8x128xbf16> to vector<8x128xbf16>
    %cst_91 = arith.constant dense<0.000000e+00> : vector<16x16x128xf32>
    %54 = tpu.matmul %50, %53, %cst_91 {dimension_numbers = #tpu.dot_dimension_numbers<[2], [0], [0, 1], [1], [0, 0, 0, 1, 1, 1], [], []>} : vector<16x16x8xbf16>, vector<8x128xbf16>, vector<16x16x128xf32> -> vector<16x16x128xf32>
    %55 = arith.addf %51, %54 : vector<16x16x128xf32>
    %c0_92 = arith.constant 0 : index
    %c0_93 = arith.constant 0 : index
    %c0_94 = arith.constant 0 : index
    %56 = vector.load %arg9[%c0_92, %c0_93, %c0_94] : memref<16x16x128xf32, #tpu.memory_space<vmem>>, vector<16x16x128xf32>
    tpu.vector_store %arg9[%c0_92, %c0_93, %c0_94], %55 {strides = array<i32>} : memref<16x16x128xf32, #tpu.memory_space<vmem>>, vector<16x16x128xf32>,
    %c2_95 = arith.constant 2 : index
    %c1_96 = arith.constant 1 : index
    %c0_97 = arith.constant 0 : index
    %57 = vector.load %arg8[%c2_95, %c1_96, %c0_97] : memref<18x18x8xbf16, #tpu.memory_space<vmem>>, vector<16x16x8xbf16>
    %c0_98 = arith.constant 0 : index
    %c0_99 = arith.constant 0 : index
    %c0_100 = arith.constant 0 : index
    %58 = vector.load %arg9[%c0_98, %c0_99, %c0_100] : memref<16x16x128xf32, #tpu.memory_space<vmem>>, vector<16x16x128xf32>
    %c7 = arith.constant 7 : index
    %c0_101 = arith.constant 0 : index
    %c0_102 = arith.constant 0 : index
    %59 = vector.load %arg3[%c7, %c0_101, %c0_102] : memref<9x8x128xbf16, #tpu.memory_space<vmem>>, vector<1x8x128xbf16>
    %60 = vector.shape_cast %59 : vector<1x8x128xbf16> to vector<8x128xbf16>
    %cst_103 = arith.constant dense<0.000000e+00> : vector<16x16x128xf32>
    %61 = tpu.matmul %57, %60, %cst_103 {dimension_numbers = #tpu.dot_dimension_numbers<[2], [0], [0, 1], [1], [0, 0, 0, 1, 1, 1], [], []>} : vector<16x16x8xbf16>, vector<8x128xbf16>, vector<16x16x128xf32> -> vector<16x16x128xf32>
    %62 = arith.addf %58, %61 : vector<16x16x128xf32>
    %c0_104 = arith.constant 0 : index
    %c0_105 = arith.constant 0 : index
    %c0_106 = arith.constant 0 : index
    %63 = vector.load %arg9[%c0_104, %c0_105, %c0_106] : memref<16x16x128xf32, #tpu.memory_space<vmem>>, vector<16x16x128xf32>
    tpu.vector_store %arg9[%c0_104, %c0_105, %c0_106], %62 {strides = array<i32>} : memref<16x16x128xf32, #tpu.memory_space<vmem>>, vector<16x16x128xf32>,
    %c2_107 = arith.constant 2 : index
    %c2_108 = arith.constant 2 : index
    %c0_109 = arith.constant 0 : index
    %64 = vector.load %arg8[%c2_107, %c2_108, %c0_109] : memref<18x18x8xbf16, #tpu.memory_space<vmem>>, vector<16x16x8xbf16>
    %c0_110 = arith.constant 0 : index
    %c0_111 = arith.constant 0 : index
    %c0_112 = arith.constant 0 : index
    %65 = vector.load %arg9[%c0_110, %c0_111, %c0_112] : memref<16x16x128xf32, #tpu.memory_space<vmem>>, vector<16x16x128xf32>
    %c8 = arith.constant 8 : index
    %c0_113 = arith.constant 0 : index
    %c0_114 = arith.constant 0 : index
    %66 = vector.load %arg3[%c8, %c0_113, %c0_114] : memref<9x8x128xbf16, #tpu.memory_space<vmem>>, vector<1x8x128xbf16>
    %67 = vector.shape_cast %66 : vector<1x8x128xbf16> to vector<8x128xbf16>
    %cst_115 = arith.constant dense<0.000000e+00> : vector<16x16x128xf32>
    %68 = tpu.matmul %64, %67, %cst_115 {dimension_numbers = #tpu.dot_dimension_numbers<[2], [0], [0, 1], [1], [0, 0, 0, 1, 1, 1], [], []>} : vector<16x16x8xbf16>, vector<8x128xbf16>, vector<16x16x128xf32> -> vector<16x16x128xf32>
    %69 = arith.addf %65, %68 : vector<16x16x128xf32>
    %c0_116 = arith.constant 0 : index
    %c0_117 = arith.constant 0 : index
    %c0_118 = arith.constant 0 : index
    %70 = vector.load %arg9[%c0_116, %c0_117, %c0_118] : memref<16x16x128xf32, #tpu.memory_space<vmem>>, vector<16x16x128xf32>
    tpu.vector_store %arg9[%c0_116, %c0_117, %c0_118], %69 {strides = array<i32>} : memref<16x16x128xf32, #tpu.memory_space<vmem>>, vector<16x16x128xf32>,
    %c0_i32_119 = arith.constant 0 : i32
    %71 = arith.cmpi eq, %arg1, %c0_i32_119 : i32
    %72 = arith.extui %71 : i1 to i32
    %c0_i32_120 = arith.constant 0 : i32
    %73 = arith.cmpi ne, %72, %c0_i32_120 : i32
    scf.if %73 {
      %c0_121 = arith.constant 0 : index
      %c0_122 = arith.constant 0 : index
      %c0_123 = arith.constant 0 : index
      %74 = vector.load %arg9[%c0_121, %c0_122, %c0_123] : memref<16x16x128xf32, #tpu.memory_space<vmem>>, vector<16x16x128xf32>
      %c0_124 = arith.constant 0 : index
      %c0_125 = arith.constant 0 : index
      %c0_126 = arith.constant 0 : index
      %c0_127 = arith.constant 0 : index
      %75 = vector.load %arg6[%c0_124, %c0_125, %c0_126, %c0_127] : memref<1x16x16x128xf32, #tpu.memory_space<vmem>>, vector<1x16x16x128xf32>
      %76 = vector.shape_cast %75 : vector<1x16x16x128xf32> to vector<16x16x128xf32>
      %77 = arith.addf %74, %76 : vector<16x16x128xf32>
      %c0_128 = arith.constant 0 : index
      %c0_129 = arith.constant 0 : index
      %78 = vector.load %arg4[%c0_128, %c0_129] : memref<1x128xf32, #tpu.memory_space<vmem>>, vector<1x128xf32>
      %79 = vector.shape_cast %78 : vector<1x128xf32> to vector<128xf32>
      %80 = vector.shape_cast %79 : vector<128xf32> to vector<1x1x128xf32>
      %81 = vector.broadcast %80 : vector<1x1x128xf32> to vector<16x16x128xf32>
      %82 = arith.mulf %77, %81 : vector<16x16x128xf32>
      %c0_130 = arith.constant 0 : index
      %c0_131 = arith.constant 0 : index
      %83 = vector.load %arg5[%c0_130, %c0_131] : memref<1x128xf32, #tpu.memory_space<vmem>>, vector<1x128xf32>
      %84 = vector.shape_cast %83 : vector<1x128xf32> to vector<128xf32>
      %85 = vector.shape_cast %84 : vector<128xf32> to vector<1x1x128xf32>
      %86 = vector.broadcast %85 : vector<1x1x128xf32> to vector<16x16x128xf32>
      %87 = arith.addf %82, %86 : vector<16x16x128xf32>
      %cst_132 = arith.constant 0.000000e+00 : f32
      %88 = vector.broadcast %cst_132 : f32 to vector<16x16x128xf32>
      %89 = arith.maximumf %87, %88 : vector<16x16x128xf32>
      %c0_133 = arith.constant 0 : index
      %c0_134 = arith.constant 0 : index
      %c0_135 = arith.constant 0 : index
      %c0_136 = arith.constant 0 : index
      %90 = vector.load %arg7[%c0_133, %c0_134, %c0_135, %c0_136] : memref<1x16x16x128xf32, #tpu.memory_space<vmem>>, vector<1x16x16x128xf32>
      %91 = vector.shape_cast %90 : vector<1x16x16x128xf32> to vector<16x16x128xf32>
      %92 = vector.shape_cast %89 : vector<16x16x128xf32> to vector<1x16x16x128xf32>
      tpu.vector_store %arg7[%c0_133, %c0_134, %c0_135, %c0_136], %92 {strides = array<i32>} : memref<1x16x16x128xf32, #tpu.memory_space<vmem>>, vector<1x16x16x128xf32>,
    } else {
    }
    return
  }
  func.func @transform_0(%arg0: i32, %arg1: i32) -> (i32, i32, i32, i32) {
    %c0_i32 = arith.constant 0 : i32
    %c0_i32_0 = arith.constant 0 : i32
    %c0_i32_1 = arith.constant 0 : i32
    return %arg0, %c0_i32, %c0_i32_0, %arg1 : i32, i32, i32, i32
  }
  func.func @transform_1(%arg0: i32, %arg1: i32) -> (i32, i32, i32) {
    %c0_i32 = arith.constant 0 : i32
    %c0_i32_0 = arith.constant 0 : i32
    %c0_i32_1 = arith.constant 0 : i32
    return %c0_i32, %arg1, %c0_i32_0 : i32, i32, i32
  }
  func.func @transform_2(%arg0: i32, %arg1: i32) -> (i32, i32) {
    %c0_i32 = arith.constant 0 : i32
    %c0_i32_0 = arith.constant 0 : i32
    %c0_i32_1 = arith.constant 0 : i32
    return %c0_i32, %c0_i32_0 : i32, i32
  }
  func.func @transform_3(%arg0: i32, %arg1: i32) -> (i32, i32) {
    %c0_i32 = arith.constant 0 : i32
    %c0_i32_0 = arith.constant 0 : i32
    %c0_i32_1 = arith.constant 0 : i32
    return %c0_i32, %c0_i32_0 : i32, i32
  }
  func.func @transform_4(%arg0: i32, %arg1: i32) -> (i32, i32, i32, i32) {
    %c0_i32 = arith.constant 0 : i32
    %c0_i32_0 = arith.constant 0 : i32
    %c0_i32_1 = arith.constant 0 : i32
    %c0_i32_2 = arith.constant 0 : i32
    return %arg0, %c0_i32, %c0_i32_0, %c0_i32_1 : i32, i32, i32, i32
  }
  func.func @transform_5(%arg0: i32, %arg1: i32) -> (i32, i32, i32, i32) {
    %c0_i32 = arith.constant 0 : i32
    %c0_i32_0 = arith.constant 0 : i32
    %c0_i32_1 = arith.constant 0 : i32
    %c0_i32_2 = arith.constant 0 : i32
    return %arg0, %c0_i32, %c0_i32_0, %c0_i32_1 : i32, i32, i32, i32
  }
}

</mosaic_0001>

<llo_original>
// kernel: tpu_custom_call.1
$region0: #{tpu_custom_call.1}
  #allocation0 [shape = 'u32[]', space=smem, size = 0x4, offset = 0x4, fixed_abs, tag = 'smem constant byte address 0x4 - core index']
  #allocation1 [shape = 'u32[144,128]{1,0:T(1,128)}', space=vmem, size = 0x12000, scoped, tag = 'internal scratch']
  #allocation2 [shape = 'bf16[18,18,8]{2,1,0:T(8,128)(2,1)}', space=vmem, size = 0x1b000, scoped, tag = 'scratch operand']
  #allocation3 [shape = 'f32[16,16,128]{2,1,0:T(8,128)}', space=vmem, size = 0x20000, scoped, tag = 'scratch operand']
  %s0 = inlined_call_operand.vmem [shape: bf16[2,16,16,8], index: 0, kind: input, shape index: {}]
  %s1 = inlined_call_operand.vmem [shape: bf16[9,8,128], index: 1, kind: input, shape index: {}]
  %s2 = inlined_call_operand.vmem [shape: f32[1,128], index: 2, kind: input, shape index: {}]
  %s3 = inlined_call_operand.vmem [shape: f32[1,128], index: 3, kind: input, shape index: {}]
  %s4 = inlined_call_operand.hbm [shape: f32[2,16,16,128], index: 4, kind: input, shape index: {}]
  %s5 = inlined_call_operand.hbm [shape: f32[2,16,16,128], index: 5, kind: output, shape index: {}]
  %s6 = sld [smem:[#allocation0]]
  $region65: #{tpu_custom_call.1} parent=0
    _
  %s8 = ssub.s32 1, %s6
  %s9 = scalar_select 0, %s8, %s6
  $region1: #{tpu_custom_call.1} parent=0
    #allocation4 [shape = 'u8[262144]{0}', space=vmem, size = 0x40000, scoped, tag = 'input window, operand 4']
    #allocation5 [shape = 's32[2]{0}', space=sflag, size = 0x8, scoped, tag = 'scoped memory for tpu_custom_call.1']
    #allocation6 [shape = 's32[2]{0}', space=sflag, size = 0x8, scoped, tag = 'scoped memory for tpu_custom_call.1']
    #allocation7 [shape = 'u8[262144]{0}', space=vmem, size = 0x40000, scoped, tag = 'output window, operand 0']
    %10 = vsyncpa [#allocation5], 0
    %s11 = scalar_lea.sflag [#allocation5], 1
    %12 = vsyncpa %s11, 0
    %13 = vsyncpa [#allocation6], 0
    %s14 = scalar_lea.sflag [#allocation6], 1
    %15 = vsyncpa %s14, 0
    loop: start=0, step=1, limit=4
    $region2: #{tpu_custom_call.1} parent=1 // loop_pre_header
      _
    $region3: #{tpu_custom_call.1} parent=1 // loop_header
      %s17 = sphi 0, %s21
      %p18 = scmp.ge.s32.totalorder %s17, 4
      %s24 = sphi 0, %s36
      %s25 = sphi 0, %s32
      %s26 = sphi 0, %s24
      %s27 = sphi 0, %s25
      %s28 = sphi 0, %s26
      %s29 = sphi 0, %s27
      %s41 = sphi 0, %s43
      %s44 = sphi 0, %s41
      %s45 = sphi 0, %s44
      %s61 = sphi 0, %s45
      %s67 = sphi 0, %s69
      %s70 = sphi 0, %s67
      %s71 = sphi 0, %s70
      %s87 = sphi 0, %s71
      %s91 = sphi 0, %s91
      %s93 = sphi 0, %s91
      %s94 = sphi 0, %s93
      %s108 = sphi 0, %s94
      %s112 = sphi 0, %s112
      %s114 = sphi 0, %s112
      %s115 = sphi 0, %s114
      %s129 = sphi 0, %s115
      %s135 = sphi 0, %s137
      %s138 = sphi 0, %s135
      %s139 = sphi 0, %s138
      %s155 = sphi 0, %s139
      %s161 = sphi 0, %s163
      %s164 = sphi 0, %s161
      %s165 = sphi 0, %s164
      %s181 = sphi 0, %s165
    $region4: #{tpu_custom_call.1} parent=1 // loop_header_branch
      %20 = sbr.rel (%p18) target = $region8
    $region5: #{tpu_custom_call.1} parent=1 // loop_body
      %s22 = ssub.s32 %s17, 1
      %s23 = ssub.s32 %s17, 2
      %s30 = sadd.s32 1, %s25
      %p31 = scmp.ge.s32.totalorder %s30, 1
      %s32 = scalar_select %p31, 0, %s30
      %s33 = sadd.s32 1, %s24
      %s34 = scalar_select %p31, %s33, %s24
      %p35 = scmp.ge.s32.totalorder %s34, 2
      %s36 = scalar_select %p35, 0, %s34
      %s37 = ssub.s32 %s24, %s36
      %s38 = ssub.s32 %s25, %s32
      %s39 = sor.u32 %s37, %s38
      %p40 = scmp.eq.s32.totalorder %s39, 0
      %s42 = sadd.s32 %s41, 1
      %s43 = scalar_select %p40, %s41, %s42
      %p46 = pneg %p40
      %p47 = scmp.eq.s32.totalorder %s17, 1
      %p48 = por %p46, %p47
      %p49 = scmp.ne.s32.totalorder %s41, %s44
      %p50 = scmp.eq.s32.totalorder %s17, 0
      %p51 = por %p49, %p50
      %p52 = scmp.ne.s32.totalorder %s41, %s44
      %p53 = scmp.eq.s32.totalorder %s22, 1
      %p54 = por %p52, %p53
      %p55 = scmp.ne.s32.totalorder %s44, %s45
      %p56 = scmp.eq.s32.totalorder %s22, 0
      %p57 = por %p55, %p56
      %p58 = scmp.ne.s32.totalorder %s44, %s45
      %p59 = scmp.eq.s32.totalorder %s23, 1
      %p60 = por %p58, %p59
      %p62 = scmp.ne.s32.totalorder %s45, %s61
      %p63 = scmp.eq.s32.totalorder %s23, 0
      %p64 = por %p62, %p63
      %s65 = ssub.s32 %s25, %s32
      %p66 = scmp.eq.s32.totalorder %s65, 0
      %s68 = sadd.s32 %s67, 1
      %s69 = scalar_select %p66, %s67, %s68
      %p72 = pneg %p66
      %p73 = scmp.eq.s32.totalorder %s17, 1
      %p74 = por %p72, %p73
      %p75 = scmp.ne.s32.totalorder %s67, %s70
      %p76 = scmp.eq.s32.totalorder %s17, 0
      %p77 = por %p75, %p76
      %p78 = scmp.ne.s32.totalorder %s67, %s70
      %p79 = scmp.eq.s32.totalorder %s22, 1
      %p80 = por %p78, %p79
      %p81 = scmp.ne.s32.totalorder %s70, %s71
      %p82 = scmp.eq.s32.totalorder %s22, 0
      %p83 = por %p81, %p82
      %p84 = scmp.ne.s32.totalorder %s70, %s71
      %p85 = scmp.eq.s32.totalorder %s23, 1
      %p86 = por %p84, %p85
      %p88 = scmp.ne.s32.totalorder %s71, %s87
      %p89 = scmp.eq.s32.totalorder %s23, 0
      %p90 = por %p88, %p89
      %s92 = sadd.s32 %s91, 1
      %p95 = scmp.eq.s32.totalorder %s17, 1
      %p96 = scmp.ne.s32.totalorder %s91, %s93
      %p97 = scmp.eq.s32.totalorder %s17, 0
      %p98 = por %p96, %p97
      %p99 = scmp.ne.s32.totalorder %s91, %s93
      %p100 = scmp.eq.s32.totalorder %s22, 1
      %p101 = por %p99, %p100
      %p102 = scmp.ne.s32.totalorder %s93, %s94
      %p103 = scmp.eq.s32.totalorder %s22, 0
      %p104 = por %p102, %p103
      %p105 = scmp.ne.s32.totalorder %s93, %s94
      %p106 = scmp.eq.s32.totalorder %s23, 1
      %p107 = por %p105, %p106
      %p109 = scmp.ne.s32.totalorder %s94, %s108
      %p110 = scmp.eq.s32.totalorder %s23, 0
      %p111 = por %p109, %p110
      %s113 = sadd.s32 %s112, 1
      %p116 = scmp.eq.s32.totalorder %s17, 1
      %p117 = scmp.ne.s32.totalorder %s112, %s114
      %p118 = scmp.eq.s32.totalorder %s17, 0
      %p119 = por %p117, %p118
      %p120 = scmp.ne.s32.totalorder %s112, %s114
      %p121 = scmp.eq.s32.totalorder %s22, 1
      %p122 = por %p120, %p121
      %p123 = scmp.ne.s32.totalorder %s114, %s115
      %p124 = scmp.eq.s32.totalorder %s22, 0
      %p125 = por %p123, %p124
      %p126 = scmp.ne.s32.totalorder %s114, %s115
      %p127 = scmp.eq.s32.totalorder %s23, 1
      %p128 = por %p126, %p127
      %p130 = scmp.ne.s32.totalorder %s115, %s129
      %p131 = scmp.eq.s32.totalorder %s23, 0
      %p132 = por %p130, %p131
      %s133 = ssub.s32 %s24, %s36
      %p134 = scmp.eq.s32.totalorder %s133, 0
      %s136 = sadd.s32 %s135, 1
      %s137 = scalar_select %p134, %s135, %s136
      %p140 = pneg %p134
      %p141 = scmp.eq.s32.totalorder %s17, 1
      %p142 = por %p140, %p141
      %p143 = scmp.ne.s32.totalorder %s135, %s138
      %p144 = scmp.eq.s32.totalorder %s17, 0
      %p145 = por %p143, %p144
      %p146 = scmp.ne.s32.totalorder %s135, %s138
      %p147 = scmp.eq.s32.totalorder %s22, 1
      %p148 = por %p146, %p147
      %p149 = scmp.ne.s32.totalorder %s138, %s139
      %p150 = scmp.eq.s32.totalorder %s22, 0
      %p151 = por %p149, %p150
      %p152 = scmp.ne.s32.totalorder %s138, %s139
      %p153 = scmp.eq.s32.totalorder %s23, 1
      %p154 = por %p152, %p153
      %p156 = scmp.ne.s32.totalorder %s139, %s155
      %p157 = scmp.eq.s32.totalorder %s23, 0
      %p158 = por %p156, %p157
      %s159 = ssub.s32 %s24, %s36
      %p160 = scmp.eq.s32.totalorder %s159, 0
      %s162 = sadd.s32 %s161, 1
      %s163 = scalar_select %p160, %s161, %s162
      %p166 = pneg %p160
      %p167 = scmp.eq.s32.totalorder %s17, 1
      %p168 = por %p166, %p167
      %p169 = scmp.ne.s32.totalorder %s161, %s164
      %p170 = scmp.eq.s32.totalorder %s17, 0
      %p171 = por %p169, %p170
      %p172 = scmp.ne.s32.totalorder %s161, %s164
      %p173 = scmp.eq.s32.totalorder %s22, 1
      %p174 = por %p172, %p173
      %p175 = scmp.ne.s32.totalorder %s164, %s165
      %p176 = scmp.eq.s32.totalorder %s22, 0
      %p177 = por %p175, %p176
      %p178 = scmp.ne.s32.totalorder %s164, %s165
      %p179 = scmp.eq.s32.totalorder %s23, 1
      %p180 = por %p178, %p179
      %p182 = scmp.ne.s32.totalorder %s165, %s181
      %p183 = scmp.eq.s32.totalorder %s23, 0
      %p184 = por %p182, %p183
      %p185 = scmp.le.s32.totalorder 1, %s17
      %p186 = scmp.lt.s32.totalorder %s17, 3
      %p187 = pnand %p185, %p186
      %p188 = pneg %p187
      // Predicated region
      $region9: #{tpu_custom_call.1} parent=5 // pred_check
        _
      $region10: #{tpu_custom_call.1} parent=5 // pred_check_branch
        %190 = sbr.rel (%p187) target = $region12
      $region11: #{tpu_custom_call.1} parent=5 // pred_region
        %s191 = ssub.s32 %s17, 1
        // Predicated region
        $region13: #{tpu_custom_call.1} parent=11 // pred_check
          %p192 = pneg %p83
        $region14: #{tpu_custom_call.1} parent=11 // pred_check_branch
          %194 = sbr.rel (%p192) target = $region16
        $region15: #{tpu_custom_call.1} parent=11 // pred_region
          %p195 = scmp.lt.s32.totalorder %s27, 0
          %s196 = scalar_select %p195, %s27, 0
          %s197 = smul.addr %s196, 4
          %s198 = scalar_lea.vmem %s1, %s197
        $region16: #{tpu_custom_call.1} parent=11 // pred_fallthru
          _
        // Predicated region
        $region17: #{tpu_custom_call.1} parent=11 // pred_check
          %p199 = pneg %p104
        $region18: #{tpu_custom_call.1} parent=11 // pred_check_branch
          %201 = sbr.rel (%p199) target = $region20
        $region19: #{tpu_custom_call.1} parent=11 // pred_region
          _
        $region20: #{tpu_custom_call.1} parent=11 // pred_fallthru
          _
        // Predicated region
        $region21: #{tpu_custom_call.1} parent=11 // pred_check
          %p202 = pneg %p125
        $region22: #{tpu_custom_call.1} parent=11 // pred_check_branch
          %204 = sbr.rel (%p202) target = $region24
        $region23: #{tpu_custom_call.1} parent=11 // pred_region
          _
        $region24: #{tpu_custom_call.1} parent=11 // pred_fallthru
          _
      $region12: #{tpu_custom_call.1} parent=5 // pred_fallthru
        _
      %p205 = scmp.lt.s32.totalorder %s17, 2
      // Predicated region
      $region25: #{tpu_custom_call.1} parent=5 // pred_check
        %p206 = pneg %p205
      $region26: #{tpu_custom_call.1} parent=5 // pred_check_branch
        %208 = sbr.rel (%p206) target = $region28
      $region27: #{tpu_custom_call.1} parent=5 // pred_region
        // Predicated region
        $region29: #{tpu_custom_call.1} parent=27 // pred_check
          %p209 = pneg %p51
        $region30: #{tpu_custom_call.1} parent=27 // pred_check_branch
          %211 = sbr.rel (%p209) target = $region32
        $region31: #{tpu_custom_call.1} parent=27 // pred_region
          %p212 = scmp.lt.s32.totalorder %s24, 1
          %s213 = scalar_select %p212, %s24, 1
          %p214 = scmp.lt.s32.totalorder %s25, 0
          %s215 = scalar_select %p214, %s25, 0
          %s216 = smul.addr %s213, 32
          %s217 = sadd.s32 %s215, %s216
          %s218 = smul.addr %s217, 4
          %s219 = scalar_lea.vmem %s0, %s218
        $region32: #{tpu_custom_call.1} parent=27 // pred_fallthru
          _
        // Predicated region
        $region33: #{tpu_custom_call.1} parent=27 // pred_check
          %p220 = pneg %p145
        $region34: #{tpu_custom_call.1} parent=27 // pred_check_branch
          %222 = sbr.rel (%p220) target = $region36
        $region35: #{tpu_custom_call.1} parent=27 // pred_region
          %s223 = sand.u32 %s135, 1
          %s224 = scalar_lea.sflag [#allocation5], %s223
          %s225 = sand.u32 %s135, 1
          %s226 = smul.addr %s225, 256
          %s227 = scalar_lea.vmem [#allocation4], %s226
          %s229 = ssub.s32 4096, 4096
          %230 = vsyncadd %s224, %s229
          %s231 = smul.addr %s24, 32
          %s232 = smul.addr %s231, 128
          %s233 = scalar_lea.hbm %s4, %s232
          %s234 = sshll.u32 %s227, 4
          %s235 = int_to_ptr.vmem [resolvable:$true] %s234
          %240 = dma.hbm_to_vmem [thread:$0]  %s233, 4096, %s235, %s224, 128, 128, 8
        $region36: #{tpu_custom_call.1} parent=27 // pred_fallthru
          _
      $region28: #{tpu_custom_call.1} parent=5 // pred_fallthru
        _
      %p241 = scmp.le.s32.totalorder 1, %s17
      %p242 = scmp.lt.s32.totalorder %s17, 3
      %p243 = pnand %p241, %p242
      %p244 = pneg %p243
      // Predicated region
      $region37: #{tpu_custom_call.1} parent=5 // pred_check
        _
      $region38: #{tpu_custom_call.1} parent=5 // pred_check_branch
        %246 = sbr.rel (%p243) target = $region40
      $region39: #{tpu_custom_call.1} parent=5 // pred_region
        %s247 = ssub.s32 %s17, 1
        %s248 = sand.u32 %s138, 1
        %s249 = scalar_lea.sflag [#allocation5], %s248
        %s250 = sand.u32 %s138, 1
        %s251 = smul.addr %s250, 256
        %s252 = scalar_lea.vmem [#allocation4], %s251
        // Predicated region
        $region41: #{tpu_custom_call.1} parent=39 // pred_check
          %p253 = pneg %p151
        $region42: #{tpu_custom_call.1} parent=39 // pred_check_branch
          %255 = sbr.rel (%p253) target = $region44
        $region43: #{tpu_custom_call.1} parent=39 // pred_region
          %256 = dma.done %s249, 4096
        $region44: #{tpu_custom_call.1} parent=39 // pred_fallthru
          _
        %p257 = scmp.lt.s32.totalorder %s26, 1
        %s258 = scalar_select %p257, %s26, 1
        %p259 = scmp.lt.s32.totalorder %s27, 0
        %s260 = scalar_select %p259, %s27, 0
        %s261 = smul.addr %s258, 32
        %s262 = sadd.s32 %s260, %s261
        %s263 = smul.addr %s262, 4
        %s264 = scalar_lea.vmem %s0, %s263
        %p265 = pneg %p57
        %p266 = pneg %p54
        %p267 = scmp.lt.s32.totalorder %s27, 0
        %s268 = scalar_select %p267, %s27, 0
        %s269 = smul.addr %s268, 4
        %s270 = scalar_lea.vmem %s1, %s269
        %p271 = pneg %p83
        %p272 = pneg %p80
        %p273 = pneg %p104
        %p274 = pneg %p101
        %p275 = pneg %p125
        %p276 = pneg %p122
        %s277 = sand.u32 %s138, 1
        %s278 = scalar_lea.sflag [#allocation5], %s277
        %s279 = sand.u32 %s138, 1
        %s280 = smul.addr %s279, 256
        %s281 = scalar_lea.vmem [#allocation4], %s280
        %p282 = pneg %p151
        %p283 = pneg %p148
        %p284 = pneg %p177
        %p285 = pneg %p174
        %s286 = sand.u32 %s164, 1
        %s287 = scalar_lea.sflag [#allocation6], %s286
        %s288 = sand.u32 %s164, 1
        %s289 = smul.addr %s288, 256
        %s290 = scalar_lea.vmem [#allocation7], %s289
        %p291 = scmp.lt.s32.totalorder %s26, 1
        %s292 = scalar_select %p291, %s26, 1
        %p293 = scmp.lt.s32.totalorder %s27, 0
        %s294 = scalar_select %p293, %s27, 0
        %s295 = smul.addr %s292, 32
        %s296 = sadd.s32 %s294, %s295
        %s297 = smul.addr %s296, 4
        %s298 = scalar_lea.vmem %s0, %s297
        %p299 = scmp.lt.s32.totalorder %s27, 0
        %s300 = scalar_select %p299, %s27, 0
        %s301 = smul.addr %s300, 4
        %s302 = scalar_lea.vmem %s1, %s301
        %p304 = scmp.eq.s32.totalorder %s27, 0
        // Predicated region
        $region45: #{tpu_custom_call.1} parent=39 // pred_check
          %p305 = pneg %p304
        $region46: #{tpu_custom_call.1} parent=39 // pred_check_branch
          %307 = sbr.rel (%p305) target = $region48
        $region47: #{tpu_custom_call.1} parent=39 // pred_region
          %308 = vst [vmem:[#allocation3] sm:$0xff] 0.0
          %309 = vst [vmem:[#allocation3 + $0x8] sm:$0xff] 0.0
          %310 = vst [vmem:[#allocation3 + $0x10] sm:$0xff] 0.0
          %311 = vst [vmem:[#allocation3 + $0x18] sm:$0xff] 0.0
          %312 = vst [vmem:[#allocation3 + $0x20] sm:$0xff] 0.0
          %313 = vst [vmem:[#allocation3 + $0x28] sm:$0xff] 0.0
          %314 = vst [vmem:[#allocation3 + $0x30] sm:$0xff] 0.0
          %315 = vst [vmem:[#allocation3 + $0x38] sm:$0xff] 0.0
          %316 = vst [vmem:[#allocation3 + $0x40] sm:$0xff] 0.0
          %317 = vst [vmem:[#allocation3 + $0x48] sm:$0xff] 0.0
          %318 = vst [vmem:[#allocation3 + $0x50] sm:$0xff] 0.0
          %319 = vst [vmem:[#allocation3 + $0x58] sm:$0xff] 0.0
          %320 = vst [vmem:[#allocation3 + $0x60] sm:$0xff] 0.0
          %321 = vst [vmem:[#allocation3 + $0x68] sm:$0xff] 0.0
          %322 = vst [vmem:[#allocation3 + $0x70] sm:$0xff] 0.0
          %323 = vst [vmem:[#allocation3 + $0x78] sm:$0xff] 0.0
          %324 = vst [vmem:[#allocation3 + $0x80] sm:$0xff] 0.0
          %325 = vst [vmem:[#allocation3 + $0x88] sm:$0xff] 0.0
          %326 = vst [vmem:[#allocation3 + $0x90] sm:$0xff] 0.0
          %327 = vst [vmem:[#allocation3 + $0x98] sm:$0xff] 0.0
          %328 = vst [vmem:[#allocation3 + $0xa0] sm:$0xff] 0.0
          %329 = vst [vmem:[#allocation3 + $0xa8] sm:$0xff] 0.0
          %330 = vst [vmem:[#allocation3 + $0xb0] sm:$0xff] 0.0
          %331 = vst [vmem:[#allocation3 + $0xb8] sm:$0xff] 0.0
          %332 = vst [vmem:[#allocation3 + $0xc0] sm:$0xff] 0.0
          %333 = vst [vmem:[#allocation3 + $0xc8] sm:$0xff] 0.0
          %334 = vst [vmem:[#allocation3 + $0xd0] sm:$0xff] 0.0
          %335 = vst [vmem:[#allocation3 + $0xd8] sm:$0xff] 0.0
          %336 = vst [vmem:[#allocation3 + $0xe0] sm:$0xff] 0.0
          %337 = vst [vmem:[#allocation3 + $0xe8] sm:$0xff] 0.0
          %338 = vst [vmem:[#allocation3 + $0xf0] sm:$0xff] 0.0
          %339 = vst [vmem:[#allocation3 + $0xf8] sm:$0xff] 0.0
        $region48: #{tpu_custom_call.1} parent=39 // pred_fallthru
          _
        %vm340 = vcmask 60416
        %341 = vst.msk [vmem:[#allocation2] sm:$0xf] %vm340, 0
        %342 = vst.msk [vmem:[#allocation2 + $0x4] sm:$0xf] %vm340, 0
        %vm343 = vcmask 57344
        %344 = vst.msk [vmem:[#allocation2 + $0x8] sm:$0x1] %vm343, 0
        %345 = vst.msk [vmem:[#allocation2 + $0xc] sm:$0xf] %vm340, 0
        %346 = vst.msk [vmem:[#allocation2 + $0x10] sm:$0xf] %vm340, 0
        %347 = vst.msk [vmem:[#allocation2 + $0x14] sm:$0x1] %vm343, 0
        %348 = vst.msk [vmem:[#allocation2 + $0x18] sm:$0xf] %vm340, 0
        %349 = vst.msk [vmem:[#allocation2 + $0x1c] sm:$0xf] %vm340, 0
        %350 = vst.msk [vmem:[#allocation2 + $0x20] sm:$0x1] %vm343, 0
        %351 = vst.msk [vmem:[#allocation2 + $0x24] sm:$0xf] %vm340, 0
        %352 = vst.msk [vmem:[#allocation2 + $0x28] sm:$0xf] %vm340, 0
        %353 = vst.msk [vmem:[#allocation2 + $0x2c] sm:$0x1] %vm343, 0
        %354 = vst.msk [vmem:[#allocation2 + $0x30] sm:$0xf] %vm340, 0
        %355 = vst.msk [vmem:[#allocation2 + $0x34] sm:$0xf] %vm340, 0
        %356 = vst.msk [vmem:[#allocation2 + $0x38] sm:$0x1] %vm343, 0
        %357 = vst.msk [vmem:[#allocation2 + $0x3c] sm:$0xf] %vm340, 0
        %358 = vst.msk [vmem:[#allocation2 + $0x40] sm:$0xf] %vm340, 0
        %359 = vst.msk [vmem:[#allocation2 + $0x44] sm:$0x1] %vm343, 0
        %360 = vst.msk [vmem:[#allocation2 + $0x48] sm:$0xf] %vm340, 0
        %361 = vst.msk [vmem:[#allocation2 + $0x4c] sm:$0xf] %vm340, 0
        %362 = vst.msk [vmem:[#allocation2 + $0x50] sm:$0x1] %vm343, 0
        %363 = vst.msk [vmem:[#allocation2 + $0x54] sm:$0xf] %vm340, 0
        %364 = vst.msk [vmem:[#allocation2 + $0x58] sm:$0xf] %vm340, 0
        %365 = vst.msk [vmem:[#allocation2 + $0x5c] sm:$0x1] %vm343, 0
        %366 = vst.msk [vmem:[#allocation2 + $0x60] sm:$0xf] %vm340, 0
        %367 = vst.msk [vmem:[#allocation2 + $0x64] sm:$0xf] %vm340, 0
        %368 = vst.msk [vmem:[#allocation2 + $0x68] sm:$0x1] %vm343, 0
        %369 = vst.msk [vmem:[#allocation2 + $0x6c] sm:$0xf] %vm340, 0
        %370 = vst.msk [vmem:[#allocation2 + $0x70] sm:$0xf] %vm340, 0
        %371 = vst.msk [vmem:[#allocation2 + $0x74] sm:$0x1] %vm343, 0
        %372 = vst.msk [vmem:[#allocation2 + $0x78] sm:$0xf] %vm340, 0
        %373 = vst.msk [vmem:[#allocation2 + $0x7c] sm:$0xf] %vm340, 0
        %374 = vst.msk [vmem:[#allocation2 + $0x80] sm:$0x1] %vm343, 0
        %375 = vst.msk [vmem:[#allocation2 + $0x84] sm:$0xf] %vm340, 0
        %376 = vst.msk [vmem:[#allocation2 + $0x88] sm:$0xf] %vm340, 0
        %377 = vst.msk [vmem:[#allocation2 + $0x8c] sm:$0x1] %vm343, 0
        %378 = vst.msk [vmem:[#allocation2 + $0x90] sm:$0xf] %vm340, 0
        %379 = vst.msk [vmem:[#allocation2 + $0x94] sm:$0xf] %vm340, 0
        %380 = vst.msk [vmem:[#allocation2 + $0x98] sm:$0x1] %vm343, 0
        %381 = vst.msk [vmem:[#allocation2 + $0x9c] sm:$0xf] %vm340, 0
        %382 = vst.msk [vmem:[#allocation2 + $0xa0] sm:$0xf] %vm340, 0
        %383 = vst.msk [vmem:[#allocation2 + $0xa4] sm:$0x1] %vm343, 0
        %384 = vst.msk [vmem:[#allocation2 + $0xa8] sm:$0xf] %vm340, 0
        %385 = vst.msk [vmem:[#allocation2 + $0xac] sm:$0xf] %vm340, 0
        %386 = vst.msk [vmem:[#allocation2 + $0xb0] sm:$0x1] %vm343, 0
        %387 = vst.msk [vmem:[#allocation2 + $0xb4] sm:$0xf] %vm340, 0
        %388 = vst.msk [vmem:[#allocation2 + $0xb8] sm:$0xf] %vm340, 0
        %389 = vst.msk [vmem:[#allocation2 + $0xbc] sm:$0x1] %vm343, 0
        %390 = vst.msk [vmem:[#allocation2 + $0xc0] sm:$0xf] %vm340, 0
        %391 = vst.msk [vmem:[#allocation2 + $0xc4] sm:$0xf] %vm340, 0
        %392 = vst.msk [vmem:[#allocation2 + $0xc8] sm:$0x1] %vm343, 0
        %393 = vst.msk [vmem:[#allocation2 + $0xcc] sm:$0xf] %vm340, 0
        %394 = vst.msk [vmem:[#allocation2 + $0xd0] sm:$0xf] %vm340, 0
        %395 = vst.msk [vmem:[#allocation2 + $0xd4] sm:$0x1] %vm343, 0
        %v396 = vld [vmem:[%s298] sm:$0xf]
        %v397 = vld [vmem:[%s298 + $0x4] sm:$0xf]
        %v398 = vld [vmem:[%s298 + $0x8] sm:$0xf]
        %v399 = vld [vmem:[%s298 + $0xc] sm:$0xf]
        %v400 = vld [vmem:[%s298 + $0x10] sm:$0xf]
        %v401 = vld [vmem:[%s298 + $0x14] sm:$0xf]
        %v402 = vld [vmem:[%s298 + $0x18] sm:$0xf]
        %v403 = vld [vmem:[%s298 + $0x1c] sm:$0xf]
        %v404 = vld [vmem:[%s298 + $0x20] sm:$0xf]
        %v405 = vld [vmem:[%s298 + $0x24] sm:$0xf]
        %v406 = vld [vmem:[%s298 + $0x28] sm:$0xf]
        %v407 = vld [vmem:[%s298 + $0x2c] sm:$0xf]
        %v408 = vld [vmem:[%s298 + $0x30] sm:$0xf]
        %v409 = vld [vmem:[%s298 + $0x34] sm:$0xf]
        %v410 = vld [vmem:[%s298 + $0x38] sm:$0xf]
        %v411 = vld [vmem:[%s298 + $0x3c] sm:$0xf]
        %v412 = vld [vmem:[%s298 + $0x40] sm:$0xf]
        %v413 = vld [vmem:[%s298 + $0x44] sm:$0xf]
        %v414 = vld [vmem:[%s298 + $0x48] sm:$0xf]
        %v415 = vld [vmem:[%s298 + $0x4c] sm:$0xf]
        %v416 = vld [vmem:[%s298 + $0x50] sm:$0xf]
        %v417 = vld [vmem:[%s298 + $0x54] sm:$0xf]
        %v418 = vld [vmem:[%s298 + $0x58] sm:$0xf]
        %v419 = vld [vmem:[%s298 + $0x5c] sm:$0xf]
        %v420 = vld [vmem:[%s298 + $0x60] sm:$0xf]
        %v421 = vld [vmem:[%s298 + $0x64] sm:$0xf]
        %v422 = vld [vmem:[%s298 + $0x68] sm:$0xf]
        %v423 = vld [vmem:[%s298 + $0x6c] sm:$0xf]
        %v424 = vld [vmem:[%s298 + $0x70] sm:$0xf]
        %v425 = vld [vmem:[%s298 + $0x74] sm:$0xf]
        %v426 = vld [vmem:[%s298 + $0x78] sm:$0xf]
        %v427 = vld [vmem:[%s298 + $0x7c] sm:$0xf]
        %vm428 = vsmask.f32 256
        %vm429 = vsmask.f32 4368
        %vm430 = vmor %vm428, %vm429
        %v432 = vshrl.u32 %v396, 16
        %v434 = vrot.slane %v432, 7
        %v435 = vshll.u32 %v396, 16
        %v437 = vor.u32 %v434, %v435
        %v438 = vrot.slane %v434, 4
        %v440 = vshrl.u32 %v397, 16
        %v442 = vrot.slane %v440, 7
        %v443 = vshll.u32 %v397, 16
        %v445 = vor.u32 %v442, %v443
        %v446 = vsel %vm430, %v438, %v445
        %v447 = vrot.slane %v442, 4
        %v449 = vshrl.u32 %v398, 16
        %v451 = vrot.slane %v449, 7
        %v452 = vshll.u32 %v398, 16
        %v454 = vor.u32 %v451, %v452
        %v455 = vrot.slane %v451, 4
        %v457 = vshrl.u32 %v399, 16
        %v459 = vrot.slane %v457, 7
        %v460 = vshll.u32 %v399, 16
        %v462 = vor.u32 %v459, %v460
        %v463 = vsel %vm430, %v455, %v462
        %v464 = vrot.slane %v459, 4
        %v466 = vshrl.u32 %v400, 16
        %v468 = vrot.slane %v466, 7
        %v469 = vshll.u32 %v400, 16
        %v471 = vor.u32 %v468, %v469
        %v472 = vrot.slane %v468, 4
        %v474 = vshrl.u32 %v401, 16
        %v476 = vrot.slane %v474, 7
        %v477 = vshll.u32 %v401, 16
        %v479 = vor.u32 %v476, %v477
        %v480 = vsel %vm430, %v472, %v479
        %v481 = vrot.slane %v476, 4
        %v483 = vshrl.u32 %v402, 16
        %v485 = vrot.slane %v483, 7
        %v486 = vshll.u32 %v402, 16
        %v488 = vor.u32 %v485, %v486
        %v489 = vrot.slane %v485, 4
        %v491 = vshrl.u32 %v403, 16
        %v493 = vrot.slane %v491, 7
        %v494 = vshll.u32 %v403, 16
        %v496 = vor.u32 %v493, %v494
        %v497 = vsel %vm430, %v489, %v496
        %v498 = vrot.slane %v493, 4
        %v500 = vshrl.u32 %v404, 16
        %v502 = vrot.slane %v500, 7
        %v503 = vshll.u32 %v404, 16
        %v505 = vor.u32 %v502, %v503
        %v506 = vrot.slane %v502, 4
        %v508 = vshrl.u32 %v405, 16
        %v510 = vrot.slane %v508, 7
        %v511 = vshll.u32 %v405, 16
        %v513 = vor.u32 %v510, %v511
        %v514 = vsel %vm430, %v506, %v513
        %v515 = vrot.slane %v510, 4
        %v517 = vshrl.u32 %v406, 16
        %v519 = vrot.slane %v517, 7
        %v520 = vshll.u32 %v406, 16
        %v522 = vor.u32 %v519, %v520
        %v523 = vrot.slane %v519, 4
        %v525 = vshrl.u32 %v407, 16
        %v527 = vrot.slane %v525, 7
        %v528 = vshll.u32 %v407, 16
        %v530 = vor.u32 %v527, %v528
        %v531 = vsel %vm430, %v523, %v530
        %v532 = vrot.slane %v527, 4
        %v534 = vshrl.u32 %v408, 16
        %v536 = vrot.slane %v534, 7
        %v537 = vshll.u32 %v408, 16
        %v539 = vor.u32 %v536, %v537
        %v540 = vrot.slane %v536, 4
        %v542 = vshrl.u32 %v409, 16
        %v544 = vrot.slane %v542, 7
        %v545 = vshll.u32 %v409, 16
        %v547 = vor.u32 %v544, %v545
        %v548 = vsel %vm430, %v540, %v547
        %v549 = vrot.slane %v544, 4
        %v551 = vshrl.u32 %v410, 16
        %v553 = vrot.slane %v551, 7
        %v554 = vshll.u32 %v410, 16
        %v556 = vor.u32 %v553, %v554
        %v557 = vrot.slane %v553, 4
        %v559 = vshrl.u32 %v411, 16
        %v561 = vrot.slane %v559, 7
        %v562 = vshll.u32 %v411, 16
        %v564 = vor.u32 %v561, %v562
        %v565 = vsel %vm430, %v557, %v564
        %v566 = vrot.slane %v561, 4
        %v568 = vshrl.u32 %v412, 16
        %v570 = vrot.slane %v568, 7
        %v571 = vshll.u32 %v412, 16
        %v573 = vor.u32 %v570, %v571
        %v574 = vrot.slane %v570, 4
        %v576 = vshrl.u32 %v413, 16
        %v578 = vrot.slane %v576, 7
        %v579 = vshll.u32 %v413, 16
        %v581 = vor.u32 %v578, %v579
        %v582 = vsel %vm430, %v574, %v581
        %v583 = vrot.slane %v578, 4
        %v585 = vshrl.u32 %v414, 16
        %v587 = vrot.slane %v585, 7
        %v588 = vshll.u32 %v414, 16
        %v590 = vor.u32 %v587, %v588
        %v591 = vrot.slane %v587, 4
        %v593 = vshrl.u32 %v415, 16
        %v595 = vrot.slane %v593, 7
        %v596 = vshll.u32 %v415, 16
        %v598 = vor.u32 %v595, %v596
        %v599 = vsel %vm430, %v591, %v598
        %v600 = vrot.slane %v595, 4
        %v602 = vshrl.u32 %v416, 16
        %v604 = vrot.slane %v602, 7
        %v605 = vshll.u32 %v416, 16
        %v607 = vor.u32 %v604, %v605
        %v608 = vrot.slane %v604, 4
        %v610 = vshrl.u32 %v417, 16
        %v612 = vrot.slane %v610, 7
        %v613 = vshll.u32 %v417, 16
        %v615 = vor.u32 %v612, %v613
        %v616 = vsel %vm430, %v608, %v615
        %v617 = vrot.slane %v612, 4
        %v619 = vshrl.u32 %v418, 16
        %v621 = vrot.slane %v619, 7
        %v622 = vshll.u32 %v418, 16
        %v624 = vor.u32 %v621, %v622
        %v625 = vrot.slane %v621, 4
        %v627 = vshrl.u32 %v419, 16
        %v629 = vrot.slane %v627, 7
        %v630 = vshll.u32 %v419, 16
        %v632 = vor.u32 %v629, %v630
        %v633 = vsel %vm430, %v625, %v632
        %v634 = vrot.slane %v629, 4
        %v636 = vshrl.u32 %v420, 16
        %v638 = vrot.slane %v636, 7
        %v639 = vshll.u32 %v420, 16
        %v641 = vor.u32 %v638, %v639
        %v642 = vrot.slane %v638, 4
        %v644 = vshrl.u32 %v421, 16
        %v646 = vrot.slane %v644, 7
        %v647 = vshll.u32 %v421, 16
        %v649 = vor.u32 %v646, %v647
        %v650 = vsel %vm430, %v642, %v649
        %v651 = vrot.slane %v646, 4
        %v653 = vshrl.u32 %v422, 16
        %v655 = vrot.slane %v653, 7
        %v656 = vshll.u32 %v422, 16
        %v658 = vor.u32 %v655, %v656
        %v659 = vrot.slane %v655, 4
        %v661 = vshrl.u32 %v423, 16
        %v663 = vrot.slane %v661, 7
        %v664 = vshll.u32 %v423, 16
        %v666 = vor.u32 %v663, %v664
        %v667 = vsel %vm430, %v659, %v666
        %v668 = vrot.slane %v663, 4
        %v670 = vshrl.u32 %v424, 16
        %v672 = vrot.slane %v670, 7
        %v673 = vshll.u32 %v424, 16
        %v675 = vor.u32 %v672, %v673
        %v676 = vrot.slane %v672, 4
        %v678 = vshrl.u32 %v425, 16
        %v680 = vrot.slane %v678, 7
        %v681 = vshll.u32 %v425, 16
        %v683 = vor.u32 %v680, %v681
        %v684 = vsel %vm430, %v676, %v683
        %v685 = vrot.slane %v680, 4
        %v687 = vshrl.u32 %v426, 16
        %v689 = vrot.slane %v687, 7
        %v690 = vshll.u32 %v426, 16
        %v692 = vor.u32 %v689, %v690
        %v693 = vrot.slane %v689, 4
        %v695 = vshrl.u32 %v427, 16
        %v697 = vrot.slane %v695, 7
        %v698 = vshll.u32 %v427, 16
        %v700 = vor.u32 %v697, %v698
        %v701 = vsel %vm430, %v693, %v700
        %v702 = vrot.slane %v697, 4
        %s751 = scalar_lea.vmem [#allocation2], 12
        %vm752 = vcmask 60416
        %vm753 = vsmask.f32 7938
        %vm754 = vmand %vm752, %vm753
        %v755 = vld [vmem:[%s751] sm:$0xf]
        %v756 = vsel %vm754, %v437, %v755
        %757 = vst [vmem:[%s751] sm:$0xf] %v756
        %758 = vst.msk [vmem:[%s751 + $0x4] sm:$0xf] %vm340, %v446
        %vm759 = vcmask 57344
        %vm760 = vmand %vm759, %vm428
        %v761 = vld [vmem:[%s751 + $0x8] sm:$0x1]
        %v762 = vsel %vm760, %v447, %v761
        %763 = vst [vmem:[%s751 + $0x8] sm:$0x1] %v762
        %v764 = vld [vmem:[%s751 + $0xc] sm:$0xf]
        %v765 = vsel %vm754, %v454, %v764
        %766 = vst [vmem:[%s751 + $0xc] sm:$0xf] %v765
        %767 = vst.msk [vmem:[%s751 + $0x10] sm:$0xf] %vm340, %v463
        %v768 = vld [vmem:[%s751 + $0x14] sm:$0x1]
        %v769 = vsel %vm760, %v464, %v768
        %770 = vst [vmem:[%s751 + $0x14] sm:$0x1] %v769
        %v771 = vld [vmem:[%s751 + $0x18] sm:$0xf]
        %v772 = vsel %vm754, %v471, %v771
        %773 = vst [vmem:[%s751 + $0x18] sm:$0xf] %v772
        %774 = vst.msk [vmem:[%s751 + $0x1c] sm:$0xf] %vm340, %v480
        %v775 = vld [vmem:[%s751 + $0x20] sm:$0x1]
        %v776 = vsel %vm760, %v481, %v775
        %777 = vst [vmem:[%s751 + $0x20] sm:$0x1] %v776
        %v778 = vld [vmem:[%s751 + $0x24] sm:$0xf]
        %v779 = vsel %vm754, %v488, %v778
        %780 = vst [vmem:[%s751 + $0x24] sm:$0xf] %v779
        %781 = vst.msk [vmem:[%s751 + $0x28] sm:$0xf] %vm340, %v497
        %v782 = vld [vmem:[%s751 + $0x2c] sm:$0x1]
        %v783 = vsel %vm760, %v498, %v782
        %784 = vst [vmem:[%s751 + $0x2c] sm:$0x1] %v783
        %v785 = vld [vmem:[%s751 + $0x30] sm:$0xf]
        %v786 = vsel %vm754, %v505, %v785
        %787 = vst [vmem:[%s751 + $0x30] sm:$0xf] %v786
        %788 = vst.msk [vmem:[%s751 + $0x34] sm:$0xf] %vm340, %v514
        %v789 = vld [vmem:[%s751 + $0x38] sm:$0x1]
        %v790 = vsel %vm760, %v515, %v789
        %791 = vst [vmem:[%s751 + $0x38] sm:$0x1] %v790
        %v792 = vld [vmem:[%s751 + $0x3c] sm:$0xf]
        %v793 = vsel %vm754, %v522, %v792
        %794 = vst [vmem:[%s751 + $0x3c] sm:$0xf] %v793
        %795 = vst.msk [vmem:[%s751 + $0x40] sm:$0xf] %vm340, %v531
        %v796 = vld [vmem:[%s751 + $0x44] sm:$0x1]
        %v797 = vsel %vm760, %v532, %v796
        %798 = vst [vmem:[%s751 + $0x44] sm:$0x1] %v797
        %v799 = vld [vmem:[%s751 + $0x48] sm:$0xf]
        %v800 = vsel %vm754, %v539, %v799
        %801 = vst [vmem:[%s751 + $0x48] sm:$0xf] %v800
        %802 = vst.msk [vmem:[%s751 + $0x4c] sm:$0xf] %vm340, %v548
        %v803 = vld [vmem:[%s751 + $0x50] sm:$0x1]
        %v804 = vsel %vm760, %v549, %v803
        %805 = vst [vmem:[%s751 + $0x50] sm:$0x1] %v804
        %v806 = vld [vmem:[%s751 + $0x54] sm:$0xf]
        %v807 = vsel %vm754, %v556, %v806
        %808 = vst [vmem:[%s751 + $0x54] sm:$0xf] %v807
        %809 = vst.msk [vmem:[%s751 + $0x58] sm:$0xf] %vm340, %v565
        %v810 = vld [vmem:[%s751 + $0x5c] sm:$0x1]
        %v811 = vsel %vm760, %v566, %v810
        %812 = vst [vmem:[%s751 + $0x5c] sm:$0x1] %v811
        %v813 = vld [vmem:[%s751 + $0x60] sm:$0xf]
        %v814 = vsel %vm754, %v573, %v813
        %815 = vst [vmem:[%s751 + $0x60] sm:$0xf] %v814
        %816 = vst.msk [vmem:[%s751 + $0x64] sm:$0xf] %vm340, %v582
        %v817 = vld [vmem:[%s751 + $0x68] sm:$0x1]
        %v818 = vsel %vm760, %v583, %v817
        %819 = vst [vmem:[%s751 + $0x68] sm:$0x1] %v818
        %v820 = vld [vmem:[%s751 + $0x6c] sm:$0xf]
        %v821 = vsel %vm754, %v590, %v820
        %822 = vst [vmem:[%s751 + $0x6c] sm:$0xf] %v821
        %823 = vst.msk [vmem:[%s751 + $0x70] sm:$0xf] %vm340, %v599
        %v824 = vld [vmem:[%s751 + $0x74] sm:$0x1]
        %v825 = vsel %vm760, %v600, %v824
        %826 = vst [vmem:[%s751 + $0x74] sm:$0x1] %v825
        %v827 = vld [vmem:[%s751 + $0x78] sm:$0xf]
        %v828 = vsel %vm754, %v607, %v827
        %829 = vst [vmem:[%s751 + $0x78] sm:$0xf] %v828
        %830 = vst.msk [vmem:[%s751 + $0x7c] sm:$0xf] %vm340, %v616
        %v831 = vld [vmem:[%s751 + $0x80] sm:$0x1]
        %v832 = vsel %vm760, %v617, %v831
        %833 = vst [vmem:[%s751 + $0x80] sm:$0x1] %v832
        %v834 = vld [vmem:[%s751 + $0x84] sm:$0xf]
        %v835 = vsel %vm754, %v624, %v834
        %836 = vst [vmem:[%s751 + $0x84] sm:$0xf] %v835
        %837 = vst.msk [vmem:[%s751 + $0x88] sm:$0xf] %vm340, %v633
        %v838 = vld [vmem:[%s751 + $0x8c] sm:$0x1]
        %v839 = vsel %vm760, %v634, %v838
        %840 = vst [vmem:[%s751 + $0x8c] sm:$0x1] %v839
        %v841 = vld [vmem:[%s751 + $0x90] sm:$0xf]
        %v842 = vsel %vm754, %v641, %v841
        %843 = vst [vmem:[%s751 + $0x90] sm:$0xf] %v842
        %844 = vst.msk [vmem:[%s751 + $0x94] sm:$0xf] %vm340, %v650
        %v845 = vld [vmem:[%s751 + $0x98] sm:$0x1]
        %v846 = vsel %vm760, %v651, %v845
        %847 = vst [vmem:[%s751 + $0x98] sm:$0x1] %v846
        %v848 = vld [vmem:[%s751 + $0x9c] sm:$0xf]
        %v849 = vsel %vm754, %v658, %v848
        %850 = vst [vmem:[%s751 + $0x9c] sm:$0xf] %v849
        %851 = vst.msk [vmem:[%s751 + $0xa0] sm:$0xf] %vm340, %v667
        %v852 = vld [vmem:[%s751 + $0xa4] sm:$0x1]
        %v853 = vsel %vm760, %v668, %v852
        %854 = vst [vmem:[%s751 + $0xa4] sm:$0x1] %v853
        %v855 = vld [vmem:[%s751 + $0xa8] sm:$0xf]
        %v856 = vsel %vm754, %v675, %v855
        %857 = vst [vmem:[%s751 + $0xa8] sm:$0xf] %v856
        %858 = vst.msk [vmem:[%s751 + $0xac] sm:$0xf] %vm340, %v684
        %v859 = vld [vmem:[%s751 + $0xb0] sm:$0x1]
        %v860 = vsel %vm760, %v685, %v859
        %861 = vst [vmem:[%s751 + $0xb0] sm:$0x1] %v860
        %v862 = vld [vmem:[%s751 + $0xb4] sm:$0xf]
        %v863 = vsel %vm754, %v692, %v862
        %864 = vst [vmem:[%s751 + $0xb4] sm:$0xf] %v863
        %865 = vst.msk [vmem:[%s751 + $0xb8] sm:$0xf] %vm340, %v701
        %v866 = vld [vmem:[%s751 + $0xbc] sm:$0x1]
        %v867 = vsel %vm760, %v702, %v866
        %868 = vst [vmem:[%s751 + $0xbc] sm:$0x1] %v867
        %v869 = vld [vmem:[#allocation2] sm:$0xf]
        %v870 = vld [vmem:[#allocation2 + $0x4] sm:$0xf]
        %v871 = vld [vmem:[#allocation2 + $0xc] sm:$0xf]
        %v872 = vld [vmem:[#allocation2 + $0x10] sm:$0xf]
        %v873 = vld [vmem:[#allocation2 + $0x18] sm:$0xf]
        %v874 = vld [vmem:[#allocation2 + $0x1c] sm:$0xf]
        %v875 = vld [vmem:[#allocation2 + $0x24] sm:$0xf]
        %v876 = vld [vmem:[#allocation2 + $0x28] sm:$0xf]
        %v877 = vld [vmem:[#allocation2 + $0x30] sm:$0xf]
        %v878 = vld [vmem:[#allocation2 + $0x34] sm:$0xf]
        %v879 = vld [vmem:[#allocation2 + $0x3c] sm:$0xf]
        %v880 = vld [vmem:[#allocation2 + $0x40] sm:$0xf]
        %v881 = vld [vmem:[#allocation2 + $0x48] sm:$0xf]
        %v882 = vld [vmem:[#allocation2 + $0x4c] sm:$0xf]
        %v883 = vld [vmem:[#allocation2 + $0x54] sm:$0xf]
        %v884 = vld [vmem:[#allocation2 + $0x58] sm:$0xf]
        %v885 = vld [vmem:[#allocation2 + $0x60] sm:$0xf]
        %v886 = vld [vmem:[#allocation2 + $0x64] sm:$0xf]
        %v887 = vld [vmem:[#allocation2 + $0x6c] sm:$0xf]
        %v888 = vld [vmem:[#allocation2 + $0x70] sm:$0xf]
        %v889 = vld [vmem:[#allocation2 + $0x78] sm:$0xf]
        %v890 = vld [vmem:[#allocation2 + $0x7c] sm:$0xf]
        %v891 = vld [vmem:[#allocation2 + $0x84] sm:$0xf]
        %v892 = vld [vmem:[#allocation2 + $0x88] sm:$0xf]
        %v893 = vld [vmem:[#allocation2 + $0x90] sm:$0xf]
        %v894 = vld [vmem:[#allocation2 + $0x94] sm:$0xf]
        %v895 = vld [vmem:[#allocation2 + $0x9c] sm:$0xf]
        %v896 = vld [vmem:[#allocation2 + $0xa0] sm:$0xf]
        %v897 = vld [vmem:[#allocation2 + $0xa8] sm:$0xf]
        %v898 = vld [vmem:[#allocation2 + $0xac] sm:$0xf]
        %v899 = vld [vmem:[#allocation2 + $0xb4] sm:$0xf]
        %v900 = vld [vmem:[#allocation2 + $0xb8] sm:$0xf]
        %v901 = vld [vmem:[#allocation3] sm:$0xff]
        %v902 = vld [vmem:[#allocation3 + $0x8] sm:$0xff]
        %v903 = vld [vmem:[#allocation3 + $0x10] sm:$0xff]
        %v904 = vld [vmem:[#allocation3 + $0x18] sm:$0xff]
        %v905 = vld [vmem:[#allocation3 + $0x20] sm:$0xff]
        %v906 = vld [vmem:[#allocation3 + $0x28] sm:$0xff]
        %v907 = vld [vmem:[#allocation3 + $0x30] sm:$0xff]
        %v908 = vld [vmem:[#allocation3 + $0x38] sm:$0xff]
        %v909 = vld [vmem:[#allocation3 + $0x40] sm:$0xff]
        %v910 = vld [vmem:[#allocation3 + $0x48] sm:$0xff]
        %v911 = vld [vmem:[#allocation3 + $0x50] sm:$0xff]
        %v912 = vld [vmem:[#allocation3 + $0x58] sm:$0xff]
        %v913 = vld [vmem:[#allocation3 + $0x60] sm:$0xff]
        %v914 = vld [vmem:[#allocation3 + $0x68] sm:$0xff]
        %v915 = vld [vmem:[#allocation3 + $0x70] sm:$0xff]
        %v916 = vld [vmem:[#allocation3 + $0x78] sm:$0xff]
        %v917 = vld [vmem:[#allocation3 + $0x80] sm:$0xff]
        %v918 = vld [vmem:[#allocation3 + $0x88] sm:$0xff]
        %v919 = vld [vmem:[#allocation3 + $0x90] sm:$0xff]
        %v920 = vld [vmem:[#allocation3 + $0x98] sm:$0xff]
        %v921 = vld [vmem:[#allocation3 + $0xa0] sm:$0xff]
        %v922 = vld [vmem:[#allocation3 + $0xa8] sm:$0xff]
        %v923 = vld [vmem:[#allocation3 + $0xb0] sm:$0xff]
        %v924 = vld [vmem:[#allocation3 + $0xb8] sm:$0xff]
        %v925 = vld [vmem:[#allocation3 + $0xc0] sm:$0xff]
        %v926 = vld [vmem:[#allocation3 + $0xc8] sm:$0xff]
        %v927 = vld [vmem:[#allocation3 + $0xd0] sm:$0xff]
        %v928 = vld [vmem:[#allocation3 + $0xd8] sm:$0xff]
        %v929 = vld [vmem:[#allocation3 + $0xe0] sm:$0xff]
        %v930 = vld [vmem:[#allocation3 + $0xe8] sm:$0xff]
        %v931 = vld [vmem:[#allocation3 + $0xf0] sm:$0xff]
        %v932 = vld [vmem:[#allocation3 + $0xf8] sm:$0xff]
        %v933 = vld [vmem:[%s302] sm:$0xf]
        %v966 = vunpack.c.l.b16 %v869
        %v967 = vunpack.c.l.b16 %v870
        %v968 = vunpack.c.l.b16 %v871
        %v969 = vunpack.c.l.b16 %v872
        %v970 = vunpack.c.l.b16 %v873
        %v971 = vunpack.c.l.b16 %v874
        %v972 = vunpack.c.l.b16 %v875
        %v973 = vunpack.c.l.b16 %v876
        %v974 = vunpack.c.l.b16 %v877
        %v975 = vunpack.c.l.b16 %v878
        %v976 = vunpack.c.l.b16 %v879
        %v977 = vunpack.c.l.b16 %v880
        %v978 = vunpack.c.l.b16 %v881
        %v979 = vunpack.c.l.b16 %v882
        %v980 = vunpack.c.l.b16 %v883
        %v981 = vunpack.c.l.b16 %v884
        %v982 = vunpack.c.l.b16 %v885
        %v983 = vunpack.c.l.b16 %v886
        %v984 = vunpack.c.l.b16 %v887
        %v985 = vunpack.c.l.b16 %v888
        %v986 = vunpack.c.l.b16 %v889
        %v987 = vunpack.c.l.b16 %v890
        %v988 = vunpack.c.l.b16 %v891
        %v989 = vunpack.c.l.b16 %v892
        %v990 = vunpack.c.l.b16 %v893
        %v991 = vunpack.c.l.b16 %v894
        %v992 = vunpack.c.l.b16 %v895
        %v993 = vunpack.c.l.b16 %v896
        %v994 = vunpack.c.l.b16 %v897
        %v995 = vunpack.c.l.b16 %v898
        %v996 = vunpack.c.l.b16 %v899
        %v997 = vunpack.c.l.b16 %v900
        %v998 = vpack.c.b16 %v967, %v966
        %v999 = vpack.c.b16 %v969, %v968
        %v1000 = vpack.c.b16 %v971, %v970
        %v1001 = vpack.c.b16 %v973, %v972
        %v1002 = vpack.c.b16 %v975, %v974
        %v1003 = vpack.c.b16 %v977, %v976
        %v1004 = vpack.c.b16 %v979, %v978
        %v1005 = vpack.c.b16 %v981, %v980
        %v1006 = vpack.c.b16 %v983, %v982
        %v1007 = vpack.c.b16 %v985, %v984
        %v1008 = vpack.c.b16 %v987, %v986
        %v1009 = vpack.c.b16 %v989, %v988
        %v1010 = vpack.c.b16 %v991, %v990
        %v1011 = vpack.c.b16 %v993, %v992
        %v1012 = vpack.c.b16 %v995, %v994
        %v1013 = vpack.c.b16 %v997, %v996
        %vm1014 = vcmask 64512
        %v1016 = vsel %vm1014, %v998, 0
        %v1019 = vsel %vm1014, %v999, 0
        %v1022 = vsel %vm1014, %v1000, 0
        %v1025 = vsel %vm1014, %v1001, 0
        %v1028 = vsel %vm1014, %v1002, 0
        %v1031 = vsel %vm1014, %v1003, 0
        %v1034 = vsel %vm1014, %v1004, 0
        %v1037 = vsel %vm1014, %v1005, 0
        %v1040 = vsel %vm1014, %v1006, 0
        %v1043 = vsel %vm1014, %v1007, 0
        %v1046 = vsel %vm1014, %v1008, 0
        %v1049 = vsel %vm1014, %v1009, 0
        %v1052 = vsel %vm1014, %v1010, 0
        %v1055 = vsel %vm1014, %v1011, 0
        %v1058 = vsel %vm1014, %v1012, 0
        %v1061 = vsel %vm1014, %v1013, 0
        %vm1063 = vcmask 1043456
        %v1065 = vsel %vm1063, %v933, 0
        %1067 = vmatprep.subr.bf16.mxu0 0
        %1068 = vmatpush1.bf16.msra.mxu0 %v1065
        %1069 = vmatprep.subr.bf16.mxu0 0
        %1070 = vmatpush1.bf16.msra.mxu0 0
        %1071 = vmatprep.subr.bf16.mxu0 0
        %1072 = vmatpush1.bf16.msra.mxu0 0
        %1073 = vmatprep.subr.bf16.mxu0 0
        %1074 = vmatpush1.bf16.msra.mxu0 0
        %1075 = vmatprep.subr.bf16.mxu0 0
        %1076 = vmatpush1.bf16.msra.mxu0 0
        %1077 = vmatprep.subr.bf16.mxu0 0
        %1078 = vmatpush1.bf16.msra.mxu0 0
        %1079 = vmatprep.subr.bf16.mxu0 0
        %1080 = vmatpush1.bf16.msra.mxu0 0
        %1081 = vmatprep.subr.bf16.mxu0 0
        %1082 = vmatpush1.bf16.msra.mxu0 0
        %1083 = vmatprep.subr.bf16.mxu0 0
        %1084 = vmatpush1.bf16.msra.mxu0 0
        %1085 = vmatprep.subr.bf16.mxu0 0
        %1086 = vmatpush1.bf16.msra.mxu0 0
        %1087 = vmatprep.subr.bf16.mxu0 0
        %1088 = vmatpush1.bf16.msra.mxu0 0
        %1089 = vmatprep.subr.bf16.mxu0 0
        %1090 = vmatpush1.bf16.msra.mxu0 0
        %1091 = vmatprep.subr.bf16.mxu0 0
        %1092 = vmatpush1.bf16.msra.mxu0 0
        %1093 = vmatprep.subr.bf16.mxu0 0
        %1094 = vmatpush1.bf16.msra.mxu0 0
        %1095 = vmatprep.subr.bf16.mxu0 0
        %1096 = vmatpush1.bf16.msra.mxu0 0
        %1097 = vmatprep.subr.bf16.mxu0 0
        %1098 = vmatpush1.bf16.msra.mxu0 0
        %1099 = vmatprep.mubr.bf16.mxu0 0
        %1100 = vmatmul.mubr.bf16.gmra.mrb[0].mxu0 %v1016
        %v1101 = vpop.f32.mrb[0].mxu0
        %v1102 = vadd.f32 0.0, %v1101
        %v1103 = vpop.f32.mrb[0].mxu0
        %v1104 = vpop.f32.mrb[0].mxu0
        %v1105 = vadd.f32 0.0, %v1104
        %v1106 = vpop.f32.mrb[0].mxu0
        %1107 = vmatprep.mubr.bf16.mxu0 0
        %1108 = vmatmul.mubr.bf16.gmra.mrb[0].mxu0 %v1019
        %v1109 = vpop.f32.mrb[0].mxu0
        %v1110 = vadd.f32 0.0, %v1109
        %v1111 = vpop.f32.mrb[0].mxu0
        %v1112 = vpop.f32.mrb[0].mxu0
        %v1113 = vadd.f32 0.0, %v1112
        %v1114 = vpop.f32.mrb[0].mxu0
        %1115 = vmatprep.mubr.bf16.mxu0 0
        %1116 = vmatmul.mubr.bf16.gmra.mrb[0].mxu0 %v1022
        %v1117 = vpop.f32.mrb[0].mxu0
        %v1118 = vadd.f32 0.0, %v1117
        %v1119 = vpop.f32.mrb[0].mxu0
        %v1120 = vpop.f32.mrb[0].mxu0
        %v1121 = vadd.f32 0.0, %v1120
        %v1122 = vpop.f32.mrb[0].mxu0
        %1123 = vmatprep.mubr.bf16.mxu0 0
        %1124 = vmatmul.mubr.bf16.gmra.mrb[0].mxu0 %v1025
        %v1125 = vpop.f32.mrb[0].mxu0
        %v1126 = vadd.f32 0.0, %v1125
        %v1127 = vpop.f32.mrb[0].mxu0
        %v1128 = vpop.f32.mrb[0].mxu0
        %v1129 = vadd.f32 0.0, %v1128
        %v1130 = vpop.f32.mrb[0].mxu0
        %1131 = vmatprep.mubr.bf16.mxu0 0
        %1132 = vmatmul.mubr.bf16.gmra.mrb[0].mxu0 %v1028
        %v1133 = vpop.f32.mrb[0].mxu0
        %v1134 = vadd.f32 0.0, %v1133
        %v1135 = vpop.f32.mrb[0].mxu0
        %v1136 = vpop.f32.mrb[0].mxu0
        %v1137 = vadd.f32 0.0, %v1136
        %v1138 = vpop.f32.mrb[0].mxu0
        %1139 = vmatprep.mubr.bf16.mxu0 0
        %1140 = vmatmul.mubr.bf16.gmra.mrb[0].mxu0 %v1031
        %v1141 = vpop.f32.mrb[0].mxu0
        %v1142 = vadd.f32 0.0, %v1141
        %v1143 = vpop.f32.mrb[0].mxu0
        %v1144 = vpop.f32.mrb[0].mxu0
        %v1145 = vadd.f32 0.0, %v1144
        %v1146 = vpop.f32.mrb[0].mxu0
        %1147 = vmatprep.mubr.bf16.mxu0 0
        %1148 = vmatmul.mubr.bf16.gmra.mrb[0].mxu0 %v1034
        %v1149 = vpop.f32.mrb[0].mxu0
        %v1150 = vadd.f32 0.0, %v1149
        %v1151 = vpop.f32.mrb[0].mxu0
        %v1152 = vpop.f32.mrb[0].mxu0
        %v1153 = vadd.f32 0.0, %v1152
        %v1154 = vpop.f32.mrb[0].mxu0
        %1155 = vmatprep.mubr.bf16.mxu0 0
        %1156 = vmatmul.mubr.bf16.gmra.mrb[0].mxu0 %v1037
        %v1157 = vpop.f32.mrb[0].mxu0
        %v1158 = vadd.f32 0.0, %v1157
        %v1159 = vpop.f32.mrb[0].mxu0
        %v1160 = vpop.f32.mrb[0].mxu0
        %v1161 = vadd.f32 0.0, %v1160
        %v1162 = vpop.f32.mrb[0].mxu0
        %1163 = vmatprep.mubr.bf16.mxu0 0
        %1164 = vmatmul.mubr.bf16.gmra.mrb[0].mxu0 %v1040
        %v1165 = vpop.f32.mrb[0].mxu0
        %v1166 = vadd.f32 0.0, %v1165
        %v1167 = vpop.f32.mrb[0].mxu0
        %v1168 = vpop.f32.mrb[0].mxu0
        %v1169 = vadd.f32 0.0, %v1168
        %v1170 = vpop.f32.mrb[0].mxu0
        %1171 = vmatprep.mubr.bf16.mxu0 0
        %1172 = vmatmul.mubr.bf16.gmra.mrb[0].mxu0 %v1043
        %v1173 = vpop.f32.mrb[0].mxu0
        %v1174 = vadd.f32 0.0, %v1173
        %v1175 = vpop.f32.mrb[0].mxu0
        %v1176 = vpop.f32.mrb[0].mxu0
        %v1177 = vadd.f32 0.0, %v1176
        %v1178 = vpop.f32.mrb[0].mxu0
        %1179 = vmatprep.mubr.bf16.mxu0 0
        %1180 = vmatmul.mubr.bf16.gmra.mrb[0].mxu0 %v1046
        %v1181 = vpop.f32.mrb[0].mxu0
        %v1182 = vadd.f32 0.0, %v1181
        %v1183 = vpop.f32.mrb[0].mxu0
        %v1184 = vpop.f32.mrb[0].mxu0
        %v1185 = vadd.f32 0.0, %v1184
        %v1186 = vpop.f32.mrb[0].mxu0
        %1187 = vmatprep.mubr.bf16.mxu0 0
        %1188 = vmatmul.mubr.bf16.gmra.mrb[0].mxu0 %v1049
        %v1189 = vpop.f32.mrb[0].mxu0
        %v1190 = vadd.f32 0.0, %v1189
        %v1191 = vpop.f32.mrb[0].mxu0
        %v1192 = vpop.f32.mrb[0].mxu0
        %v1193 = vadd.f32 0.0, %v1192
        %v1194 = vpop.f32.mrb[0].mxu0
        %1195 = vmatprep.mubr.bf16.mxu0 0
        %1196 = vmatmul.mubr.bf16.gmra.mrb[0].mxu0 %v1052
        %v1197 = vpop.f32.mrb[0].mxu0
        %v1198 = vadd.f32 0.0, %v1197
        %v1199 = vpop.f32.mrb[0].mxu0
        %v1200 = vpop.f32.mrb[0].mxu0
        %v1201 = vadd.f32 0.0, %v1200
        %v1202 = vpop.f32.mrb[0].mxu0
        %1203 = vmatprep.mubr.bf16.mxu0 0
        %1204 = vmatmul.mubr.bf16.gmra.mrb[0].mxu0 %v1055
        %v1205 = vpop.f32.mrb[0].mxu0
        %v1206 = vadd.f32 0.0, %v1205
        %v1207 = vpop.f32.mrb[0].mxu0
        %v1208 = vpop.f32.mrb[0].mxu0
        %v1209 = vadd.f32 0.0, %v1208
        %v1210 = vpop.f32.mrb[0].mxu0
        %1211 = vmatprep.mubr.bf16.mxu0 0
        %1212 = vmatmul.mubr.bf16.gmra.mrb[0].mxu0 %v1058
        %v1213 = vpop.f32.mrb[0].mxu0
        %v1214 = vadd.f32 0.0, %v1213
        %v1215 = vpop.f32.mrb[0].mxu0
        %v1216 = vpop.f32.mrb[0].mxu0
        %v1217 = vadd.f32 0.0, %v1216
        %v1218 = vpop.f32.mrb[0].mxu0
        %1219 = vmatprep.mubr.bf16.mxu0 0
        %1220 = vmatmul.mubr.bf16.gmra.mrb[0].mxu0 %v1061
        %v1221 = vpop.f32.mrb[0].mxu0
        %v1222 = vadd.f32 0.0, %v1221
        %v1223 = vpop.f32.mrb[0].mxu0
        %v1224 = vpop.f32.mrb[0].mxu0
        %v1225 = vadd.f32 0.0, %v1224
        %v1226 = vpop.f32.mrb[0].mxu0
        %1227 = vdwg.mxu0
        %v1228 = vadd.f32 %v901, %v1102
        %v1229 = vadd.f32 %v902, %v1105
        %v1230 = vadd.f32 %v903, %v1110
        %v1231 = vadd.f32 %v904, %v1113
        %v1232 = vadd.f32 %v905, %v1118
        %v1233 = vadd.f32 %v906, %v1121
        %v1234 = vadd.f32 %v907, %v1126
        %v1235 = vadd.f32 %v908, %v1129
        %v1236 = vadd.f32 %v909, %v1134
        %v1237 = vadd.f32 %v910, %v1137
        %v1238 = vadd.f32 %v911, %v1142
        %v1239 = vadd.f32 %v912, %v1145
        %v1240 = vadd.f32 %v913, %v1150
        %v1241 = vadd.f32 %v914, %v1153
        %v1242 = vadd.f32 %v915, %v1158
        %v1243 = vadd.f32 %v916, %v1161
        %v1244 = vadd.f32 %v917, %v1166
        %v1245 = vadd.f32 %v918, %v1169
        %v1246 = vadd.f32 %v919, %v1174
        %v1247 = vadd.f32 %v920, %v1177
        %v1248 = vadd.f32 %v921, %v1182
        %v1249 = vadd.f32 %v922, %v1185
        %v1250 = vadd.f32 %v923, %v1190
        %v1251 = vadd.f32 %v924, %v1193
        %v1252 = vadd.f32 %v925, %v1198
        %v1253 = vadd.f32 %v926, %v1201
        %v1254 = vadd.f32 %v927, %v1206
        %v1255 = vadd.f32 %v928, %v1209
        %v1256 = vadd.f32 %v929, %v1214
        %v1257 = vadd.f32 %v930, %v1217
        %v1258 = vadd.f32 %v931, %v1222
        %v1259 = vadd.f32 %v932, %v1225
        %1260 = vst [vmem:[#allocation3] sm:$0xff] %v1228
        %1261 = vst [vmem:[#allocation3 + $0x8] sm:$0xff] %v1229
        %1262 = vst [vmem:[#allocation3 + $0x10] sm:$0xff] %v1230
        %1263 = vst [vmem:[#allocation3 + $0x18] sm:$0xff] %v1231
        %1264 = vst [vmem:[#allocation3 + $0x20] sm:$0xff] %v1232
        %1265 = vst [vmem:[#allocation3 + $0x28] sm:$0xff] %v1233
        %1266 = vst [vmem:[#allocation3 + $0x30] sm:$0xff] %v1234
        %1267 = vst [vmem:[#allocation3 + $0x38] sm:$0xff] %v1235
        %1268 = vst [vmem:[#allocation3 + $0x40] sm:$0xff] %v1236
        %1269 = vst [vmem:[#allocation3 + $0x48] sm:$0xff] %v1237
        %1270 = vst [vmem:[#allocation3 + $0x50] sm:$0xff] %v1238
        %1271 = vst [vmem:[#allocation3 + $0x58] sm:$0xff] %v1239
        %1272 = vst [vmem:[#allocation3 + $0x60] sm:$0xff] %v1240
        %1273 = vst [vmem:[#allocation3 + $0x68] sm:$0xff] %v1241
        %1274 = vst [vmem:[#allocation3 + $0x70] sm:$0xff] %v1242
        %1275 = vst [vmem:[#allocation3 + $0x78] sm:$0xff] %v1243
        %1276 = vst [vmem:[#allocation3 + $0x80] sm:$0xff] %v1244
        %1277 = vst [vmem:[#allocation3 + $0x88] sm:$0xff] %v1245
        %1278 = vst [vmem:[#allocation3 + $0x90] sm:$0xff] %v1246
        %1279 = vst [vmem:[#allocation3 + $0x98] sm:$0xff] %v1247
        %1280 = vst [vmem:[#allocation3 + $0xa0] sm:$0xff] %v1248
        %1281 = vst [vmem:[#allocation3 + $0xa8] sm:$0xff] %v1249
        %1282 = vst [vmem:[#allocation3 + $0xb0] sm:$0xff] %v1250
        %1283 = vst [vmem:[#allocation3 + $0xb8] sm:$0xff] %v1251
        %1284 = vst [vmem:[#allocation3 + $0xc0] sm:$0xff] %v1252
        %1285 = vst [vmem:[#allocation3 + $0xc8] sm:$0xff] %v1253
        %1286 = vst [vmem:[#allocation3 + $0xd0] sm:$0xff] %v1254
        %1287 = vst [vmem:[#allocation3 + $0xd8] sm:$0xff] %v1255
        %1288 = vst [vmem:[#allocation3 + $0xe0] sm:$0xff] %v1256
        %1289 = vst [vmem:[#allocation3 + $0xe8] sm:$0xff] %v1257
        %1290 = vst [vmem:[#allocation3 + $0xf0] sm:$0xff] %v1258
        %1291 = vst [vmem:[#allocation3 + $0xf8] sm:$0xff] %v1259
        %v1292 = vld [vmem:[#allocation2] sm:$0xf]
        %v1293 = vld [vmem:[#allocation2 + $0x4] sm:$0xf]
        %v1294 = vld [vmem:[#allocation2 + $0x8] sm:$0x1]
        %v1295 = vld [vmem:[#allocation2 + $0xc] sm:$0xf]
        %v1296 = vld [vmem:[#allocation2 + $0x10] sm:$0xf]
        %v1297 = vld [vmem:[#allocation2 + $0x14] sm:$0x1]
        %v1298 = vld [vmem:[#allocation2 + $0x18] sm:$0xf]
        %v1299 = vld [vmem:[#allocation2 + $0x1c] sm:$0xf]
        %v1300 = vld [vmem:[#allocation2 + $0x20] sm:$0x1]
        %v1301 = vld [vmem:[#allocation2 + $0x24] sm:$0xf]
        %v1302 = vld [vmem:[#allocation2 + $0x28] sm:$0xf]
        %v1303 = vld [vmem:[#allocation2 + $0x2c] sm:$0x1]
        %v1304 = vld [vmem:[#allocation2 + $0x30] sm:$0xf]
        %v1305 = vld [vmem:[#allocation2 + $0x34] sm:$0xf]
        %v1306 = vld [vmem:[#allocation2 + $0x38] sm:$0x1]
        %v1307 = vld [vmem:[#allocation2 + $0x3c] sm:$0xf]
        %v1308 = vld [vmem:[#allocation2 + $0x40] sm:$0xf]
        %v1309 = vld [vmem:[#allocation2 + $0x44] sm:$0x1]
        %v1310 = vld [vmem:[#allocation2 + $0x48] sm:$0xf]
        %v1311 = vld [vmem:[#allocation2 + $0x4c] sm:$0xf]
        %v1312 = vld [vmem:[#allocation2 + $0x50] sm:$0x1]
        %v1313 = vld [vmem:[#allocation2 + $0x54] sm:$0xf]
        %v1314 = vld [vmem:[#allocation2 + $0x58] sm:$0xf]
        %v1315 = vld [vmem:[#allocation2 + $0x5c] sm:$0x1]
        %v1316 = vld [vmem:[#allocation2 + $0x60] sm:$0xf]
        %v1317 = vld [vmem:[#allocation2 + $0x64] sm:$0xf]
        %v1318 = vld [vmem:[#allocation2 + $0x68] sm:$0x1]
        %v1319 = vld [vmem:[#allocation2 + $0x6c] sm:$0xf]
        %v1320 = vld [vmem:[#allocation2 + $0x70] sm:$0xf]
        %v1321 = vld [vmem:[#allocation2 + $0x74] sm:$0x1]
        %v1322 = vld [vmem:[#allocation2 + $0x78] sm:$0xf]
        %v1323 = vld [vmem:[#allocation2 + $0x7c] sm:$0xf]
        %v1324 = vld [vmem:[#allocation2 + $0x80] sm:$0x1]
        %v1325 = vld [vmem:[#allocation2 + $0x84] sm:$0xf]
        %v1326 = vld [vmem:[#allocation2 + $0x88] sm:$0xf]
        %v1327 = vld [vmem:[#allocation2 + $0x8c] sm:$0x1]
        %v1328 = vld [vmem:[#allocation2 + $0x90] sm:$0xf]
        %v1329 = vld [vmem:[#allocation2 + $0x94] sm:$0xf]
        %v1330 = vld [vmem:[#allocation2 + $0x98] sm:$0x1]
        %v1331 = vld [vmem:[#allocation2 + $0x9c] sm:$0xf]
        %v1332 = vld [vmem:[#allocation2 + $0xa0] sm:$0xf]
        %v1333 = vld [vmem:[#allocation2 + $0xa4] sm:$0x1]
        %v1334 = vld [vmem:[#allocation2 + $0xa8] sm:$0xf]
        %v1335 = vld [vmem:[#allocation2 + $0xac] sm:$0xf]
        %v1336 = vld [vmem:[#allocation2 + $0xb0] sm:$0x1]
        %v1337 = vld [vmem:[#allocation2 + $0xb4] sm:$0xf]
        %v1338 = vld [vmem:[#allocation2 + $0xb8] sm:$0xf]
        %v1339 = vld [vmem:[#allocation2 + $0xbc] sm:$0x1]
        %v1340 = vld [vmem:[#allocation3] sm:$0xff]
        %v1341 = vld [vmem:[#allocation3 + $0x8] sm:$0xff]
        %v1342 = vld [vmem:[#allocation3 + $0x10] sm:$0xff]
        %v1343 = vld [vmem:[#allocation3 + $0x18] sm:$0xff]
        %v1344 = vld [vmem:[#allocation3 + $0x20] sm:$0xff]
        %v1345 = vld [vmem:[#allocation3 + $0x28] sm:$0xff]
        %v1346 = vld [vmem:[#allocation3 + $0x30] sm:$0xff]
        %v1347 = vld [vmem:[#allocation3 + $0x38] sm:$0xff]
        %v1348 = vld [vmem:[#allocation3 + $0x40] sm:$0xff]
        %v1349 = vld [vmem:[#allocation3 + $0x48] sm:$0xff]
        %v1350 = vld [vmem:[#allocation3 + $0x50] sm:$0xff]
        %v1351 = vld [vmem:[#allocation3 + $0x58] sm:$0xff]
        %v1352 = vld [vmem:[#allocation3 + $0x60] sm:$0xff]
        %v1353 = vld [vmem:[#allocation3 + $0x68] sm:$0xff]
        %v1354 = vld [vmem:[#allocation3 + $0x70] sm:$0xff]
        %v1355 = vld [vmem:[#allocation3 + $0x78] sm:$0xff]
        %v1356 = vld [vmem:[#allocation3 + $0x80] sm:$0xff]
        %v1357 = vld [vmem:[#allocation3 + $0x88] sm:$0xff]
        %v1358 = vld [vmem:[#allocation3 + $0x90] sm:$0xff]
        %v1359 = vld [vmem:[#allocation3 + $0x98] sm:$0xff]
        %v1360 = vld [vmem:[#allocation3 + $0xa0] sm:$0xff]
        %v1361 = vld [vmem:[#allocation3 + $0xa8] sm:$0xff]
        %v1362 = vld [vmem:[#allocation3 + $0xb0] sm:$0xff]
        %v1363 = vld [vmem:[#allocation3 + $0xb8] sm:$0xff]
        %v1364 = vld [vmem:[#allocation3 + $0xc0] sm:$0xff]
        %v1365 = vld [vmem:[#allocation3 + $0xc8] sm:$0xff]
        %v1366 = vld [vmem:[#allocation3 + $0xd0] sm:$0xff]
        %v1367 = vld [vmem:[#allocation3 + $0xd8] sm:$0xff]
        %v1368 = vld [vmem:[#allocation3 + $0xe0] sm:$0xff]
        %v1369 = vld [vmem:[#allocation3 + $0xe8] sm:$0xff]
        %v1370 = vld [vmem:[#allocation3 + $0xf0] sm:$0xff]
        %v1371 = vld [vmem:[#allocation3 + $0xf8] sm:$0xff]
        %s1372 = scalar_lea.vmem %s302, 4
        %v1373 = vld [vmem:[%s1372] sm:$0xf]
        %vm1374 = vsmask.f32 3328
        %vm1375 = vsmask.f32 7440
        %vm1376 = vmor %vm1374, %vm1375
        %v1378 = vshrl.u32 %v1292, 16
        %v1380 = vrot.slane %v1378, 4
        %v1381 = vshll.u32 %v1292, 16
        %v1383 = vrot.slane %v1381, 5
        %v1384 = vor.u32 %v1380, %v1383
        %v1385 = vrot.slane %v1384, 4
        %v1387 = vshll.u32 %v1293, 16
        %v1389 = vrot.slane %v1387, 5
        %v1390 = vsel %vm1376, %v1385, %v1389
        %v1391 = vshrl.u32 %v1293, 16
        %v1393 = vrot.slane %v1391, 4
        %v1394 = vor.u32 %v1393, %v1389
        %v1395 = vrot.slane %v1394, 4
        %v1397 = vshll.u32 %v1294, 16
        %v1399 = vrot.slane %v1397, 5
        %v1400 = vsel %vm1376, %v1395, %v1399
        %v1402 = vshrl.u32 %v1295, 16
        %v1404 = vrot.slane %v1402, 4
        %v1405 = vshll.u32 %v1295, 16
        %v1407 = vrot.slane %v1405, 5
        %v1408 = vor.u32 %v1404, %v1407
        %v1409 = vrot.slane %v1408, 4
        %v1411 = vshll.u32 %v1296, 16
        %v1413 = vrot.slane %v1411, 5
        %v1414 = vsel %vm1376, %v1409, %v1413
        %v1415 = vshrl.u32 %v1296, 16
        %v1417 = vrot.slane %v1415, 4
        %v1418 = vor.u32 %v1417, %v1413
        %v1419 = vrot.slane %v1418, 4
        %v1421 = vshll.u32 %v1297, 16
        %v1423 = vrot.slane %v1421, 5
        %v1424 = vsel %vm1376, %v1419, %v1423
        %v1426 = vshrl.u32 %v1298, 16
        %v1428 = vrot.slane %v1426, 4
        %v1429 = vshll.u32 %v1298, 16
        %v1431 = vrot.slane %v1429, 5
        %v1432 = vor.u32 %v1428, %v1431
        %v1433 = vrot.slane %v1432, 4
        %v1435 = vshll.u32 %v1299, 16
        %v1437 = vrot.slane %v1435, 5
        %v1438 = vsel %vm1376, %v1433, %v1437
        %v1439 = vshrl.u32 %v1299, 16
        %v1441 = vrot.slane %v1439, 4
        %v1442 = vor.u32 %v1441, %v1437
        %v1443 = vrot.slane %v1442, 4
        %v1445 = vshll.u32 %v1300, 16
        %v1447 = vrot.slane %v1445, 5
        %v1448 = vsel %vm1376, %v1443, %v1447
        %v1450 = vshrl.u32 %v1301, 16
        %v1452 = vrot.slane %v1450, 4
        %v1453 = vshll.u32 %v1301, 16
        %v1455 = vrot.slane %v1453, 5
        %v1456 = vor.u32 %v1452, %v1455
        %v1457 = vrot.slane %v1456, 4
        %v1459 = vshll.u32 %v1302, 16
        %v1461 = vrot.slane %v1459, 5
        %v1462 = vsel %vm1376, %v1457, %v1461
        %v1463 = vshrl.u32 %v1302, 16
        %v1465 = vrot.slane %v1463, 4
        %v1466 = vor.u32 %v1465, %v1461
        %v1467 = vrot.slane %v1466, 4
        %v1469 = vshll.u32 %v1303, 16
        %v1471 = vrot.slane %v1469, 5
        %v1472 = vsel %vm1376, %v1467, %v1471
        %v1474 = vshrl.u32 %v1304, 16
        %v1476 = vrot.slane %v1474, 4
        %v1477 = vshll.u32 %v1304, 16
        %v1479 = vrot.slane %v1477, 5
        %v1480 = vor.u32 %v1476, %v1479
        %v1481 = vrot.slane %v1480, 4
        %v1483 = vshll.u32 %v1305, 16
        %v1485 = vrot.slane %v1483, 5
        %v1486 = vsel %vm1376, %v1481, %v1485
        %v1487 = vshrl.u32 %v1305, 16
        %v1489 = vrot.slane %v1487, 4
        %v1490 = vor.u32 %v1489, %v1485
        %v1491 = vrot.slane %v1490, 4
        %v1493 = vshll.u32 %v1306, 16
        %v1495 = vrot.slane %v1493, 5
        %v1496 = vsel %vm1376, %v1491, %v1495
        %v1498 = vshrl.u32 %v1307, 16
        %v1500 = vrot.slane %v1498, 4
        %v1501 = vshll.u32 %v1307, 16
        %v1503 = vrot.slane %v1501, 5
        %v1504 = vor.u32 %v1500, %v1503
        %v1505 = vrot.slane %v1504, 4
        %v1507 = vshll.u32 %v1308, 16
        %v1509 = vrot.slane %v1507, 5
        %v1510 = vsel %vm1376, %v1505, %v1509
        %v1511 = vshrl.u32 %v1308, 16
        %v1513 = vrot.slane %v1511, 4
        %v1514 = vor.u32 %v1513, %v1509
        %v1515 = vrot.slane %v1514, 4
        %v1517 = vshll.u32 %v1309, 16
        %v1519 = vrot.slane %v1517, 5
        %v1520 = vsel %vm1376, %v1515, %v1519
        %v1522 = vshrl.u32 %v1310, 16
        %v1524 = vrot.slane %v1522, 4
        %v1525 = vshll.u32 %v1310, 16
        %v1527 = vrot.slane %v1525, 5
        %v1528 = vor.u32 %v1524, %v1527
        %v1529 = vrot.slane %v1528, 4
        %v1531 = vshll.u32 %v1311, 16
        %v1533 = vrot.slane %v1531, 5
        %v1534 = vsel %vm1376, %v1529, %v1533
        %v1535 = vshrl.u32 %v1311, 16
        %v1537 = vrot.slane %v1535, 4
        %v1538 = vor.u32 %v1537, %v1533
        %v1539 = vrot.slane %v1538, 4
        %v1541 = vshll.u32 %v1312, 16
        %v1543 = vrot.slane %v1541, 5
        %v1544 = vsel %vm1376, %v1539, %v1543
        %v1546 = vshrl.u32 %v1313, 16
        %v1548 = vrot.slane %v1546, 4
        %v1549 = vshll.u32 %v1313, 16
        %v1551 = vrot.slane %v1549, 5
        %v1552 = vor.u32 %v1548, %v1551
        %v1553 = vrot.slane %v1552, 4
        %v1555 = vshll.u32 %v1314, 16
        %v1557 = vrot.slane %v1555, 5
        %v1558 = vsel %vm1376, %v1553, %v1557
        %v1559 = vshrl.u32 %v1314, 16
        %v1561 = vrot.slane %v1559, 4
        %v1562 = vor.u32 %v1561, %v1557
        %v1563 = vrot.slane %v1562, 4
        %v1565 = vshll.u32 %v1315, 16
        %v1567 = vrot.slane %v1565, 5
        %v1568 = vsel %vm1376, %v1563, %v1567
        %v1570 = vshrl.u32 %v1316, 16
        %v1572 = vrot.slane %v1570, 4
        %v1573 = vshll.u32 %v1316, 16
        %v1575 = vrot.slane %v1573, 5
        %v1576 = vor.u32 %v1572, %v1575
        %v1577 = vrot.slane %v1576, 4
        %v1579 = vshll.u32 %v1317, 16
        %v1581 = vrot.slane %v1579, 5
        %v1582 = vsel %vm1376, %v1577, %v1581
        %v1583 = vshrl.u32 %v1317, 16
        %v1585 = vrot.slane %v1583, 4
        %v1586 = vor.u32 %v1585, %v1581
        %v1587 = vrot.slane %v1586, 4
        %v1589 = vshll.u32 %v1318, 16
        %v1591 = vrot.slane %v1589, 5
        %v1592 = vsel %vm1376, %v1587, %v1591
        %v1594 = vshrl.u32 %v1319, 16
        %v1596 = vrot.slane %v1594, 4
        %v1597 = vshll.u32 %v1319, 16
        %v1599 = vrot.slane %v1597, 5
        %v1600 = vor.u32 %v1596, %v1599
        %v1601 = vrot.slane %v1600, 4
        %v1603 = vshll.u32 %v1320, 16
        %v1605 = vrot.slane %v1603, 5
        %v1606 = vsel %vm1376, %v1601, %v1605
        %v1607 = vshrl.u32 %v1320, 16
        %v1609 = vrot.slane %v1607, 4
        %v1610 = vor.u32 %v1609, %v1605
        %v1611 = vrot.slane %v1610, 4
        %v1613 = vshll.u32 %v1321, 16
        %v1615 = vrot.slane %v1613, 5
        %v1616 = vsel %vm1376, %v1611, %v1615
        %v1618 = vshrl.u32 %v1322, 16
        %v1620 = vrot.slane %v1618, 4
        %v1621 = vshll.u32 %v1322, 16
        %v1623 = vrot.slane %v1621, 5
        %v1624 = vor.u32 %v1620, %v1623
        %v1625 = vrot.slane %v1624, 4
        %v1627 = vshll.u32 %v1323, 16
        %v1629 = vrot.slane %v1627, 5
        %v1630 = vsel %vm1376, %v1625, %v1629
        %v1631 = vshrl.u32 %v1323, 16
        %v1633 = vrot.slane %v1631, 4
        %v1634 = vor.u32 %v1633, %v1629
        %v1635 = vrot.slane %v1634, 4
        %v1637 = vshll.u32 %v1324, 16
        %v1639 = vrot.slane %v1637, 5
        %v1640 = vsel %vm1376, %v1635, %v1639
        %v1642 = vshrl.u32 %v1325, 16
        %v1644 = vrot.slane %v1642, 4
        %v1645 = vshll.u32 %v1325, 16
        %v1647 = vrot.slane %v1645, 5
        %v1648 = vor.u32 %v1644, %v1647
        %v1649 = vrot.slane %v1648, 4
        %v1651 = vshll.u32 %v1326, 16
        %v1653 = vrot.slane %v1651, 5
        %v1654 = vsel %vm1376, %v1649, %v1653
        %v1655 = vshrl.u32 %v1326, 16
        %v1657 = vrot.slane %v1655, 4
        %v1658 = vor.u32 %v1657, %v1653
        %v1659 = vrot.slane %v1658, 4
        %v1661 = vshll.u32 %v1327, 16
        %v1663 = vrot.slane %v1661, 5
        %v1664 = vsel %vm1376, %v1659, %v1663
        %v1666 = vshrl.u32 %v1328, 16
        %v1668 = vrot.slane %v1666, 4
        %v1669 = vshll.u32 %v1328, 16
        %v1671 = vrot.slane %v1669, 5
        %v1672 = vor.u32 %v1668, %v1671
        %v1673 = vrot.slane %v1672, 4
        %v1675 = vshll.u32 %v1329, 16
        %v1677 = vrot.slane %v1675, 5
        %v1678 = vsel %vm1376, %v1673, %v1677
        %v1679 = vshrl.u32 %v1329, 16
        %v1681 = vrot.slane %v1679, 4
        %v1682 = vor.u32 %v1681, %v1677
        %v1683 = vrot.slane %v1682, 4
        %v1685 = vshll.u32 %v1330, 16
        %v1687 = vrot.slane %v1685, 5
        %v1688 = vsel %vm1376, %v1683, %v1687
        %v1690 = vshrl.u32 %v1331, 16
        %v1692 = vrot.slane %v1690, 4
        %v1693 = vshll.u32 %v1331, 16
        %v1695 = vrot.slane %v1693, 5
        %v1696 = vor.u32 %v1692, %v1695
        %v1697 = vrot.slane %v1696, 4
        %v1699 = vshll.u32 %v1332, 16
        %v1701 = vrot.slane %v1699, 5
        %v1702 = vsel %vm1376, %v1697, %v1701
        %v1703 = vshrl.u32 %v1332, 16
        %v1705 = vrot.slane %v1703, 4
        %v1706 = vor.u32 %v1705, %v1701
        %v1707 = vrot.slane %v1706, 4
        %v1709 = vshll.u32 %v1333, 16
        %v1711 = vrot.slane %v1709, 5
        %v1712 = vsel %vm1376, %v1707, %v1711
        %v1714 = vshrl.u32 %v1334, 16
        %v1716 = vrot.slane %v1714, 4
        %v1717 = vshll.u32 %v1334, 16
        %v1719 = vrot.slane %v1717, 5
        %v1720 = vor.u32 %v1716, %v1719
        %v1721 = vrot.slane %v1720, 4
        %v1723 = vshll.u32 %v1335, 16
        %v1725 = vrot.slane %v1723, 5
        %v1726 = vsel %vm1376, %v1721, %v1725
        %v1727 = vshrl.u32 %v1335, 16
        %v1729 = vrot.slane %v1727, 4
        %v1730 = vor.u32 %v1729, %v1725
        %v1731 = vrot.slane %v1730, 4
        %v1733 = vshll.u32 %v1336, 16
        %v1735 = vrot.slane %v1733, 5
        %v1736 = vsel %vm1376, %v1731, %v1735
        %v1738 = vshrl.u32 %v1337, 16
        %v1740 = vrot.slane %v1738, 4
        %v1741 = vshll.u32 %v1337, 16
        %v1743 = vrot.slane %v1741, 5
        %v1744 = vor.u32 %v1740, %v1743
        %v1745 = vrot.slane %v1744, 4
        %v1747 = vshll.u32 %v1338, 16
        %v1749 = vrot.slane %v1747, 5
        %v1750 = vsel %vm1376, %v1745, %v1749
        %v1751 = vshrl.u32 %v1338, 16
        %v1753 = vrot.slane %v1751, 4
        %v1754 = vor.u32 %v1753, %v1749
        %v1755 = vrot.slane %v1754, 4
        %v1757 = vshll.u32 %v1339, 16
        %v1759 = vrot.slane %v1757, 5
        %v1760 = vsel %vm1376, %v1755, %v1759
        %v1761 = vunpack.c.l.b16 %v1390
        %v1762 = vunpack.c.l.b16 %v1400
        %v1763 = vunpack.c.l.b16 %v1414
        %v1764 = vunpack.c.l.b16 %v1424
        %v1765 = vunpack.c.l.b16 %v1438
        %v1766 = vunpack.c.l.b16 %v1448
        %v1767 = vunpack.c.l.b16 %v1462
        %v1768 = vunpack.c.l.b16 %v1472
        %v1769 = vunpack.c.l.b16 %v1486
        %v1770 = vunpack.c.l.b16 %v1496
        %v1771 = vunpack.c.l.b16 %v1510
        %v1772 = vunpack.c.l.b16 %v1520
        %v1773 = vunpack.c.l.b16 %v1534
        %v1774 = vunpack.c.l.b16 %v1544
        %v1775 = vunpack.c.l.b16 %v1558
        %v1776 = vunpack.c.l.b16 %v1568
        %v1777 = vunpack.c.l.b16 %v1582
        %v1778 = vunpack.c.l.b16 %v1592
        %v1779 = vunpack.c.l.b16 %v1606
        %v1780 = vunpack.c.l.b16 %v1616
        %v1781 = vunpack.c.l.b16 %v1630
        %v1782 = vunpack.c.l.b16 %v1640
        %v1783 = vunpack.c.l.b16 %v1654
        %v1784 = vunpack.c.l.b16 %v1664
        %v1785 = vunpack.c.l.b16 %v1678
        %v1786 = vunpack.c.l.b16 %v1688
        %v1787 = vunpack.c.l.b16 %v1702
        %v1788 = vunpack.c.l.b16 %v1712
        %v1789 = vunpack.c.l.b16 %v1726
        %v1790 = vunpack.c.l.b16 %v1736
        %v1791 = vunpack.c.l.b16 %v1750
        %v1792 = vunpack.c.l.b16 %v1760
        %v1793 = vpack.c.b16 %v1762, %v1761
        %v1794 = vpack.c.b16 %v1764, %v1763
        %v1795 = vpack.c.b16 %v1766, %v1765
        %v1796 = vpack.c.b16 %v1768, %v1767
        %v1797 = vpack.c.b16 %v1770, %v1769
        %v1798 = vpack.c.b16 %v1772, %v1771
        %v1799 = vpack.c.b16 %v1774, %v1773
        %v1800 = vpack.c.b16 %v1776, %v1775
        %v1801 = vpack.c.b16 %v1778, %v1777
        %v1802 = vpack.c.b16 %v1780, %v1779
        %v1803 = vpack.c.b16 %v1782, %v1781
        %v1804 = vpack.c.b16 %v1784, %v1783
        %v1805 = vpack.c.b16 %v1786, %v1785
        %v1806 = vpack.c.b16 %v1788, %v1787
        %v1807 = vpack.c.b16 %v1790, %v1789
        %v1808 = vpack.c.b16 %v1792, %v1791
        %v1810 = vsel %vm1014, %v1793, 0
        %v1813 = vsel %vm1014, %v1794, 0
        %v1816 = vsel %vm1014, %v1795, 0
        %v1819 = vsel %vm1014, %v1796, 0
        %v1822 = vsel %vm1014, %v1797, 0
        %v1825 = vsel %vm1014, %v1798, 0
        %v1828 = vsel %vm1014, %v1799, 0
        %v1831 = vsel %vm1014, %v1800, 0
        %v1834 = vsel %vm1014, %v1801, 0
        %v1837 = vsel %vm1014, %v1802, 0
        %v1840 = vsel %vm1014, %v1803, 0
        %v1843 = vsel %vm1014, %v1804, 0
        %v1846 = vsel %vm1014, %v1805, 0
        %v1849 = vsel %vm1014, %v1806, 0
        %v1852 = vsel %vm1014, %v1807, 0
        %v1855 = vsel %vm1014, %v1808, 0
        %v1858 = vsel %vm1063, %v1373, 0
        %1860 = vmatprep.subr.bf16.mxu0 0
        %1861 = vmatpush1.bf16.msra.mxu0 %v1858
        %1862 = vmatprep.subr.bf16.mxu0 0
        %1863 = vmatpush1.bf16.msra.mxu0 0
        %1864 = vmatprep.subr.bf16.mxu0 0
        %1865 = vmatpush1.bf16.msra.mxu0 0
        %1866 = vmatprep.subr.bf16.mxu0 0
        %1867 = vmatpush1.bf16.msra.mxu0 0
        %1868 = vmatprep.subr.bf16.mxu0 0
        %1869 = vmatpush1.bf16.msra.mxu0 0
        %1870 = vmatprep.subr.bf16.mxu0 0
        %1871 = vmatpush1.bf16.msra.mxu0 0
        %1872 = vmatprep.subr.bf16.mxu0 0
        %1873 = vmatpush1.bf16.msra.mxu0 0
        %1874 = vmatprep.subr.bf16.mxu0 0
        %1875 = vmatpush1.bf16.msra.mxu0 0
        %1876 = vmatprep.subr.bf16.mxu0 0
        %1877 = vmatpush1.bf16.msra.mxu0 0
        %1878 = vmatprep.subr.bf16.mxu0 0
        %1879 = vmatpush1.bf16.msra.mxu0 0
        %1880 = vmatprep.subr.bf16.mxu0 0
        %1881 = vmatpush1.bf16.msra.mxu0 0
        %1882 = vmatprep.subr.bf16.mxu0 0
        %1883 = vmatpush1.bf16.msra.mxu0 0
        %1884 = vmatprep.subr.bf16.mxu0 0
        %1885 = vmatpush1.bf16.msra.mxu0 0
        %1886 = vmatprep.subr.bf16.mxu0 0
        %1887 = vmatpush1.bf16.msra.mxu0 0
        %1888 = vmatprep.subr.bf16.mxu0 0
        %1889 = vmatpush1.bf16.msra.mxu0 0
        %1890 = vmatprep.subr.bf16.mxu0 0
        %1891 = vmatpush1.bf16.msra.mxu0 0
        %1892 = vmatprep.mubr.bf16.mxu0 0
        %1893 = vmatmul.mubr.bf16.gmra.mrb[0].mxu0 %v1810
        %v1894 = vpop.f32.mrb[0].mxu0
        %v1895 = vadd.f32 0.0, %v1894
        %v1896 = vpop.f32.mrb[0].mxu0
        %v1897 = vpop.f32.mrb[0].mxu0
        %v1898 = vadd.f32 0.0, %v1897
        %v1899 = vpop.f32.mrb[0].mxu0
        %1900 = vmatprep.mubr.bf16.mxu0 0
        %1901 = vmatmul.mubr.bf16.gmra.mrb[0].mxu0 %v1813
        %v1902 = vpop.f32.mrb[0].mxu0
        %v1903 = vadd.f32 0.0, %v1902
        %v1904 = vpop.f32.mrb[0].mxu0
        %v1905 = vpop.f32.mrb[0].mxu0
        %v1906 = vadd.f32 0.0, %v1905
        %v1907 = vpop.f32.mrb[0].mxu0
        %1908 = vmatprep.mubr.bf16.mxu0 0
        %1909 = vmatmul.mubr.bf16.gmra.mrb[0].mxu0 %v1816
        %v1910 = vpop.f32.mrb[0].mxu0
        %v1911 = vadd.f32 0.0, %v1910
        %v1912 = vpop.f32.mrb[0].mxu0
        %v1913 = vpop.f32.mrb[0].mxu0
        %v1914 = vadd.f32 0.0, %v1913
        %v1915 = vpop.f32.mrb[0].mxu0
        %1916 = vmatprep.mubr.bf16.mxu0 0
        %1917 = vmatmul.mubr.bf16.gmra.mrb[0].mxu0 %v1819
        %v1918 = vpop.f32.mrb[0].mxu0
        %v1919 = vadd.f32 0.0, %v1918
        %v1920 = vpop.f32.mrb[0].mxu0
        %v1921 = vpop.f32.mrb[0].mxu0
        %v1922 = vadd.f32 0.0, %v1921
        %v1923 = vpop.f32.mrb[0].mxu0
        %1924 = vmatprep.mubr.bf16.mxu0 0
        %1925 = vmatmul.mubr.bf16.gmra.mrb[0].mxu0 %v1822
        %v1926 = vpop.f32.mrb[0].mxu0
        %v1927 = vadd.f32 0.0, %v1926
        %v1928 = vpop.f32.mrb[0].mxu0
        %v1929 = vpop.f32.mrb[0].mxu0
        %v1930 = vadd.f32 0.0, %v1929
        %v1931 = vpop.f32.mrb[0].mxu0
        %1932 = vmatprep.mubr.bf16.mxu0 0
        %1933 = vmatmul.mubr.bf16.gmra.mrb[0].mxu0 %v1825
        %v1934 = vpop.f32.mrb[0].mxu0
        %v1935 = vadd.f32 0.0, %v1934
        %v1936 = vpop.f32.mrb[0].mxu0
        %v1937 = vpop.f32.mrb[0].mxu0
        %v1938 = vadd.f32 0.0, %v1937
        %v1939 = vpop.f32.mrb[0].mxu0
        %1940 = vmatprep.mubr.bf16.mxu0 0
        %1941 = vmatmul.mubr.bf16.gmra.mrb[0].mxu0 %v1828
        %v1942 = vpop.f32.mrb[0].mxu0
        %v1943 = vadd.f32 0.0, %v1942
        %v1944 = vpop.f32.mrb[0].mxu0
        %v1945 = vpop.f32.mrb[0].mxu0
        %v1946 = vadd.f32 0.0, %v1945
        %v1947 = vpop.f32.mrb[0].mxu0
        %1948 = vmatprep.mubr.bf16.mxu0 0
        %1949 = vmatmul.mubr.bf16.gmra.mrb[0].mxu0 %v1831
        %v1950 = vpop.f32.mrb[0].mxu0
        %v1951 = vadd.f32 0.0, %v1950
        %v1952 = vpop.f32.mrb[0].mxu0
        %v1953 = vpop.f32.mrb[0].mxu0
        %v1954 = vadd.f32 0.0, %v1953
        %v1955 = vpop.f32.mrb[0].mxu0
        %1956 = vmatprep.mubr.bf16.mxu0 0
        %1957 = vmatmul.mubr.bf16.gmra.mrb[0].mxu0 %v1834
        %v1958 = vpop.f32.mrb[0].mxu0
        %v1959 = vadd.f32 0.0, %v1958
        %v1960 = vpop.f32.mrb[0].mxu0
        %v1961 = vpop.f32.mrb[0].mxu0
        %v1962 = vadd.f32 0.0, %v1961
        %v1963 = vpop.f32.mrb[0].mxu0
        %1964 = vmatprep.mubr.bf16.mxu0 0
        %1965 = vmatmul.mubr.bf16.gmra.mrb[0].mxu0 %v1837
        %v1966 = vpop.f32.mrb[0].mxu0
        %v1967 = vadd.f32 0.0, %v1966
        %v1968 = vpop.f32.mrb[0].mxu0
        %v1969 = vpop.f32.mrb[0].mxu0
        %v1970 = vadd.f32 0.0, %v1969
        %v1971 = vpop.f32.mrb[0].mxu0
        %1972 = vmatprep.mubr.bf16.mxu0 0
        %1973 = vmatmul.mubr.bf16.gmra.mrb[0].mxu0 %v1840
        %v1974 = vpop.f32.mrb[0].mxu0
        %v1975 = vadd.f32 0.0, %v1974
        %v1976 = vpop.f32.mrb[0].mxu0
        %v1977 = vpop.f32.mrb[0].mxu0
        %v1978 = vadd.f32 0.0, %v1977
        %v1979 = vpop.f32.mrb[0].mxu0
        %1980 = vmatprep.mubr.bf16.mxu0 0
        %1981 = vmatmul.mubr.bf16.gmra.mrb[0].mxu0 %v1843
        %v1982 = vpop.f32.mrb[0].mxu0
        %v1983 = vadd.f32 0.0, %v1982
        %v1984 = vpop.f32.mrb[0].mxu0
        %v1985 = vpop.f32.mrb[0].mxu0
        %v1986 = vadd.f32 0.0, %v1985
        %v1987 = vpop.f32.mrb[0].mxu0
        %1988 = vmatprep.mubr.bf16.mxu0 0
        %1989 = vmatmul.mubr.bf16.gmra.mrb[0].mxu0 %v1846
        %v1990 = vpop.f32.mrb[0].mxu0
        %v1991 = vadd.f32 0.0, %v1990
        %v1992 = vpop.f32.mrb[0].mxu0
        %v1993 = vpop.f32.mrb[0].mxu0
        %v1994 = vadd.f32 0.0, %v1993
        %v1995 = vpop.f32.mrb[0].mxu0
        %1996 = vmatprep.mubr.bf16.mxu0 0
        %1997 = vmatmul.mubr.bf16.gmra.mrb[0].mxu0 %v1849
        %v1998 = vpop.f32.mrb[0].mxu0
        %v1999 = vadd.f32 0.0, %v1998
        %v2000 = vpop.f32.mrb[0].mxu0
        %v2001 = vpop.f32.mrb[0].mxu0
        %v2002 = vadd.f32 0.0, %v2001
        %v2003 = vpop.f32.mrb[0].mxu0
        %2004 = vmatprep.mubr.bf16.mxu0 0
        %2005 = vmatmul.mubr.bf16.gmra.mrb[0].mxu0 %v1852
        %v2006 = vpop.f32.mrb[0].mxu0
        %v2007 = vadd.f32 0.0, %v2006
        %v2008 = vpop.f32.mrb[0].mxu0
        %v2009 = vpop.f32.mrb[0].mxu0
        %v2010 = vadd.f32 0.0, %v2009
        %v2011 = vpop.f32.mrb[0].mxu0
        %2012 = vmatprep.mubr.bf16.mxu0 0
        %2013 = vmatmul.mubr.bf16.gmra.mrb[0].mxu0 %v1855
        %v2014 = vpop.f32.mrb[0].mxu0
        %v2015 = vadd.f32 0.0, %v2014
        %v2016 = vpop.f32.mrb[0].mxu0
        %v2017 = vpop.f32.mrb[0].mxu0
        %v2018 = vadd.f32 0.0, %v2017
        %v2019 = vpop.f32.mrb[0].mxu0
        %2020 = vdwg.mxu0
        %v2021 = vadd.f32 %v1340, %v1895
        %v2022 = vadd.f32 %v1341, %v1898
        %v2023 = vadd.f32 %v1342, %v1903
        %v2024 = vadd.f32 %v1343, %v1906
        %v2025 = vadd.f32 %v1344, %v1911
        %v2026 = vadd.f32 %v1345, %v1914
        %v2027 = vadd.f32 %v1346, %v1919
        %v2028 = vadd.f32 %v1347, %v1922
        %v2029 = vadd.f32 %v1348, %v1927
        %v2030 = vadd.f32 %v1349, %v1930
        %v2031 = vadd.f32 %v1350, %v1935
        %v2032 = vadd.f32 %v1351, %v1938
        %v2033 = vadd.f32 %v1352, %v1943
        %v2034 = vadd.f32 %v1353, %v1946
        %v2035 = vadd.f32 %v1354, %v1951
        %v2036 = vadd.f32 %v1355, %v1954
        %v2037 = vadd.f32 %v1356, %v1959
        %v2038 = vadd.f32 %v1357, %v1962
        %v2039 = vadd.f32 %v1358, %v1967
        %v2040 = vadd.f32 %v1359, %v1970
        %v2041 = vadd.f32 %v1360, %v1975
        %v2042 = vadd.f32 %v1361, %v1978
        %v2043 = vadd.f32 %v1362, %v1983
        %v2044 = vadd.f32 %v1363, %v1986
        %v2045 = vadd.f32 %v1364, %v1991
        %v2046 = vadd.f32 %v1365, %v1994
        %v2047 = vadd.f32 %v1366, %v1999
        %v2048 = vadd.f32 %v1367, %v2002
        %v2049 = vadd.f32 %v1368, %v2007
        %v2050 = vadd.f32 %v1369, %v2010
        %v2051 = vadd.f32 %v1370, %v2015
        %v2052 = vadd.f32 %v1371, %v2018
        %2053 = vst [vmem:[#allocation3] sm:$0xff] %v2021
        %2054 = vst [vmem:[#allocation3 + $0x8] sm:$0xff] %v2022
        %2055 = vst [vmem:[#allocation3 + $0x10] sm:$0xff] %v2023
        %2056 = vst [vmem:[#allocation3 + $0x18] sm:$0xff] %v2024
        %2057 = vst [vmem:[#allocation3 + $0x20] sm:$0xff] %v2025
        %2058 = vst [vmem:[#allocation3 + $0x28] sm:$0xff] %v2026
        %2059 = vst [vmem:[#allocation3 + $0x30] sm:$0xff] %v2027
        %2060 = vst [vmem:[#allocation3 + $0x38] sm:$0xff] %v2028
        %2061 = vst [vmem:[#allocation3 + $0x40] sm:$0xff] %v2029
        %2062 = vst [vmem:[#allocation3 + $0x48] sm:$0xff] %v2030
        %2063 = vst [vmem:[#allocation3 + $0x50] sm:$0xff] %v2031
        %2064 = vst [vmem:[#allocation3 + $0x58] sm:$0xff] %v2032
        %2065 = vst [vmem:[#allocation3 + $0x60] sm:$0xff] %v2033
        %2066 = vst [vmem:[#allocation3 + $0x68] sm:$0xff] %v2034
        %2067 = vst [vmem:[#allocation3 + $0x70] sm:$0xff] %v2035
        %2068 = vst [vmem:[#allocation3 + $0x78] sm:$0xff] %v2036
        %2069 = vst [vmem:[#allocation3 + $0x80] sm:$0xff] %v2037
        %2070 = vst [vmem:[#allocation3 + $0x88] sm:$0xff] %v2038
        %2071 = vst [vmem:[#allocation3 + $0x90] sm:$0xff] %v2039
        %2072 = vst [vmem:[#allocation3 + $0x98] sm:$0xff] %v2040
        %2073 = vst [vmem:[#allocation3 + $0xa0] sm:$0xff] %v2041
        %2074 = vst [vmem:[#allocation3 + $0xa8] sm:$0xff] %v2042
        %2075 = vst [vmem:[#allocation3 + $0xb0] sm:$0xff] %v2043
        %2076 = vst [vmem:[#allocation3 + $0xb8] sm:$0xff] %v2044
        %2077 = vst [vmem:[#allocation3 + $0xc0] sm:$0xff] %v2045
        %2078 = vst [vmem:[#allocation3 + $0xc8] sm:$0xff] %v2046
        %2079 = vst [vmem:[#allocation3 + $0xd0] sm:$0xff] %v2047
        %2080 = vst [vmem:[#allocation3 + $0xd8] sm:$0xff] %v2048
        %2081 = vst [vmem:[#allocation3 + $0xe0] sm:$0xff] %v2049
        %2082 = vst [vmem:[#allocation3 + $0xe8] sm:$0xff] %v2050
        %2083 = vst [vmem:[#allocation3 + $0xf0] sm:$0xff] %v2051
        %2084 = vst [vmem:[#allocation3 + $0xf8] sm:$0xff] %v2052
        %v2085 = vld [vmem:[#allocation2] sm:$0xe]
        %v2086 = vld [vmem:[#allocation2 + $0x4] sm:$0xf]
        %v2087 = vld [vmem:[#allocation2 + $0x8] sm:$0x1]
        %v2088 = vld [vmem:[#allocation2 + $0xc] sm:$0xe]
        %v2089 = vld [vmem:[#allocation2 + $0x10] sm:$0xf]
        %v2090 = vld [vmem:[#allocation2 + $0x14] sm:$0x1]
        %v2091 = vld [vmem:[#allocation2 + $0x18] sm:$0xe]
        %v2092 = vld [vmem:[#allocation2 + $0x1c] sm:$0xf]
        %v2093 = vld [vmem:[#allocation2 + $0x20] sm:$0x1]
        %v2094 = vld [vmem:[#allocation2 + $0x24] sm:$0xe]
        %v2095 = vld [vmem:[#allocation2 + $0x28] sm:$0xf]
        %v2096 = vld [vmem:[#allocation2 + $0x2c] sm:$0x1]
        %v2097 = vld [vmem:[#allocation2 + $0x30] sm:$0xe]
        %v2098 = vld [vmem:[#allocation2 + $0x34] sm:$0xf]
        %v2099 = vld [vmem:[#allocation2 + $0x38] sm:$0x1]
        %v2100 = vld [vmem:[#allocation2 + $0x3c] sm:$0xe]
        %v2101 = vld [vmem:[#allocation2 + $0x40] sm:$0xf]
        %v2102 = vld [vmem:[#allocation2 + $0x44] sm:$0x1]
        %v2103 = vld [vmem:[#allocation2 + $0x48] sm:$0xe]
        %v2104 = vld [vmem:[#allocation2 + $0x4c] sm:$0xf]
        %v2105 = vld [vmem:[#allocation2 + $0x50] sm:$0x1]
        %v2106 = vld [vmem:[#allocation2 + $0x54] sm:$0xe]
        %v2107 = vld [vmem:[#allocation2 + $0x58] sm:$0xf]
        %v2108 = vld [vmem:[#allocation2 + $0x5c] sm:$0x1]
        %v2109 = vld [vmem:[#allocation2 + $0x60] sm:$0xe]
        %v2110 = vld [vmem:[#allocation2 + $0x64] sm:$0xf]
        %v2111 = vld [vmem:[#allocation2 + $0x68] sm:$0x1]
        %v2112 = vld [vmem:[#allocation2 + $0x6c] sm:$0xe]
        %v2113 = vld [vmem:[#allocation2 + $0x70] sm:$0xf]
        %v2114 = vld [vmem:[#allocation2 + $0x74] sm:$0x1]
        %v2115 = vld [vmem:[#allocation2 + $0x78] sm:$0xe]
        %v2116 = vld [vmem:[#allocation2 + $0x7c] sm:$0xf]
        %v2117 = vld [vmem:[#allocation2 + $0x80] sm:$0x1]
        %v2118 = vld [vmem:[#allocation2 + $0x84] sm:$0xe]
        %v2119 = vld [vmem:[#allocation2 + $0x88] sm:$0xf]
        %v2120 = vld [vmem:[#allocation2 + $0x8c] sm:$0x1]
        %v2121 = vld [vmem:[#allocation2 + $0x90] sm:$0xe]
        %v2122 = vld [vmem:[#allocation2 + $0x94] sm:$0xf]
        %v2123 = vld [vmem:[#allocation2 + $0x98] sm:$0x1]
        %v2124 = vld [vmem:[#allocation2 + $0x9c] sm:$0xe]
        %v2125 = vld [vmem:[#allocation2 + $0xa0] sm:$0xf]
        %v2126 = vld [vmem:[#allocation2 + $0xa4] sm:$0x1]
        %v2127 = vld [vmem:[#allocation2 + $0xa8] sm:$0xe]
        %v2128 = vld [vmem:[#allocation2 + $0xac] sm:$0xf]
        %v2129 = vld [vmem:[#allocation2 + $0xb0] sm:$0x1]
        %v2130 = vld [vmem:[#allocation2 + $0xb4] sm:$0xe]
        %v2131 = vld [vmem:[#allocation2 + $0xb8] sm:$0xf]
        %v2132 = vld [vmem:[#allocation2 + $0xbc] sm:$0x1]
        %v2133 = vld [vmem:[#allocation3] sm:$0xff]
        %v2134 = vld [vmem:[#allocation3 + $0x8] sm:$0xff]
        %v2135 = vld [vmem:[#allocation3 + $0x10] sm:$0xff]
        %v2136 = vld [vmem:[#allocation3 + $0x18] sm:$0xff]
        %v2137 = vld [vmem:[#allocation3 + $0x20] sm:$0xff]
        %v2138 = vld [vmem:[#allocation3 + $0x28] sm:$0xff]
        %v2139 = vld [vmem:[#allocation3 + $0x30] sm:$0xff]
        %v2140 = vld [vmem:[#allocation3 + $0x38] sm:$0xff]
        %v2141 = vld [vmem:[#allocation3 + $0x40] sm:$0xff]
        %v2142 = vld [vmem:[#allocation3 + $0x48] sm:$0xff]
        %v2143 = vld [vmem:[#allocation3 + $0x50] sm:$0xff]
        %v2144 = vld [vmem:[#allocation3 + $0x58] sm:$0xff]
        %v2145 = vld [vmem:[#allocation3 + $0x60] sm:$0xff]
        %v2146 = vld [vmem:[#allocation3 + $0x68] sm:$0xff]
        %v2147 = vld [vmem:[#allocation3 + $0x70] sm:$0xff]
        %v2148 = vld [vmem:[#allocation3 + $0x78] sm:$0xff]
        %v2149 = vld [vmem:[#allocation3 + $0x80] sm:$0xff]
        %v2150 = vld [vmem:[#allocation3 + $0x88] sm:$0xff]
        %v2151 = vld [vmem:[#allocation3 + $0x90] sm:$0xff]
        %v2152 = vld [vmem:[#allocation3 + $0x98] sm:$0xff]
        %v2153 = vld [vmem:[#allocation3 + $0xa0] sm:$0xff]
        %v2154 = vld [vmem:[#allocation3 + $0xa8] sm:$0xff]
        %v2155 = vld [vmem:[#allocation3 + $0xb0] sm:$0xff]
        %v2156 = vld [vmem:[#allocation3 + $0xb8] sm:$0xff]
        %v2157 = vld [vmem:[#allocation3 + $0xc0] sm:$0xff]
        %v2158 = vld [vmem:[#allocation3 + $0xc8] sm:$0xff]
        %v2159 = vld [vmem:[#allocation3 + $0xd0] sm:$0xff]
        %v2160 = vld [vmem:[#allocation3 + $0xd8] sm:$0xff]
        %v2161 = vld [vmem:[#allocation3 + $0xe0] sm:$0xff]
        %v2162 = vld [vmem:[#allocation3 + $0xe8] sm:$0xff]
        %v2163 = vld [vmem:[#allocation3 + $0xf0] sm:$0xff]
        %v2164 = vld [vmem:[#allocation3 + $0xf8] sm:$0xff]
        %s2165 = scalar_lea.vmem %s302, 8
        %v2166 = vld [vmem:[%s2165] sm:$0xf]
        %vm2215 = vcmask 1042432
        %vm2216 = vcmask 1046532
        %vm2217 = vmor %vm2215, %vm2216
        %v2218 = vrot.slane %v2085, 5
        %v2219 = vrot.slane %v2218, 4
        %v2220 = vrot.slane %v2086, 5
        %v2221 = vsel %vm2217, %v2219, %v2220
        %v2222 = vrot.slane %v2220, 4
        %v2223 = vrot.slane %v2087, 5
        %v2224 = vsel %vm2217, %v2222, %v2223
        %v2225 = vrot.slane %v2088, 5
        %v2226 = vrot.slane %v2225, 4
        %v2227 = vrot.slane %v2089, 5
        %v2228 = vsel %vm2217, %v2226, %v2227
        %v2229 = vrot.slane %v2227, 4
        %v2230 = vrot.slane %v2090, 5
        %v2231 = vsel %vm2217, %v2229, %v2230
        %v2232 = vrot.slane %v2091, 5
        %v2233 = vrot.slane %v2232, 4
        %v2234 = vrot.slane %v2092, 5
        %v2235 = vsel %vm2217, %v2233, %v2234
        %v2236 = vrot.slane %v2234, 4
        %v2237 = vrot.slane %v2093, 5
        %v2238 = vsel %vm2217, %v2236, %v2237
        %v2239 = vrot.slane %v2094, 5
        %v2240 = vrot.slane %v2239, 4
        %v2241 = vrot.slane %v2095, 5
        %v2242 = vsel %vm2217, %v2240, %v2241
        %v2243 = vrot.slane %v2241, 4
        %v2244 = vrot.slane %v2096, 5
        %v2245 = vsel %vm2217, %v2243, %v2244
        %v2246 = vrot.slane %v2097, 5
        %v2247 = vrot.slane %v2246, 4
        %v2248 = vrot.slane %v2098, 5
        %v2249 = vsel %vm2217, %v2247, %v2248
        %v2250 = vrot.slane %v2248, 4
        %v2251 = vrot.slane %v2099, 5
        %v2252 = vsel %vm2217, %v2250, %v2251
        %v2253 = vrot.slane %v2100, 5
        %v2254 = vrot.slane %v2253, 4
        %v2255 = vrot.slane %v2101, 5
        %v2256 = vsel %vm2217, %v2254, %v2255
        %v2257 = vrot.slane %v2255, 4
        %v2258 = vrot.slane %v2102, 5
        %v2259 = vsel %vm2217, %v2257, %v2258
        %v2260 = vrot.slane %v2103, 5
        %v2261 = vrot.slane %v2260, 4
        %v2262 = vrot.slane %v2104, 5
        %v2263 = vsel %vm2217, %v2261, %v2262
        %v2264 = vrot.slane %v2262, 4
        %v2265 = vrot.slane %v2105, 5
        %v2266 = vsel %vm2217, %v2264, %v2265
        %v2267 = vrot.slane %v2106, 5
        %v2268 = vrot.slane %v2267, 4
        %v2269 = vrot.slane %v2107, 5
        %v2270 = vsel %vm2217, %v2268, %v2269
        %v2271 = vrot.slane %v2269, 4
        %v2272 = vrot.slane %v2108, 5
        %v2273 = vsel %vm2217, %v2271, %v2272
        %v2274 = vrot.slane %v2109, 5
        %v2275 = vrot.slane %v2274, 4
        %v2276 = vrot.slane %v2110, 5
        %v2277 = vsel %vm2217, %v2275, %v2276
        %v2278 = vrot.slane %v2276, 4
        %v2279 = vrot.slane %v2111, 5
        %v2280 = vsel %vm2217, %v2278, %v2279
        %v2281 = vrot.slane %v2112, 5
        %v2282 = vrot.slane %v2281, 4
        %v2283 = vrot.slane %v2113, 5
        %v2284 = vsel %vm2217, %v2282, %v2283
        %v2285 = vrot.slane %v2283, 4
        %v2286 = vrot.slane %v2114, 5
        %v2287 = vsel %vm2217, %v2285, %v2286
        %v2288 = vrot.slane %v2115, 5
        %v2289 = vrot.slane %v2288, 4
        %v2290 = vrot.slane %v2116, 5
        %v2291 = vsel %vm2217, %v2289, %v2290
        %v2292 = vrot.slane %v2290, 4
        %v2293 = vrot.slane %v2117, 5
        %v2294 = vsel %vm2217, %v2292, %v2293
        %v2295 = vrot.slane %v2118, 5
        %v2296 = vrot.slane %v2295, 4
        %v2297 = vrot.slane %v2119, 5
        %v2298 = vsel %vm2217, %v2296, %v2297
        %v2299 = vrot.slane %v2297, 4
        %v2300 = vrot.slane %v2120, 5
        %v2301 = vsel %vm2217, %v2299, %v2300
        %v2302 = vrot.slane %v2121, 5
        %v2303 = vrot.slane %v2302, 4
        %v2304 = vrot.slane %v2122, 5
        %v2305 = vsel %vm2217, %v2303, %v2304
        %v2306 = vrot.slane %v2304, 4
        %v2307 = vrot.slane %v2123, 5
        %v2308 = vsel %vm2217, %v2306, %v2307
        %v2309 = vrot.slane %v2124, 5
        %v2310 = vrot.slane %v2309, 4
        %v2311 = vrot.slane %v2125, 5
        %v2312 = vsel %vm2217, %v2310, %v2311
        %v2313 = vrot.slane %v2311, 4
        %v2314 = vrot.slane %v2126, 5
        %v2315 = vsel %vm2217, %v2313, %v2314
        %v2316 = vrot.slane %v2127, 5
        %v2317 = vrot.slane %v2316, 4
        %v2318 = vrot.slane %v2128, 5
        %v2319 = vsel %vm2217, %v2317, %v2318
        %v2320 = vrot.slane %v2318, 4
        %v2321 = vrot.slane %v2129, 5
        %v2322 = vsel %vm2217, %v2320, %v2321
        %v2323 = vrot.slane %v2130, 5
        %v2324 = vrot.slane %v2323, 4
        %v2325 = vrot.slane %v2131, 5
        %v2326 = vsel %vm2217, %v2324, %v2325
        %v2327 = vrot.slane %v2325, 4
        %v2328 = vrot.slane %v2132, 5
        %v2329 = vsel %vm2217, %v2327, %v2328
        %v2330 = vunpack.c.l.b16 %v2221
        %v2331 = vunpack.c.l.b16 %v2224
        %v2332 = vunpack.c.l.b16 %v2228
        %v2333 = vunpack.c.l.b16 %v2231
        %v2334 = vunpack.c.l.b16 %v2235
        %v2335 = vunpack.c.l.b16 %v2238
        %v2336 = vunpack.c.l.b16 %v2242
        %v2337 = vunpack.c.l.b16 %v2245
        %v2338 = vunpack.c.l.b16 %v2249
        %v2339 = vunpack.c.l.b16 %v2252
        %v2340 = vunpack.c.l.b16 %v2256
        %v2341 = vunpack.c.l.b16 %v2259
        %v2342 = vunpack.c.l.b16 %v2263
        %v2343 = vunpack.c.l.b16 %v2266
        %v2344 = vunpack.c.l.b16 %v2270
        %v2345 = vunpack.c.l.b16 %v2273
        %v2346 = vunpack.c.l.b16 %v2277
        %v2347 = vunpack.c.l.b16 %v2280
        %v2348 = vunpack.c.l.b16 %v2284
        %v2349 = vunpack.c.l.b16 %v2287
        %v2350 = vunpack.c.l.b16 %v2291
        %v2351 = vunpack.c.l.b16 %v2294
        %v2352 = vunpack.c.l.b16 %v2298
        %v2353 = vunpack.c.l.b16 %v2301
        %v2354 = vunpack.c.l.b16 %v2305
        %v2355 = vunpack.c.l.b16 %v2308
        %v2356 = vunpack.c.l.b16 %v2312
        %v2357 = vunpack.c.l.b16 %v2315
        %v2358 = vunpack.c.l.b16 %v2319
        %v2359 = vunpack.c.l.b16 %v2322
        %v2360 = vunpack.c.l.b16 %v2326
        %v2361 = vunpack.c.l.b16 %v2329
        %v2362 = vpack.c.b16 %v2331, %v2330
        %v2363 = vpack.c.b16 %v2333, %v2332
        %v2364 = vpack.c.b16 %v2335, %v2334
        %v2365 = vpack.c.b16 %v2337, %v2336
        %v2366 = vpack.c.b16 %v2339, %v2338
        %v2367 = vpack.c.b16 %v2341, %v2340
        %v2368 = vpack.c.b16 %v2343, %v2342
        %v2369 = vpack.c.b16 %v2345, %v2344
        %v2370 = vpack.c.b16 %v2347, %v2346
        %v2371 = vpack.c.b16 %v2349, %v2348
        %v2372 = vpack.c.b16 %v2351, %v2350
        %v2373 = vpack.c.b16 %v2353, %v2352
        %v2374 = vpack.c.b16 %v2355, %v2354
        %v2375 = vpack.c.b16 %v2357, %v2356
        %v2376 = vpack.c.b16 %v2359, %v2358
        %v2377 = vpack.c.b16 %v2361, %v2360
        %v2379 = vsel %vm1014, %v2362, 0
        %v2382 = vsel %vm1014, %v2363, 0
        %v2385 = vsel %vm1014, %v2364, 0
        %v2388 = vsel %vm1014, %v2365, 0
        %v2391 = vsel %vm1014, %v2366, 0
        %v2394 = vsel %vm1014, %v2367, 0
        %v2397 = vsel %vm1014, %v2368, 0
        %v2400 = vsel %vm1014, %v2369, 0
        %v2403 = vsel %vm1014, %v2370, 0
        %v2406 = vsel %vm1014, %v2371, 0
        %v2409 = vsel %vm1014, %v2372, 0
        %v2412 = vsel %vm1014, %v2373, 0
        %v2415 = vsel %vm1014, %v2374, 0
        %v2418 = vsel %vm1014, %v2375, 0
        %v2421 = vsel %vm1014, %v2376, 0
        %v2424 = vsel %vm1014, %v2377, 0
        %v2427 = vsel %vm1063, %v2166, 0
        %2429 = vmatprep.subr.bf16.mxu0 0
        %2430 = vmatpush1.bf16.msra.mxu0 %v2427
        %2431 = vmatprep.subr.bf16.mxu0 0
        %2432 = vmatpush1.bf16.msra.mxu0 0
        %2433 = vmatprep.subr.bf16.mxu0 0
        %2434 = vmatpush1.bf16.msra.mxu0 0
        %2435 = vmatprep.subr.bf16.mxu0 0
        %2436 = vmatpush1.bf16.msra.mxu0 0
        %2437 = vmatprep.subr.bf16.mxu0 0
        %2438 = vmatpush1.bf16.msra.mxu0 0
        %2439 = vmatprep.subr.bf16.mxu0 0
        %2440 = vmatpush1.bf16.msra.mxu0 0
        %2441 = vmatprep.subr.bf16.mxu0 0
        %2442 = vmatpush1.bf16.msra.mxu0 0
        %2443 = vmatprep.subr.bf16.mxu0 0
        %2444 = vmatpush1.bf16.msra.mxu0 0
        %2445 = vmatprep.subr.bf16.mxu0 0
        %2446 = vmatpush1.bf16.msra.mxu0 0
        %2447 = vmatprep.subr.bf16.mxu0 0
        %2448 = vmatpush1.bf16.msra.mxu0 0
        %2449 = vmatprep.subr.bf16.mxu0 0
        %2450 = vmatpush1.bf16.msra.mxu0 0
        %2451 = vmatprep.subr.bf16.mxu0 0
        %2452 = vmatpush1.bf16.msra.mxu0 0
        %2453 = vmatprep.subr.bf16.mxu0 0
        %2454 = vmatpush1.bf16.msra.mxu0 0
        %2455 = vmatprep.subr.bf16.mxu0 0
        %2456 = vmatpush1.bf16.msra.mxu0 0
        %2457 = vmatprep.subr.bf16.mxu0 0
        %2458 = vmatpush1.bf16.msra.mxu0 0
        %2459 = vmatprep.subr.bf16.mxu0 0
        %2460 = vmatpush1.bf16.msra.mxu0 0
        %2461 = vmatprep.mubr.bf16.mxu0 0
        %2462 = vmatmul.mubr.bf16.gmra.mrb[0].mxu0 %v2379
        %v2463 = vpop.f32.mrb[0].mxu0
        %v2464 = vadd.f32 0.0, %v2463
        %v2465 = vpop.f32.mrb[0].mxu0
        %v2466 = vpop.f32.mrb[0].mxu0
        %v2467 = vadd.f32 0.0, %v2466
        %v2468 = vpop.f32.mrb[0].mxu0
        %2469 = vmatprep.mubr.bf16.mxu0 0
        %2470 = vmatmul.mubr.bf16.gmra.mrb[0].mxu0 %v2382
        %v2471 = vpop.f32.mrb[0].mxu0
        %v2472 = vadd.f32 0.0, %v2471
        %v2473 = vpop.f32.mrb[0].mxu0
        %v2474 = vpop.f32.mrb[0].mxu0
        %v2475 = vadd.f32 0.0, %v2474
        %v2476 = vpop.f32.mrb[0].mxu0
        %2477 = vmatprep.mubr.bf16.mxu0 0
        %2478 = vmatmul.mubr.bf16.gmra.mrb[0].mxu0 %v2385
        %v2479 = vpop.f32.mrb[0].mxu0
        %v2480 = vadd.f32 0.0, %v2479
        %v2481 = vpop.f32.mrb[0].mxu0
        %v2482 = vpop.f32.mrb[0].mxu0
        %v2483 = vadd.f32 0.0, %v2482
        %v2484 = vpop.f32.mrb[0].mxu0
        %2485 = vmatprep.mubr.bf16.mxu0 0
        %2486 = vmatmul.mubr.bf16.gmra.mrb[0].mxu0 %v2388
        %v2487 = vpop.f32.mrb[0].mxu0
        %v2488 = vadd.f32 0.0, %v2487
        %v2489 = vpop.f32.mrb[0].mxu0
        %v2490 = vpop.f32.mrb[0].mxu0
        %v2491 = vadd.f32 0.0, %v2490
        %v2492 = vpop.f32.mrb[0].mxu0
        %2493 = vmatprep.mubr.bf16.mxu0 0
        %2494 = vmatmul.mubr.bf16.gmra.mrb[0].mxu0 %v2391
        %v2495 = vpop.f32.mrb[0].mxu0
        %v2496 = vadd.f32 0.0, %v2495
        %v2497 = vpop.f32.mrb[0].mxu0
        %v2498 = vpop.f32.mrb[0].mxu0
        %v2499 = vadd.f32 0.0, %v2498
        %v2500 = vpop.f32.mrb[0].mxu0
        %2501 = vmatprep.mubr.bf16.mxu0 0
        %2502 = vmatmul.mubr.bf16.gmra.mrb[0].mxu0 %v2394
        %v2503 = vpop.f32.mrb[0].mxu0
        %v2504 = vadd.f32 0.0, %v2503
        %v2505 = vpop.f32.mrb[0].mxu0
        %v2506 = vpop.f32.mrb[0].mxu0
        %v2507 = vadd.f32 0.0, %v2506
        %v2508 = vpop.f32.mrb[0].mxu0
        %2509 = vmatprep.mubr.bf16.mxu0 0
        %2510 = vmatmul.mubr.bf16.gmra.mrb[0].mxu0 %v2397
        %v2511 = vpop.f32.mrb[0].mxu0
        %v2512 = vadd.f32 0.0, %v2511
        %v2513 = vpop.f32.mrb[0].mxu0
        %v2514 = vpop.f32.mrb[0].mxu0
        %v2515 = vadd.f32 0.0, %v2514
        %v2516 = vpop.f32.mrb[0].mxu0
        %2517 = vmatprep.mubr.bf16.mxu0 0
        %2518 = vmatmul.mubr.bf16.gmra.mrb[0].mxu0 %v2400
        %v2519 = vpop.f32.mrb[0].mxu0
        %v2520 = vadd.f32 0.0, %v2519
        %v2521 = vpop.f32.mrb[0].mxu0
        %v2522 = vpop.f32.mrb[0].mxu0
        %v2523 = vadd.f32 0.0, %v2522
        %v2524 = vpop.f32.mrb[0].mxu0
        %2525 = vmatprep.mubr.bf16.mxu0 0
        %2526 = vmatmul.mubr.bf16.gmra.mrb[0].mxu0 %v2403
        %v2527 = vpop.f32.mrb[0].mxu0
        %v2528 = vadd.f32 0.0, %v2527
        %v2529 = vpop.f32.mrb[0].mxu0
        %v2530 = vpop.f32.mrb[0].mxu0
        %v2531 = vadd.f32 0.0, %v2530
        %v2532 = vpop.f32.mrb[0].mxu0
        %2533 = vmatprep.mubr.bf16.mxu0 0
        %2534 = vmatmul.mubr.bf16.gmra.mrb[0].mxu0 %v2406
        %v2535 = vpop.f32.mrb[0].mxu0
        %v2536 = vadd.f32 0.0, %v2535
        %v2537 = vpop.f32.mrb[0].mxu0
        %v2538 = vpop.f32.mrb[0].mxu0
        %v2539 = vadd.f32 0.0, %v2538
        %v2540 = vpop.f32.mrb[0].mxu0
        %2541 = vmatprep.mubr.bf16.mxu0 0
        %2542 = vmatmul.mubr.bf16.gmra.mrb[0].mxu0 %v2409
        %v2543 = vpop.f32.mrb[0].mxu0
        %v2544 = vadd.f32 0.0, %v2543
        %v2545 = vpop.f32.mrb[0].mxu0
        %v2546 = vpop.f32.mrb[0].mxu0
        %v2547 = vadd.f32 0.0, %v2546
        %v2548 = vpop.f32.mrb[0].mxu0
        %2549 = vmatprep.mubr.bf16.mxu0 0
        %2550 = vmatmul.mubr.bf16.gmra.mrb[0].mxu0 %v2412
        %v2551 = vpop.f32.mrb[0].mxu0
        %v2552 = vadd.f32 0.0, %v2551
        %v2553 = vpop.f32.mrb[0].mxu0
        %v2554 = vpop.f32.mrb[0].mxu0
        %v2555 = vadd.f32 0.0, %v2554
        %v2556 = vpop.f32.mrb[0].mxu0
        %2557 = vmatprep.mubr.bf16.mxu0 0
        %2558 = vmatmul.mubr.bf16.gmra.mrb[0].mxu0 %v2415
        %v2559 = vpop.f32.mrb[0].mxu0
        %v2560 = vadd.f32 0.0, %v2559
        %v2561 = vpop.f32.mrb[0].mxu0
        %v2562 = vpop.f32.mrb[0].mxu0
        %v2563 = vadd.f32 0.0, %v2562
        %v2564 = vpop.f32.mrb[0].mxu0
        %2565 = vmatprep.mubr.bf16.mxu0 0
        %2566 = vmatmul.mubr.bf16.gmra.mrb[0].mxu0 %v2418
        %v2567 = vpop.f32.mrb[0].mxu0
        %v2568 = vadd.f32 0.0, %v2567
        %v2569 = vpop.f32.mrb[0].mxu0
        %v2570 = vpop.f32.mrb[0].mxu0
        %v2571 = vadd.f32 0.0, %v2570
        %v2572 = vpop.f32.mrb[0].mxu0
        %2573 = vmatprep.mubr.bf16.mxu0 0
        %2574 = vmatmul.mubr.bf16.gmra.mrb[0].mxu0 %v2421
        %v2575 = vpop.f32.mrb[0].mxu0
        %v2576 = vadd.f32 0.0, %v2575
        %v2577 = vpop.f32.mrb[0].mxu0
        %v2578 = vpop.f32.mrb[0].mxu0
        %v2579 = vadd.f32 0.0, %v2578
        %v2580 = vpop.f32.mrb[0].mxu0
        %2581 = vmatprep.mubr.bf16.mxu0 0
        %2582 = vmatmul.mubr.bf16.gmra.mrb[0].mxu0 %v2424
        %v2583 = vpop.f32.mrb[0].mxu0
        %v2584 = vadd.f32 0.0, %v2583
        %v2585 = vpop.f32.mrb[0].mxu0
        %v2586 = vpop.f32.mrb[0].mxu0
        %v2587 = vadd.f32 0.0, %v2586
        %v2588 = vpop.f32.mrb[0].mxu0
        %2589 = vdwg.mxu0
        %v2590 = vadd.f32 %v2133, %v2464
        %v2591 = vadd.f32 %v2134, %v2467
        %v2592 = vadd.f32 %v2135, %v2472
        %v2593 = vadd.f32 %v2136, %v2475
        %v2594 = vadd.f32 %v2137, %v2480
        %v2595 = vadd.f32 %v2138, %v2483
        %v2596 = vadd.f32 %v2139, %v2488
        %v2597 = vadd.f32 %v2140, %v2491
        %v2598 = vadd.f32 %v2141, %v2496
        %v2599 = vadd.f32 %v2142, %v2499
        %v2600 = vadd.f32 %v2143, %v2504
        %v2601 = vadd.f32 %v2144, %v2507
        %v2602 = vadd.f32 %v2145, %v2512
        %v2603 = vadd.f32 %v2146, %v2515
        %v2604 = vadd.f32 %v2147, %v2520
        %v2605 = vadd.f32 %v2148, %v2523
        %v2606 = vadd.f32 %v2149, %v2528
        %v2607 = vadd.f32 %v2150, %v2531
        %v2608 = vadd.f32 %v2151, %v2536
        %v2609 = vadd.f32 %v2152, %v2539
        %v2610 = vadd.f32 %v2153, %v2544
        %v2611 = vadd.f32 %v2154, %v2547
        %v2612 = vadd.f32 %v2155, %v2552
        %v2613 = vadd.f32 %v2156, %v2555
        %v2614 = vadd.f32 %v2157, %v2560
        %v2615 = vadd.f32 %v2158, %v2563
        %v2616 = vadd.f32 %v2159, %v2568
        %v2617 = vadd.f32 %v2160, %v2571
        %v2618 = vadd.f32 %v2161, %v2576
        %v2619 = vadd.f32 %v2162, %v2579
        %v2620 = vadd.f32 %v2163, %v2584
        %v2621 = vadd.f32 %v2164, %v2587
        %2622 = vst [vmem:[#allocation3] sm:$0xff] %v2590
        %2623 = vst [vmem:[#allocation3 + $0x8] sm:$0xff] %v2591
        %2624 = vst [vmem:[#allocation3 + $0x10] sm:$0xff] %v2592
        %2625 = vst [vmem:[#allocation3 + $0x18] sm:$0xff] %v2593
        %2626 = vst [vmem:[#allocation3 + $0x20] sm:$0xff] %v2594
        %2627 = vst [vmem:[#allocation3 + $0x28] sm:$0xff] %v2595
        %2628 = vst [vmem:[#allocation3 + $0x30] sm:$0xff] %v2596
        %2629 = vst [vmem:[#allocation3 + $0x38] sm:$0xff] %v2597
        %2630 = vst [vmem:[#allocation3 + $0x40] sm:$0xff] %v2598
        %2631 = vst [vmem:[#allocation3 + $0x48] sm:$0xff] %v2599
        %2632 = vst [vmem:[#allocation3 + $0x50] sm:$0xff] %v2600
        %2633 = vst [vmem:[#allocation3 + $0x58] sm:$0xff] %v2601
        %2634 = vst [vmem:[#allocation3 + $0x60] sm:$0xff] %v2602
        %2635 = vst [vmem:[#allocation3 + $0x68] sm:$0xff] %v2603
        %2636 = vst [vmem:[#allocation3 + $0x70] sm:$0xff] %v2604
        %2637 = vst [vmem:[#allocation3 + $0x78] sm:$0xff] %v2605
        %2638 = vst [vmem:[#allocation3 + $0x80] sm:$0xff] %v2606
        %2639 = vst [vmem:[#allocation3 + $0x88] sm:$0xff] %v2607
        %2640 = vst [vmem:[#allocation3 + $0x90] sm:$0xff] %v2608
        %2641 = vst [vmem:[#allocation3 + $0x98] sm:$0xff] %v2609
        %2642 = vst [vmem:[#allocation3 + $0xa0] sm:$0xff] %v2610
        %2643 = vst [vmem:[#allocation3 + $0xa8] sm:$0xff] %v2611
        %2644 = vst [vmem:[#allocation3 + $0xb0] sm:$0xff] %v2612
        %2645 = vst [vmem:[#allocation3 + $0xb8] sm:$0xff] %v2613
        %2646 = vst [vmem:[#allocation3 + $0xc0] sm:$0xff] %v2614
        %2647 = vst [vmem:[#allocation3 + $0xc8] sm:$0xff] %v2615
        %2648 = vst [vmem:[#allocation3 + $0xd0] sm:$0xff] %v2616
        %2649 = vst [vmem:[#allocation3 + $0xd8] sm:$0xff] %v2617
        %2650 = vst [vmem:[#allocation3 + $0xe0] sm:$0xff] %v2618
        %2651 = vst [vmem:[#allocation3 + $0xe8] sm:$0xff] %v2619
        %2652 = vst [vmem:[#allocation3 + $0xf0] sm:$0xff] %v2620
        %2653 = vst [vmem:[#allocation3 + $0xf8] sm:$0xff] %v2621
        %v2654 = vld [vmem:[%s751] sm:$0xf]
        %v2655 = vld [vmem:[%s751 + $0x4] sm:$0xf]
        %v2656 = vld [vmem:[%s751 + $0xc] sm:$0xf]
        %v2657 = vld [vmem:[%s751 + $0x10] sm:$0xf]
        %v2658 = vld [vmem:[%s751 + $0x18] sm:$0xf]
        %v2659 = vld [vmem:[%s751 + $0x1c] sm:$0xf]
        %v2660 = vld [vmem:[%s751 + $0x24] sm:$0xf]
        %v2661 = vld [vmem:[%s751 + $0x28] sm:$0xf]
        %v2662 = vld [vmem:[%s751 + $0x30] sm:$0xf]
        %v2663 = vld [vmem:[%s751 + $0x34] sm:$0xf]
        %v2664 = vld [vmem:[%s751 + $0x3c] sm:$0xf]
        %v2665 = vld [vmem:[%s751 + $0x40] sm:$0xf]
        %v2666 = vld [vmem:[%s751 + $0x48] sm:$0xf]
        %v2667 = vld [vmem:[%s751 + $0x4c] sm:$0xf]
        %v2668 = vld [vmem:[%s751 + $0x54] sm:$0xf]
        %v2669 = vld [vmem:[%s751 + $0x58] sm:$0xf]
        %v2670 = vld [vmem:[%s751 + $0x60] sm:$0xf]
        %v2671 = vld [vmem:[%s751 + $0x64] sm:$0xf]
        %v2672 = vld [vmem:[%s751 + $0x6c] sm:$0xf]
        %v2673 = vld [vmem:[%s751 + $0x70] sm:$0xf]
        %v2674 = vld [vmem:[%s751 + $0x78] sm:$0xf]
        %v2675 = vld [vmem:[%s751 + $0x7c] sm:$0xf]
        %v2676 = vld [vmem:[%s751 + $0x84] sm:$0xf]
        %v2677 = vld [vmem:[%s751 + $0x88] sm:$0xf]
        %v2678 = vld [vmem:[%s751 + $0x90] sm:$0xf]
        %v2679 = vld [vmem:[%s751 + $0x94] sm:$0xf]
        %v2680 = vld [vmem:[%s751 + $0x9c] sm:$0xf]
        %v2681 = vld [vmem:[%s751 + $0xa0] sm:$0xf]
        %v2682 = vld [vmem:[%s751 + $0xa8] sm:$0xf]
        %v2683 = vld [vmem:[%s751 + $0xac] sm:$0xf]
        %v2684 = vld [vmem:[%s751 + $0xb4] sm:$0xf]
        %v2685 = vld [vmem:[%s751 + $0xb8] sm:$0xf]
        %v2686 = vld [vmem:[#allocation3] sm:$0xff]
        %v2687 = vld [vmem:[#allocation3 + $0x8] sm:$0xff]
        %v2688 = vld [vmem:[#allocation3 + $0x10] sm:$0xff]
        %v2689 = vld [vmem:[#allocation3 + $0x18] sm:$0xff]
        %v2690 = vld [vmem:[#allocation3 + $0x20] sm:$0xff]
        %v2691 = vld [vmem:[#allocation3 + $0x28] sm:$0xff]
        %v2692 = vld [vmem:[#allocation3 + $0x30] sm:$0xff]
        %v2693 = vld [vmem:[#allocation3 + $0x38] sm:$0xff]
        %v2694 = vld [vmem:[#allocation3 + $0x40] sm:$0xff]
        %v2695 = vld [vmem:[#allocation3 + $0x48] sm:$0xff]
        %v2696 = vld [vmem:[#allocation3 + $0x50] sm:$0xff]
        %v2697 = vld [vmem:[#allocation3 + $0x58] sm:$0xff]
        %v2698 = vld [vmem:[#allocation3 + $0x60] sm:$0xff]
        %v2699 = vld [vmem:[#allocation3 + $0x68] sm:$0xff]
        %v2700 = vld [vmem:[#allocation3 + $0x70] sm:$0xff]
        %v2701 = vld [vmem:[#allocation3 + $0x78] sm:$0xff]
        %v2702 = vld [vmem:[#allocation3 + $0x80] sm:$0xff]
        %v2703 = vld [vmem:[#allocation3 + $0x88] sm:$0xff]
        %v2704 = vld [vmem:[#allocation3 + $0x90] sm:$0xff]
        %v2705 = vld [vmem:[#allocation3 + $0x98] sm:$0xff]
        %v2706 = vld [vmem:[#allocation3 + $0xa0] sm:$0xff]
        %v2707 = vld [vmem:[#allocation3 + $0xa8] sm:$0xff]
        %v2708 = vld [vmem:[#allocation3 + $0xb0] sm:$0xff]
        %v2709 = vld [vmem:[#allocation3 + $0xb8] sm:$0xff]
        %v2710 = vld [vmem:[#allocation3 + $0xc0] sm:$0xff]
        %v2711 = vld [vmem:[#allocation3 + $0xc8] sm:$0xff]
        %v2712 = vld [vmem:[#allocation3 + $0xd0] sm:$0xff]
        %v2713 = vld [vmem:[#allocation3 + $0xd8] sm:$0xff]
        %v2714 = vld [vmem:[#allocation3 + $0xe0] sm:$0xff]
        %v2715 = vld [vmem:[#allocation3 + $0xe8] sm:$0xff]
        %v2716 = vld [vmem:[#allocation3 + $0xf0] sm:$0xff]
        %v2717 = vld [vmem:[#allocation3 + $0xf8] sm:$0xff]
        %s2718 = scalar_lea.vmem %s302, 12
        %v2719 = vld [vmem:[%s2718] sm:$0xf]
        %v2752 = vunpack.c.l.b16 %v2654
        %v2753 = vunpack.c.l.b16 %v2655
        %v2754 = vunpack.c.l.b16 %v2656
        %v2755 = vunpack.c.l.b16 %v2657
        %v2756 = vunpack.c.l.b16 %v2658
        %v2757 = vunpack.c.l.b16 %v2659
        %v2758 = vunpack.c.l.b16 %v2660
        %v2759 = vunpack.c.l.b16 %v2661
        %v2760 = vunpack.c.l.b16 %v2662
        %v2761 = vunpack.c.l.b16 %v2663
        %v2762 = vunpack.c.l.b16 %v2664
        %v2763 = vunpack.c.l.b16 %v2665
        %v2764 = vunpack.c.l.b16 %v2666
        %v2765 = vunpack.c.l.b16 %v2667
        %v2766 = vunpack.c.l.b16 %v2668
        %v2767 = vunpack.c.l.b16 %v2669
        %v2768 = vunpack.c.l.b16 %v2670
        %v2769 = vunpack.c.l.b16 %v2671
        %v2770 = vunpack.c.l.b16 %v2672
        %v2771 = vunpack.c.l.b16 %v2673
        %v2772 = vunpack.c.l.b16 %v2674
        %v2773 = vunpack.c.l.b16 %v2675
        %v2774 = vunpack.c.l.b16 %v2676
        %v2775 = vunpack.c.l.b16 %v2677
        %v2776 = vunpack.c.l.b16 %v2678
        %v2777 = vunpack.c.l.b16 %v2679
        %v2778 = vunpack.c.l.b16 %v2680
        %v2779 = vunpack.c.l.b16 %v2681
        %v2780 = vunpack.c.l.b16 %v2682
        %v2781 = vunpack.c.l.b16 %v2683
        %v2782 = vunpack.c.l.b16 %v2684
        %v2783 = vunpack.c.l.b16 %v2685
        %v2784 = vpack.c.b16 %v2753, %v2752
        %v2785 = vpack.c.b16 %v2755, %v2754
        %v2786 = vpack.c.b16 %v2757, %v2756
        %v2787 = vpack.c.b16 %v2759, %v2758
        %v2788 = vpack.c.b16 %v2761, %v2760
        %v2789 = vpack.c.b16 %v2763, %v2762
        %v2790 = vpack.c.b16 %v2765, %v2764
        %v2791 = vpack.c.b16 %v2767, %v2766
        %v2792 = vpack.c.b16 %v2769, %v2768
        %v2793 = vpack.c.b16 %v2771, %v2770
        %v2794 = vpack.c.b16 %v2773, %v2772
        %v2795 = vpack.c.b16 %v2775, %v2774
        %v2796 = vpack.c.b16 %v2777, %v2776
        %v2797 = vpack.c.b16 %v2779, %v2778
        %v2798 = vpack.c.b16 %v2781, %v2780
        %v2799 = vpack.c.b16 %v2783, %v2782
        %v2801 = vsel %vm1014, %v2784, 0
        %v2804 = vsel %vm1014, %v2785, 0
        %v2807 = vsel %vm1014, %v2786, 0
        %v2810 = vsel %vm1014, %v2787, 0
        %v2813 = vsel %vm1014, %v2788, 0
        %v2816 = vsel %vm1014, %v2789, 0
        %v2819 = vsel %vm1014, %v2790, 0
        %v2822 = vsel %vm1014, %v2791, 0
        %v2825 = vsel %vm1014, %v2792, 0
        %v2828 = vsel %vm1014, %v2793, 0
        %v2831 = vsel %vm1014, %v2794, 0
        %v2834 = vsel %vm1014, %v2795, 0
        %v2837 = vsel %vm1014, %v2796, 0
        %v2840 = vsel %vm1014, %v2797, 0
        %v2843 = vsel %vm1014, %v2798, 0
        %v2846 = vsel %vm1014, %v2799, 0
        %v2849 = vsel %vm1063, %v2719, 0
        %2851 = vmatprep.subr.bf16.mxu0 0
        %2852 = vmatpush1.bf16.msra.mxu0 %v2849
        %2853 = vmatprep.subr.bf16.mxu0 0
        %2854 = vmatpush1.bf16.msra.mxu0 0
        %2855 = vmatprep.subr.bf16.mxu0 0
        %2856 = vmatpush1.bf16.msra.mxu0 0
        %2857 = vmatprep.subr.bf16.mxu0 0
        %2858 = vmatpush1.bf16.msra.mxu0 0
        %2859 = vmatprep.subr.bf16.mxu0 0
        %2860 = vmatpush1.bf16.msra.mxu0 0
        %2861 = vmatprep.subr.bf16.mxu0 0
        %2862 = vmatpush1.bf16.msra.mxu0 0
        %2863 = vmatprep.subr.bf16.mxu0 0
        %2864 = vmatpush1.bf16.msra.mxu0 0
        %2865 = vmatprep.subr.bf16.mxu0 0
        %2866 = vmatpush1.bf16.msra.mxu0 0
        %2867 = vmatprep.subr.bf16.mxu0 0
        %2868 = vmatpush1.bf16.msra.mxu0 0
        %2869 = vmatprep.subr.bf16.mxu0 0
        %2870 = vmatpush1.bf16.msra.mxu0 0
        %2871 = vmatprep.subr.bf16.mxu0 0
        %2872 = vmatpush1.bf16.msra.mxu0 0
        %2873 = vmatprep.subr.bf16.mxu0 0
        %2874 = vmatpush1.bf16.msra.mxu0 0
        %2875 = vmatprep.subr.bf16.mxu0 0
        %2876 = vmatpush1.bf16.msra.mxu0 0
        %2877 = vmatprep.subr.bf16.mxu0 0
        %2878 = vmatpush1.bf16.msra.mxu0 0
        %2879 = vmatprep.subr.bf16.mxu0 0
        %2880 = vmatpush1.bf16.msra.mxu0 0
        %2881 = vmatprep.subr.bf16.mxu0 0
        %2882 = vmatpush1.bf16.msra.mxu0 0
        %2883 = vmatprep.mubr.bf16.mxu0 0
        %2884 = vmatmul.mubr.bf16.gmra.mrb[0].mxu0 %v2801
        %v2885 = vpop.f32.mrb[0].mxu0
        %v2886 = vadd.f32 0.0, %v2885
        %v2887 = vpop.f32.mrb[0].mxu0
        %v2888 = vpop.f32.mrb[0].mxu0
        %v2889 = vadd.f32 0.0, %v2888
        %v2890 = vpop.f32.mrb[0].mxu0
        %2891 = vmatprep.mubr.bf16.mxu0 0
        %2892 = vmatmul.mubr.bf16.gmra.mrb[0].mxu0 %v2804
        %v2893 = vpop.f32.mrb[0].mxu0
        %v2894 = vadd.f32 0.0, %v2893
        %v2895 = vpop.f32.mrb[0].mxu0
        %v2896 = vpop.f32.mrb[0].mxu0
        %v2897 = vadd.f32 0.0, %v2896
        %v2898 = vpop.f32.mrb[0].mxu0
        %2899 = vmatprep.mubr.bf16.mxu0 0
        %2900 = vmatmul.mubr.bf16.gmra.mrb[0].mxu0 %v2807
        %v2901 = vpop.f32.mrb[0].mxu0
        %v2902 = vadd.f32 0.0, %v2901
        %v2903 = vpop.f32.mrb[0].mxu0
        %v2904 = vpop.f32.mrb[0].mxu0
        %v2905 = vadd.f32 0.0, %v2904
        %v2906 = vpop.f32.mrb[0].mxu0
        %2907 = vmatprep.mubr.bf16.mxu0 0
        %2908 = vmatmul.mubr.bf16.gmra.mrb[0].mxu0 %v2810
        %v2909 = vpop.f32.mrb[0].mxu0
        %v2910 = vadd.f32 0.0, %v2909
        %v2911 = vpop.f32.mrb[0].mxu0
        %v2912 = vpop.f32.mrb[0].mxu0
        %v2913 = vadd.f32 0.0, %v2912
        %v2914 = vpop.f32.mrb[0].mxu0
        %2915 = vmatprep.mubr.bf16.mxu0 0
        %2916 = vmatmul.mubr.bf16.gmra.mrb[0].mxu0 %v2813
        %v2917 = vpop.f32.mrb[0].mxu0
        %v2918 = vadd.f32 0.0, %v2917
        %v2919 = vpop.f32.mrb[0].mxu0
        %v2920 = vpop.f32.mrb[0].mxu0
        %v2921 = vadd.f32 0.0, %v2920
        %v2922 = vpop.f32.mrb[0].mxu0
        %2923 = vmatprep.mubr.bf16.mxu0 0
        %2924 = vmatmul.mubr.bf16.gmra.mrb[0].mxu0 %v2816
        %v2925 = vpop.f32.mrb[0].mxu0
        %v2926 = vadd.f32 0.0, %v2925
        %v2927 = vpop.f32.mrb[0].mxu0
        %v2928 = vpop.f32.mrb[0].mxu0
        %v2929 = vadd.f32 0.0, %v2928
        %v2930 = vpop.f32.mrb[0].mxu0
        %2931 = vmatprep.mubr.bf16.mxu0 0
        %2932 = vmatmul.mubr.bf16.gmra.mrb[0].mxu0 %v2819
        %v2933 = vpop.f32.mrb[0].mxu0
        %v2934 = vadd.f32 0.0, %v2933
        %v2935 = vpop.f32.mrb[0].mxu0
        %v2936 = vpop.f32.mrb[0].mxu0
        %v2937 = vadd.f32 0.0, %v2936
        %v2938 = vpop.f32.mrb[0].mxu0
        %2939 = vmatprep.mubr.bf16.mxu0 0
        %2940 = vmatmul.mubr.bf16.gmra.mrb[0].mxu0 %v2822
        %v2941 = vpop.f32.mrb[0].mxu0
        %v2942 = vadd.f32 0.0, %v2941
        %v2943 = vpop.f32.mrb[0].mxu0
        %v2944 = vpop.f32.mrb[0].mxu0
        %v2945 = vadd.f32 0.0, %v2944
        %v2946 = vpop.f32.mrb[0].mxu0
        %2947 = vmatprep.mubr.bf16.mxu0 0
        %2948 = vmatmul.mubr.bf16.gmra.mrb[0].mxu0 %v2825
        %v2949 = vpop.f32.mrb[0].mxu0
        %v2950 = vadd.f32 0.0, %v2949
        %v2951 = vpop.f32.mrb[0].mxu0
        %v2952 = vpop.f32.mrb[0].mxu0
        %v2953 = vadd.f32 0.0, %v2952
        %v2954 = vpop.f32.mrb[0].mxu0
        %2955 = vmatprep.mubr.bf16.mxu0 0
        %2956 = vmatmul.mubr.bf16.gmra.mrb[0].mxu0 %v2828
        %v2957 = vpop.f32.mrb[0].mxu0
        %v2958 = vadd.f32 0.0, %v2957
        %v2959 = vpop.f32.mrb[0].mxu0
        %v2960 = vpop.f32.mrb[0].mxu0
        %v2961 = vadd.f32 0.0, %v2960
        %v2962 = vpop.f32.mrb[0].mxu0
        %2963 = vmatprep.mubr.bf16.mxu0 0
        %2964 = vmatmul.mubr.bf16.gmra.mrb[0].mxu0 %v2831
        %v2965 = vpop.f32.mrb[0].mxu0
        %v2966 = vadd.f32 0.0, %v2965
        %v2967 = vpop.f32.mrb[0].mxu0
        %v2968 = vpop.f32.mrb[0].mxu0
        %v2969 = vadd.f32 0.0, %v2968
        %v2970 = vpop.f32.mrb[0].mxu0
        %2971 = vmatprep.mubr.bf16.mxu0 0
        %2972 = vmatmul.mubr.bf16.gmra.mrb[0].mxu0 %v2834
        %v2973 = vpop.f32.mrb[0].mxu0
        %v2974 = vadd.f32 0.0, %v2973
        %v2975 = vpop.f32.mrb[0].mxu0
        %v2976 = vpop.f32.mrb[0].mxu0
        %v2977 = vadd.f32 0.0, %v2976
        %v2978 = vpop.f32.mrb[0].mxu0
        %2979 = vmatprep.mubr.bf16.mxu0 0
        %2980 = vmatmul.mubr.bf16.gmra.mrb[0].mxu0 %v2837
        %v2981 = vpop.f32.mrb[0].mxu0
        %v2982 = vadd.f32 0.0, %v2981
        %v2983 = vpop.f32.mrb[0].mxu0
        %v2984 = vpop.f32.mrb[0].mxu0
        %v2985 = vadd.f32 0.0, %v2984
        %v2986 = vpop.f32.mrb[0].mxu0
        %2987 = vmatprep.mubr.bf16.mxu0 0
        %2988 = vmatmul.mubr.bf16.gmra.mrb[0].mxu0 %v2840
        %v2989 = vpop.f32.mrb[0].mxu0
        %v2990 = vadd.f32 0.0, %v2989
        %v2991 = vpop.f32.mrb[0].mxu0
        %v2992 = vpop.f32.mrb[0].mxu0
        %v2993 = vadd.f32 0.0, %v2992
        %v2994 = vpop.f32.mrb[0].mxu0
        %2995 = vmatprep.mubr.bf16.mxu0 0
        %2996 = vmatmul.mubr.bf16.gmra.mrb[0].mxu0 %v2843
        %v2997 = vpop.f32.mrb[0].mxu0
        %v2998 = vadd.f32 0.0, %v2997
        %v2999 = vpop.f32.mrb[0].mxu0
        %v3000 = vpop.f32.mrb[0].mxu0
        %v3001 = vadd.f32 0.0, %v3000
        %v3002 = vpop.f32.mrb[0].mxu0
        %3003 = vmatprep.mubr.bf16.mxu0 0
        %3004 = vmatmul.mubr.bf16.gmra.mrb[0].mxu0 %v2846
        %v3005 = vpop.f32.mrb[0].mxu0
        %v3006 = vadd.f32 0.0, %v3005
        %v3007 = vpop.f32.mrb[0].mxu0
        %v3008 = vpop.f32.mrb[0].mxu0
        %v3009 = vadd.f32 0.0, %v3008
        %v3010 = vpop.f32.mrb[0].mxu0
        %3011 = vdwg.mxu0
        %v3012 = vadd.f32 %v2686, %v2886
        %v3013 = vadd.f32 %v2687, %v2889
        %v3014 = vadd.f32 %v2688, %v2894
        %v3015 = vadd.f32 %v2689, %v2897
        %v3016 = vadd.f32 %v2690, %v2902
        %v3017 = vadd.f32 %v2691, %v2905
        %v3018 = vadd.f32 %v2692, %v2910
        %v3019 = vadd.f32 %v2693, %v2913
        %v3020 = vadd.f32 %v2694, %v2918
        %v3021 = vadd.f32 %v2695, %v2921
        %v3022 = vadd.f32 %v2696, %v2926
        %v3023 = vadd.f32 %v2697, %v2929
        %v3024 = vadd.f32 %v2698, %v2934
        %v3025 = vadd.f32 %v2699, %v2937
        %v3026 = vadd.f32 %v2700, %v2942
        %v3027 = vadd.f32 %v2701, %v2945
        %v3028 = vadd.f32 %v2702, %v2950
        %v3029 = vadd.f32 %v2703, %v2953
        %v3030 = vadd.f32 %v2704, %v2958
        %v3031 = vadd.f32 %v2705, %v2961
        %v3032 = vadd.f32 %v2706, %v2966
        %v3033 = vadd.f32 %v2707, %v2969
        %v3034 = vadd.f32 %v2708, %v2974
        %v3035 = vadd.f32 %v2709, %v2977
        %v3036 = vadd.f32 %v2710, %v2982
        %v3037 = vadd.f32 %v2711, %v2985
        %v3038 = vadd.f32 %v2712, %v2990
        %v3039 = vadd.f32 %v2713, %v2993
        %v3040 = vadd.f32 %v2714, %v2998
        %v3041 = vadd.f32 %v2715, %v3001
        %v3042 = vadd.f32 %v2716, %v3006
        %v3043 = vadd.f32 %v2717, %v3009
        %3044 = vst [vmem:[#allocation3] sm:$0xff] %v3012
        %3045 = vst [vmem:[#allocation3 + $0x8] sm:$0xff] %v3013
        %3046 = vst [vmem:[#allocation3 + $0x10] sm:$0xff] %v3014
        %3047 = vst [vmem:[#allocation3 + $0x18] sm:$0xff] %v3015
        %3048 = vst [vmem:[#allocation3 + $0x20] sm:$0xff] %v3016
        %3049 = vst [vmem:[#allocation3 + $0x28] sm:$0xff] %v3017
        %3050 = vst [vmem:[#allocation3 + $0x30] sm:$0xff] %v3018
        %3051 = vst [vmem:[#allocation3 + $0x38] sm:$0xff] %v3019
        %3052 = vst [vmem:[#allocation3 + $0x40] sm:$0xff] %v3020
        %3053 = vst [vmem:[#allocation3 + $0x48] sm:$0xff] %v3021
        %3054 = vst [vmem:[#allocation3 + $0x50] sm:$0xff] %v3022
        %3055 = vst [vmem:[#allocation3 + $0x58] sm:$0xff] %v3023
        %3056 = vst [vmem:[#allocation3 + $0x60] sm:$0xff] %v3024
        %3057 = vst [vmem:[#allocation3 + $0x68] sm:$0xff] %v3025
        %3058 = vst [vmem:[#allocation3 + $0x70] sm:$0xff] %v3026
        %3059 = vst [vmem:[#allocation3 + $0x78] sm:$0xff] %v3027
        %3060 = vst [vmem:[#allocation3 + $0x80] sm:$0xff] %v3028
        %3061 = vst [vmem:[#allocation3 + $0x88] sm:$0xff] %v3029
        %3062 = vst [vmem:[#allocation3 + $0x90] sm:$0xff] %v3030
        %3063 = vst [vmem:[#allocation3 + $0x98] sm:$0xff] %v3031
        %3064 = vst [vmem:[#allocation3 + $0xa0] sm:$0xff] %v3032
        %3065 = vst [vmem:[#allocation3 + $0xa8] sm:$0xff] %v3033
        %3066 = vst [vmem:[#allocation3 + $0xb0] sm:$0xff] %v3034
        %3067 = vst [vmem:[#allocation3 + $0xb8] sm:$0xff] %v3035
        %3068 = vst [vmem:[#allocation3 + $0xc0] sm:$0xff] %v3036
        %3069 = vst [vmem:[#allocation3 + $0xc8] sm:$0xff] %v3037
        %3070 = vst [vmem:[#allocation3 + $0xd0] sm:$0xff] %v3038
        %3071 = vst [vmem:[#allocation3 + $0xd8] sm:$0xff] %v3039
        %3072 = vst [vmem:[#allocation3 + $0xe0] sm:$0xff] %v3040
        %3073 = vst [vmem:[#allocation3 + $0xe8] sm:$0xff] %v3041
        %3074 = vst [vmem:[#allocation3 + $0xf0] sm:$0xff] %v3042
        %3075 = vst [vmem:[#allocation3 + $0xf8] sm:$0xff] %v3043
        %v3076 = vld [vmem:[%s751] sm:$0xf]
        %v3077 = vld [vmem:[%s751 + $0x4] sm:$0xf]
        %v3078 = vld [vmem:[%s751 + $0x8] sm:$0x1]
        %v3079 = vld [vmem:[%s751 + $0xc] sm:$0xf]
        %v3080 = vld [vmem:[%s751 + $0x10] sm:$0xf]
        %v3081 = vld [vmem:[%s751 + $0x14] sm:$0x1]
        %v3082 = vld [vmem:[%s751 + $0x18] sm:$0xf]
        %v3083 = vld [vmem:[%s751 + $0x1c] sm:$0xf]
        %v3084 = vld [vmem:[%s751 + $0x20] sm:$0x1]
        %v3085 = vld [vmem:[%s751 + $0x24] sm:$0xf]
        %v3086 = vld [vmem:[%s751 + $0x28] sm:$0xf]
        %v3087 = vld [vmem:[%s751 + $0x2c] sm:$0x1]
        %v3088 = vld [vmem:[%s751 + $0x30] sm:$0xf]
        %v3089 = vld [vmem:[%s751 + $0x34] sm:$0xf]
        %v3090 = vld [vmem:[%s751 + $0x38] sm:$0x1]
        %v3091 = vld [vmem:[%s751 + $0x3c] sm:$0xf]
        %v3092 = vld [vmem:[%s751 + $0x40] sm:$0xf]
        %v3093 = vld [vmem:[%s751 + $0x44] sm:$0x1]
        %v3094 = vld [vmem:[%s751 + $0x48] sm:$0xf]
        %v3095 = vld [vmem:[%s751 + $0x4c] sm:$0xf]
        %v3096 = vld [vmem:[%s751 + $0x50] sm:$0x1]
        %v3097 = vld [vmem:[%s751 + $0x54] sm:$0xf]
        %v3098 = vld [vmem:[%s751 + $0x58] sm:$0xf]
        %v3099 = vld [vmem:[%s751 + $0x5c] sm:$0x1]
        %v3100 = vld [vmem:[%s751 + $0x60] sm:$0xf]
        %v3101 = vld [vmem:[%s751 + $0x64] sm:$0xf]
        %v3102 = vld [vmem:[%s751 + $0x68] sm:$0x1]
        %v3103 = vld [vmem:[%s751 + $0x6c] sm:$0xf]
        %v3104 = vld [vmem:[%s751 + $0x70] sm:$0xf]
        %v3105 = vld [vmem:[%s751 + $0x74] sm:$0x1]
        %v3106 = vld [vmem:[%s751 + $0x78] sm:$0xf]
        %v3107 = vld [vmem:[%s751 + $0x7c] sm:$0xf]
        %v3108 = vld [vmem:[%s751 + $0x80] sm:$0x1]
        %v3109 = vld [vmem:[%s751 + $0x84] sm:$0xf]
        %v3110 = vld [vmem:[%s751 + $0x88] sm:$0xf]
        %v3111 = vld [vmem:[%s751 + $0x8c] sm:$0x1]
        %v3112 = vld [vmem:[%s751 + $0x90] sm:$0xf]
        %v3113 = vld [vmem:[%s751 + $0x94] sm:$0xf]
        %v3114 = vld [vmem:[%s751 + $0x98] sm:$0x1]
        %v3115 = vld [vmem:[%s751 + $0x9c] sm:$0xf]
        %v3116 = vld [vmem:[%s751 + $0xa0] sm:$0xf]
        %v3117 = vld [vmem:[%s751 + $0xa4] sm:$0x1]
        %v3118 = vld [vmem:[%s751 + $0xa8] sm:$0xf]
        %v3119 = vld [vmem:[%s751 + $0xac] sm:$0xf]
        %v3120 = vld [vmem:[%s751 + $0xb0] sm:$0x1]
        %v3121 = vld [vmem:[%s751 + $0xb4] sm:$0xf]
        %v3122 = vld [vmem:[%s751 + $0xb8] sm:$0xf]
        %v3123 = vld [vmem:[%s751 + $0xbc] sm:$0x1]
        %v3124 = vld [vmem:[#allocation3] sm:$0xff]
        %v3125 = vld [vmem:[#allocation3 + $0x8] sm:$0xff]
        %v3126 = vld [vmem:[#allocation3 + $0x10] sm:$0xff]
        %v3127 = vld [vmem:[#allocation3 + $0x18] sm:$0xff]
        %v3128 = vld [vmem:[#allocation3 + $0x20] sm:$0xff]
        %v3129 = vld [vmem:[#allocation3 + $0x28] sm:$0xff]
        %v3130 = vld [vmem:[#allocation3 + $0x30] sm:$0xff]
        %v3131 = vld [vmem:[#allocation3 + $0x38] sm:$0xff]
        %v3132 = vld [vmem:[#allocation3 + $0x40] sm:$0xff]
        %v3133 = vld [vmem:[#allocation3 + $0x48] sm:$0xff]
        %v3134 = vld [vmem:[#allocation3 + $0x50] sm:$0xff]
        %v3135 = vld [vmem:[#allocation3 + $0x58] sm:$0xff]
        %v3136 = vld [vmem:[#allocation3 + $0x60] sm:$0xff]
        %v3137 = vld [vmem:[#allocation3 + $0x68] sm:$0xff]
        %v3138 = vld [vmem:[#allocation3 + $0x70] sm:$0xff]
        %v3139 = vld [vmem:[#allocation3 + $0x78] sm:$0xff]
        %v3140 = vld [vmem:[#allocation3 + $0x80] sm:$0xff]
        %v3141 = vld [vmem:[#allocation3 + $0x88] sm:$0xff]
        %v3142 = vld [vmem:[#allocation3 + $0x90] sm:$0xff]
        %v3143 = vld [vmem:[#allocation3 + $0x98] sm:$0xff]
        %v3144 = vld [vmem:[#allocation3 + $0xa0] sm:$0xff]
        %v3145 = vld [vmem:[#allocation3 + $0xa8] sm:$0xff]
        %v3146 = vld [vmem:[#allocation3 + $0xb0] sm:$0xff]
        %v3147 = vld [vmem:[#allocation3 + $0xb8] sm:$0xff]
        %v3148 = vld [vmem:[#allocation3 + $0xc0] sm:$0xff]
        %v3149 = vld [vmem:[#allocation3 + $0xc8] sm:$0xff]
        %v3150 = vld [vmem:[#allocation3 + $0xd0] sm:$0xff]
        %v3151 = vld [vmem:[#allocation3 + $0xd8] sm:$0xff]
        %v3152 = vld [vmem:[#allocation3 + $0xe0] sm:$0xff]
        %v3153 = vld [vmem:[#allocation3 + $0xe8] sm:$0xff]
        %v3154 = vld [vmem:[#allocation3 + $0xf0] sm:$0xff]
        %v3155 = vld [vmem:[#allocation3 + $0xf8] sm:$0xff]
        %s3156 = scalar_lea.vmem %s302, 16
        %v3157 = vld [vmem:[%s3156] sm:$0xf]
        %v3159 = vshrl.u32 %v3076, 16
        %v3161 = vrot.slane %v3159, 4
        %v3162 = vshll.u32 %v3076, 16
        %v3164 = vrot.slane %v3162, 5
        %v3165 = vor.u32 %v3161, %v3164
        %v3166 = vrot.slane %v3165, 4
        %v3168 = vshll.u32 %v3077, 16
        %v3170 = vrot.slane %v3168, 5
        %v3171 = vsel %vm1376, %v3166, %v3170
        %v3172 = vshrl.u32 %v3077, 16
        %v3174 = vrot.slane %v3172, 4
        %v3175 = vor.u32 %v3174, %v3170
        %v3176 = vrot.slane %v3175, 4
        %v3178 = vshll.u32 %v3078, 16
        %v3180 = vrot.slane %v3178, 5
        %v3181 = vsel %vm1376, %v3176, %v3180
        %v3183 = vshrl.u32 %v3079, 16
        %v3185 = vrot.slane %v3183, 4
        %v3186 = vshll.u32 %v3079, 16
        %v3188 = vrot.slane %v3186, 5
        %v3189 = vor.u32 %v3185, %v3188
        %v3190 = vrot.slane %v3189, 4
        %v3192 = vshll.u32 %v3080, 16
        %v3194 = vrot.slane %v3192, 5
        %v3195 = vsel %vm1376, %v3190, %v3194
        %v3196 = vshrl.u32 %v3080, 16
        %v3198 = vrot.slane %v3196, 4
        %v3199 = vor.u32 %v3198, %v3194
        %v3200 = vrot.slane %v3199, 4
        %v3202 = vshll.u32 %v3081, 16
        %v3204 = vrot.slane %v3202, 5
        %v3205 = vsel %vm1376, %v3200, %v3204
        %v3207 = vshrl.u32 %v3082, 16
        %v3209 = vrot.slane %v3207, 4
        %v3210 = vshll.u32 %v3082, 16
        %v3212 = vrot.slane %v3210, 5
        %v3213 = vor.u32 %v3209, %v3212
        %v3214 = vrot.slane %v3213, 4
        %v3216 = vshll.u32 %v3083, 16
        %v3218 = vrot.slane %v3216, 5
        %v3219 = vsel %vm1376, %v3214, %v3218
        %v3220 = vshrl.u32 %v3083, 16
        %v3222 = vrot.slane %v3220, 4
        %v3223 = vor.u32 %v3222, %v3218
        %v3224 = vrot.slane %v3223, 4
        %v3226 = vshll.u32 %v3084, 16
        %v3228 = vrot.slane %v3226, 5
        %v3229 = vsel %vm1376, %v3224, %v3228
        %v3231 = vshrl.u32 %v3085, 16
        %v3233 = vrot.slane %v3231, 4
        %v3234 = vshll.u32 %v3085, 16
        %v3236 = vrot.slane %v3234, 5
        %v3237 = vor.u32 %v3233, %v3236
        %v3238 = vrot.slane %v3237, 4
        %v3240 = vshll.u32 %v3086, 16
        %v3242 = vrot.slane %v3240, 5
        %v3243 = vsel %vm1376, %v3238, %v3242
        %v3244 = vshrl.u32 %v3086, 16
        %v3246 = vrot.slane %v3244, 4
        %v3247 = vor.u32 %v3246, %v3242
        %v3248 = vrot.slane %v3247, 4
        %v3250 = vshll.u32 %v3087, 16
        %v3252 = vrot.slane %v3250, 5
        %v3253 = vsel %vm1376, %v3248, %v3252
        %v3255 = vshrl.u32 %v3088, 16
        %v3257 = vrot.slane %v3255, 4
        %v3258 = vshll.u32 %v3088, 16
        %v3260 = vrot.slane %v3258, 5
        %v3261 = vor.u32 %v3257, %v3260
        %v3262 = vrot.slane %v3261, 4
        %v3264 = vshll.u32 %v3089, 16
        %v3266 = vrot.slane %v3264, 5
        %v3267 = vsel %vm1376, %v3262, %v3266
        %v3268 = vshrl.u32 %v3089, 16
        %v3270 = vrot.slane %v3268, 4
        %v3271 = vor.u32 %v3270, %v3266
        %v3272 = vrot.slane %v3271, 4
        %v3274 = vshll.u32 %v3090, 16
        %v3276 = vrot.slane %v3274, 5
        %v3277 = vsel %vm1376, %v3272, %v3276
        %v3279 = vshrl.u32 %v3091, 16
        %v3281 = vrot.slane %v3279, 4
        %v3282 = vshll.u32 %v3091, 16
        %v3284 = vrot.slane %v3282, 5
        %v3285 = vor.u32 %v3281, %v3284
        %v3286 = vrot.slane %v3285, 4
        %v3288 = vshll.u32 %v3092, 16
        %v3290 = vrot.slane %v3288, 5
        %v3291 = vsel %vm1376, %v3286, %v3290
        %v3292 = vshrl.u32 %v3092, 16
        %v3294 = vrot.slane %v3292, 4
        %v3295 = vor.u32 %v3294, %v3290
        %v3296 = vrot.slane %v3295, 4
        %v3298 = vshll.u32 %v3093, 16
        %v3300 = vrot.slane %v3298, 5
        %v3301 = vsel %vm1376, %v3296, %v3300
        %v3303 = vshrl.u32 %v3094, 16
        %v3305 = vrot.slane %v3303, 4
        %v3306 = vshll.u32 %v3094, 16
        %v3308 = vrot.slane %v3306, 5
        %v3309 = vor.u32 %v3305, %v3308
        %v3310 = vrot.slane %v3309, 4
        %v3312 = vshll.u32 %v3095, 16
        %v3314 = vrot.slane %v3312, 5
        %v3315 = vsel %vm1376, %v3310, %v3314
        %v3316 = vshrl.u32 %v3095, 16
        %v3318 = vrot.slane %v3316, 4
        %v3319 = vor.u32 %v3318, %v3314
        %v3320 = vrot.slane %v3319, 4
        %v3322 = vshll.u32 %v3096, 16
        %v3324 = vrot.slane %v3322, 5
        %v3325 = vsel %vm1376, %v3320, %v3324
        %v3327 = vshrl.u32 %v3097, 16
        %v3329 = vrot.slane %v3327, 4
        %v3330 = vshll.u32 %v3097, 16
        %v3332 = vrot.slane %v3330, 5
        %v3333 = vor.u32 %v3329, %v3332
        %v3334 = vrot.slane %v3333, 4
        %v3336 = vshll.u32 %v3098, 16
        %v3338 = vrot.slane %v3336, 5
        %v3339 = vsel %vm1376, %v3334, %v3338
        %v3340 = vshrl.u32 %v3098, 16
        %v3342 = vrot.slane %v3340, 4
        %v3343 = vor.u32 %v3342, %v3338
        %v3344 = vrot.slane %v3343, 4
        %v3346 = vshll.u32 %v3099, 16
        %v3348 = vrot.slane %v3346, 5
        %v3349 = vsel %vm1376, %v3344, %v3348
        %v3351 = vshrl.u32 %v3100, 16
        %v3353 = vrot.slane %v3351, 4
        %v3354 = vshll.u32 %v3100, 16
        %v3356 = vrot.slane %v3354, 5
        %v3357 = vor.u32 %v3353, %v3356
        %v3358 = vrot.slane %v3357, 4
        %v3360 = vshll.u32 %v3101, 16
        %v3362 = vrot.slane %v3360, 5
        %v3363 = vsel %vm1376, %v3358, %v3362
        %v3364 = vshrl.u32 %v3101, 16
        %v3366 = vrot.slane %v3364, 4
        %v3367 = vor.u32 %v3366, %v3362
        %v3368 = vrot.slane %v3367, 4
        %v3370 = vshll.u32 %v3102, 16
        %v3372 = vrot.slane %v3370, 5
        %v3373 = vsel %vm1376, %v3368, %v3372
        %v3375 = vshrl.u32 %v3103, 16
        %v3377 = vrot.slane %v3375, 4
        %v3378 = vshll.u32 %v3103, 16
        %v3380 = vrot.slane %v3378, 5
        %v3381 = vor.u32 %v3377, %v3380
        %v3382 = vrot.slane %v3381, 4
        %v3384 = vshll.u32 %v3104, 16
        %v3386 = vrot.slane %v3384, 5
        %v3387 = vsel %vm1376, %v3382, %v3386
        %v3388 = vshrl.u32 %v3104, 16
        %v3390 = vrot.slane %v3388, 4
        %v3391 = vor.u32 %v3390, %v3386
        %v3392 = vrot.slane %v3391, 4
        %v3394 = vshll.u32 %v3105, 16
        %v3396 = vrot.slane %v3394, 5
        %v3397 = vsel %vm1376, %v3392, %v3396
        %v3399 = vshrl.u32 %v3106, 16
        %v3401 = vrot.slane %v3399, 4
        %v3402 = vshll.u32 %v3106, 16
        %v3404 = vrot.slane %v3402, 5
        %v3405 = vor.u32 %v3401, %v3404
        %v3406 = vrot.slane %v3405, 4
        %v3408 = vshll.u32 %v3107, 16
        %v3410 = vrot.slane %v3408, 5
        %v3411 = vsel %vm1376, %v3406, %v3410
        %v3412 = vshrl.u32 %v3107, 16
        %v3414 = vrot.slane %v3412, 4
        %v3415 = vor.u32 %v3414, %v3410
        %v3416 = vrot.slane %v3415, 4
        %v3418 = vshll.u32 %v3108, 16
        %v3420 = vrot.slane %v3418, 5
        %v3421 = vsel %vm1376, %v3416, %v3420
        %v3423 = vshrl.u32 %v3109, 16
        %v3425 = vrot.slane %v3423, 4
        %v3426 = vshll.u32 %v3109, 16
        %v3428 = vrot.slane %v3426, 5
        %v3429 = vor.u32 %v3425, %v3428
        %v3430 = vrot.slane %v3429, 4
        %v3432 = vshll.u32 %v3110, 16
        %v3434 = vrot.slane %v3432, 5
        %v3435 = vsel %vm1376, %v3430, %v3434
        %v3436 = vshrl.u32 %v3110, 16
        %v3438 = vrot.slane %v3436, 4
        %v3439 = vor.u32 %v3438, %v3434
        %v3440 = vrot.slane %v3439, 4
        %v3442 = vshll.u32 %v3111, 16
        %v3444 = vrot.slane %v3442, 5
        %v3445 = vsel %vm1376, %v3440, %v3444
        %v3447 = vshrl.u32 %v3112, 16
        %v3449 = vrot.slane %v3447, 4
        %v3450 = vshll.u32 %v3112, 16
        %v3452 = vrot.slane %v3450, 5
        %v3453 = vor.u32 %v3449, %v3452
        %v3454 = vrot.slane %v3453, 4
        %v3456 = vshll.u32 %v3113, 16
        %v3458 = vrot.slane %v3456, 5
        %v3459 = vsel %vm1376, %v3454, %v3458
        %v3460 = vshrl.u32 %v3113, 16
        %v3462 = vrot.slane %v3460, 4
        %v3463 = vor.u32 %v3462, %v3458
        %v3464 = vrot.slane %v3463, 4
        %v3466 = vshll.u32 %v3114, 16
        %v3468 = vrot.slane %v3466, 5
        %v3469 = vsel %vm1376, %v3464, %v3468
        %v3471 = vshrl.u32 %v3115, 16
        %v3473 = vrot.slane %v3471, 4
        %v3474 = vshll.u32 %v3115, 16
        %v3476 = vrot.slane %v3474, 5
        %v3477 = vor.u32 %v3473, %v3476
        %v3478 = vrot.slane %v3477, 4
        %v3480 = vshll.u32 %v3116, 16
        %v3482 = vrot.slane %v3480, 5
        %v3483 = vsel %vm1376, %v3478, %v3482
        %v3484 = vshrl.u32 %v3116, 16
        %v3486 = vrot.slane %v3484, 4
        %v3487 = vor.u32 %v3486, %v3482
        %v3488 = vrot.slane %v3487, 4
        %v3490 = vshll.u32 %v3117, 16
        %v3492 = vrot.slane %v3490, 5
        %v3493 = vsel %vm1376, %v3488, %v3492
        %v3495 = vshrl.u32 %v3118, 16
        %v3497 = vrot.slane %v3495, 4
        %v3498 = vshll.u32 %v3118, 16
        %v3500 = vrot.slane %v3498, 5
        %v3501 = vor.u32 %v3497, %v3500
        %v3502 = vrot.slane %v3501, 4
        %v3504 = vshll.u32 %v3119, 16
        %v3506 = vrot.slane %v3504, 5
        %v3507 = vsel %vm1376, %v3502, %v3506
        %v3508 = vshrl.u32 %v3119, 16
        %v3510 = vrot.slane %v3508, 4
        %v3511 = vor.u32 %v3510, %v3506
        %v3512 = vrot.slane %v3511, 4
        %v3514 = vshll.u32 %v3120, 16
        %v3516 = vrot.slane %v3514, 5
        %v3517 = vsel %vm1376, %v3512, %v3516
        %v3519 = vshrl.u32 %v3121, 16
        %v3521 = vrot.slane %v3519, 4
        %v3522 = vshll.u32 %v3121, 16
        %v3524 = vrot.slane %v3522, 5
        %v3525 = vor.u32 %v3521, %v3524
        %v3526 = vrot.slane %v3525, 4
        %v3528 = vshll.u32 %v3122, 16
        %v3530 = vrot.slane %v3528, 5
        %v3531 = vsel %vm1376, %v3526, %v3530
        %v3532 = vshrl.u32 %v3122, 16
        %v3534 = vrot.slane %v3532, 4
        %v3535 = vor.u32 %v3534, %v3530
        %v3536 = vrot.slane %v3535, 4
        %v3538 = vshll.u32 %v3123, 16
        %v3540 = vrot.slane %v3538, 5
        %v3541 = vsel %vm1376, %v3536, %v3540
        %v3542 = vunpack.c.l.b16 %v3171
        %v3543 = vunpack.c.l.b16 %v3181
        %v3544 = vunpack.c.l.b16 %v3195
        %v3545 = vunpack.c.l.b16 %v3205
        %v3546 = vunpack.c.l.b16 %v3219
        %v3547 = vunpack.c.l.b16 %v3229
        %v3548 = vunpack.c.l.b16 %v3243
        %v3549 = vunpack.c.l.b16 %v3253
        %v3550 = vunpack.c.l.b16 %v3267
        %v3551 = vunpack.c.l.b16 %v3277
        %v3552 = vunpack.c.l.b16 %v3291
        %v3553 = vunpack.c.l.b16 %v3301
        %v3554 = vunpack.c.l.b16 %v3315
        %v3555 = vunpack.c.l.b16 %v3325
        %v3556 = vunpack.c.l.b16 %v3339
        %v3557 = vunpack.c.l.b16 %v3349
        %v3558 = vunpack.c.l.b16 %v3363
        %v3559 = vunpack.c.l.b16 %v3373
        %v3560 = vunpack.c.l.b16 %v3387
        %v3561 = vunpack.c.l.b16 %v3397
        %v3562 = vunpack.c.l.b16 %v3411
        %v3563 = vunpack.c.l.b16 %v3421
        %v3564 = vunpack.c.l.b16 %v3435
        %v3565 = vunpack.c.l.b16 %v3445
        %v3566 = vunpack.c.l.b16 %v3459
        %v3567 = vunpack.c.l.b16 %v3469
        %v3568 = vunpack.c.l.b16 %v3483
        %v3569 = vunpack.c.l.b16 %v3493
        %v3570 = vunpack.c.l.b16 %v3507
        %v3571 = vunpack.c.l.b16 %v3517
        %v3572 = vunpack.c.l.b16 %v3531
        %v3573 = vunpack.c.l.b16 %v3541
        %v3574 = vpack.c.b16 %v3543, %v3542
        %v3575 = vpack.c.b16 %v3545, %v3544
        %v3576 = vpack.c.b16 %v3547, %v3546
        %v3577 = vpack.c.b16 %v3549, %v3548
        %v3578 = vpack.c.b16 %v3551, %v3550
        %v3579 = vpack.c.b16 %v3553, %v3552
        %v3580 = vpack.c.b16 %v3555, %v3554
        %v3581 = vpack.c.b16 %v3557, %v3556
        %v3582 = vpack.c.b16 %v3559, %v3558
        %v3583 = vpack.c.b16 %v3561, %v3560
        %v3584 = vpack.c.b16 %v3563, %v3562
        %v3585 = vpack.c.b16 %v3565, %v3564
        %v3586 = vpack.c.b16 %v3567, %v3566
        %v3587 = vpack.c.b16 %v3569, %v3568
        %v3588 = vpack.c.b16 %v3571, %v3570
        %v3589 = vpack.c.b16 %v3573, %v3572
        %v3591 = vsel %vm1014, %v3574, 0
        %v3594 = vsel %vm1014, %v3575, 0
        %v3597 = vsel %vm1014, %v3576, 0
        %v3600 = vsel %vm1014, %v3577, 0
        %v3603 = vsel %vm1014, %v3578, 0
        %v3606 = vsel %vm1014, %v3579, 0
        %v3609 = vsel %vm1014, %v3580, 0
        %v3612 = vsel %vm1014, %v3581, 0
        %v3615 = vsel %vm1014, %v3582, 0
        %v3618 = vsel %vm1014, %v3583, 0
        %v3621 = vsel %vm1014, %v3584, 0
        %v3624 = vsel %vm1014, %v3585, 0
        %v3627 = vsel %vm1014, %v3586, 0
        %v3630 = vsel %vm1014, %v3587, 0
        %v3633 = vsel %vm1014, %v3588, 0
        %v3636 = vsel %vm1014, %v3589, 0
        %v3639 = vsel %vm1063, %v3157, 0
        %3641 = vmatprep.subr.bf16.mxu0 0
        %3642 = vmatpush1.bf16.msra.mxu0 %v3639
        %3643 = vmatprep.subr.bf16.mxu0 0
        %3644 = vmatpush1.bf16.msra.mxu0 0
        %3645 = vmatprep.subr.bf16.mxu0 0
        %3646 = vmatpush1.bf16.msra.mxu0 0
        %3647 = vmatprep.subr.bf16.mxu0 0
        %3648 = vmatpush1.bf16.msra.mxu0 0
        %3649 = vmatprep.subr.bf16.mxu0 0
        %3650 = vmatpush1.bf16.msra.mxu0 0
        %3651 = vmatprep.subr.bf16.mxu0 0
        %3652 = vmatpush1.bf16.msra.mxu0 0
        %3653 = vmatprep.subr.bf16.mxu0 0
        %3654 = vmatpush1.bf16.msra.mxu0 0
        %3655 = vmatprep.subr.bf16.mxu0 0
        %3656 = vmatpush1.bf16.msra.mxu0 0
        %3657 = vmatprep.subr.bf16.mxu0 0
        %3658 = vmatpush1.bf16.msra.mxu0 0
        %3659 = vmatprep.subr.bf16.mxu0 0
        %3660 = vmatpush1.bf16.msra.mxu0 0
        %3661 = vmatprep.subr.bf16.mxu0 0
        %3662 = vmatpush1.bf16.msra.mxu0 0
        %3663 = vmatprep.subr.bf16.mxu0 0
        %3664 = vmatpush1.bf16.msra.mxu0 0
        %3665 = vmatprep.subr.bf16.mxu0 0
        %3666 = vmatpush1.bf16.msra.mxu0 0
        %3667 = vmatprep.subr.bf16.mxu0 0
        %3668 = vmatpush1.bf16.msra.mxu0 0
        %3669 = vmatprep.subr.bf16.mxu0 0
        %3670 = vmatpush1.bf16.msra.mxu0 0
        %3671 = vmatprep.subr.bf16.mxu0 0
        %3672 = vmatpush1.bf16.msra.mxu0 0
        %3673 = vmatprep.mubr.bf16.mxu0 0
        %3674 = vmatmul.mubr.bf16.gmra.mrb[0].mxu0 %v3591
        %v3675 = vpop.f32.mrb[0].mxu0
        %v3676 = vadd.f32 0.0, %v3675
        %v3677 = vpop.f32.mrb[0].mxu0
        %v3678 = vpop.f32.mrb[0].mxu0
        %v3679 = vadd.f32 0.0, %v3678
        %v3680 = vpop.f32.mrb[0].mxu0
        %3681 = vmatprep.mubr.bf16.mxu0 0
        %3682 = vmatmul.mubr.bf16.gmra.mrb[0].mxu0 %v3594
        %v3683 = vpop.f32.mrb[0].mxu0
        %v3684 = vadd.f32 0.0, %v3683
        %v3685 = vpop.f32.mrb[0].mxu0
        %v3686 = vpop.f32.mrb[0].mxu0
        %v3687 = vadd.f32 0.0, %v3686
        %v3688 = vpop.f32.mrb[0].mxu0
        %3689 = vmatprep.mubr.bf16.mxu0 0
        %3690 = vmatmul.mubr.bf16.gmra.mrb[0].mxu0 %v3597
        %v3691 = vpop.f32.mrb[0].mxu0
        %v3692 = vadd.f32 0.0, %v3691
        %v3693 = vpop.f32.mrb[0].mxu0
        %v3694 = vpop.f32.mrb[0].mxu0
        %v3695 = vadd.f32 0.0, %v3694
        %v3696 = vpop.f32.mrb[0].mxu0
        %3697 = vmatprep.mubr.bf16.mxu0 0
        %3698 = vmatmul.mubr.bf16.gmra.mrb[0].mxu0 %v3600
        %v3699 = vpop.f32.mrb[0].mxu0
        %v3700 = vadd.f32 0.0, %v3699
        %v3701 = vpop.f32.mrb[0].mxu0
        %v3702 = vpop.f32.mrb[0].mxu0
        %v3703 = vadd.f32 0.0, %v3702
        %v3704 = vpop.f32.mrb[0].mxu0
        %3705 = vmatprep.mubr.bf16.mxu0 0
        %3706 = vmatmul.mubr.bf16.gmra.mrb[0].mxu0 %v3603
        %v3707 = vpop.f32.mrb[0].mxu0
        %v3708 = vadd.f32 0.0, %v3707
        %v3709 = vpop.f32.mrb[0].mxu0
        %v3710 = vpop.f32.mrb[0].mxu0
        %v3711 = vadd.f32 0.0, %v3710
        %v3712 = vpop.f32.mrb[0].mxu0
        %3713 = vmatprep.mubr.bf16.mxu0 0
        %3714 = vmatmul.mubr.bf16.gmra.mrb[0].mxu0 %v3606
        %v3715 = vpop.f32.mrb[0].mxu0
        %v3716 = vadd.f32 0.0, %v3715
        %v3717 = vpop.f32.mrb[0].mxu0
        %v3718 = vpop.f32.mrb[0].mxu0
        %v3719 = vadd.f32 0.0, %v3718
        %v3720 = vpop.f32.mrb[0].mxu0
        %3721 = vmatprep.mubr.bf16.mxu0 0
        %3722 = vmatmul.mubr.bf16.gmra.mrb[0].mxu0 %v3609
        %v3723 = vpop.f32.mrb[0].mxu0
        %v3724 = vadd.f32 0.0, %v3723
        %v3725 = vpop.f32.mrb[0].mxu0
        %v3726 = vpop.f32.mrb[0].mxu0
        %v3727 = vadd.f32 0.0, %v3726
        %v3728 = vpop.f32.mrb[0].mxu0
        %3729 = vmatprep.mubr.bf16.mxu0 0
        %3730 = vmatmul.mubr.bf16.gmra.mrb[0].mxu0 %v3612
        %v3731 = vpop.f32.mrb[0].mxu0
        %v3732 = vadd.f32 0.0, %v3731
        %v3733 = vpop.f32.mrb[0].mxu0
        %v3734 = vpop.f32.mrb[0].mxu0
        %v3735 = vadd.f32 0.0, %v3734
        %v3736 = vpop.f32.mrb[0].mxu0
        %3737 = vmatprep.mubr.bf16.mxu0 0
        %3738 = vmatmul.mubr.bf16.gmra.mrb[0].mxu0 %v3615
        %v3739 = vpop.f32.mrb[0].mxu0
        %v3740 = vadd.f32 0.0, %v3739
        %v3741 = vpop.f32.mrb[0].mxu0
        %v3742 = vpop.f32.mrb[0].mxu0
        %v3743 = vadd.f32 0.0, %v3742
        %v3744 = vpop.f32.mrb[0].mxu0
        %3745 = vmatprep.mubr.bf16.mxu0 0
        %3746 = vmatmul.mubr.bf16.gmra.mrb[0].mxu0 %v3618
        %v3747 = vpop.f32.mrb[0].mxu0
        %v3748 = vadd.f32 0.0, %v3747
        %v3749 = vpop.f32.mrb[0].mxu0
        %v3750 = vpop.f32.mrb[0].mxu0
        %v3751 = vadd.f32 0.0, %v3750
        %v3752 = vpop.f32.mrb[0].mxu0
        %3753 = vmatprep.mubr.bf16.mxu0 0
        %3754 = vmatmul.mubr.bf16.gmra.mrb[0].mxu0 %v3621
        %v3755 = vpop.f32.mrb[0].mxu0
        %v3756 = vadd.f32 0.0, %v3755
        %v3757 = vpop.f32.mrb[0].mxu0
        %v3758 = vpop.f32.mrb[0].mxu0
        %v3759 = vadd.f32 0.0, %v3758
        %v3760 = vpop.f32.mrb[0].mxu0
        %3761 = vmatprep.mubr.bf16.mxu0 0
        %3762 = vmatmul.mubr.bf16.gmra.mrb[0].mxu0 %v3624
        %v3763 = vpop.f32.mrb[0].mxu0
        %v3764 = vadd.f32 0.0, %v3763
        %v3765 = vpop.f32.mrb[0].mxu0
        %v3766 = vpop.f32.mrb[0].mxu0
        %v3767 = vadd.f32 0.0, %v3766
        %v3768 = vpop.f32.mrb[0].mxu0
        %3769 = vmatprep.mubr.bf16.mxu0 0
        %3770 = vmatmul.mubr.bf16.gmra.mrb[0].mxu0 %v3627
        %v3771 = vpop.f32.mrb[0].mxu0
        %v3772 = vadd.f32 0.0, %v3771
        %v3773 = vpop.f32.mrb[0].mxu0
        %v3774 = vpop.f32.mrb[0].mxu0
        %v3775 = vadd.f32 0.0, %v3774
        %v3776 = vpop.f32.mrb[0].mxu0
        %3777 = vmatprep.mubr.bf16.mxu0 0
        %3778 = vmatmul.mubr.bf16.gmra.mrb[0].mxu0 %v3630
        %v3779 = vpop.f32.mrb[0].mxu0
        %v3780 = vadd.f32 0.0, %v3779
        %v3781 = vpop.f32.mrb[0].mxu0
        %v3782 = vpop.f32.mrb[0].mxu0
        %v3783 = vadd.f32 0.0, %v3782
        %v3784 = vpop.f32.mrb[0].mxu0
        %3785 = vmatprep.mubr.bf16.mxu0 0
        %3786 = vmatmul.mubr.bf16.gmra.mrb[0].mxu0 %v3633
        %v3787 = vpop.f32.mrb[0].mxu0
        %v3788 = vadd.f32 0.0, %v3787
        %v3789 = vpop.f32.mrb[0].mxu0
        %v3790 = vpop.f32.mrb[0].mxu0
        %v3791 = vadd.f32 0.0, %v3790
        %v3792 = vpop.f32.mrb[0].mxu0
        %3793 = vmatprep.mubr.bf16.mxu0 0
        %3794 = vmatmul.mubr.bf16.gmra.mrb[0].mxu0 %v3636
        %v3795 = vpop.f32.mrb[0].mxu0
        %v3796 = vadd.f32 0.0, %v3795
        %v3797 = vpop.f32.mrb[0].mxu0
        %v3798 = vpop.f32.mrb[0].mxu0
        %v3799 = vadd.f32 0.0, %v3798
        %v3800 = vpop.f32.mrb[0].mxu0
        %3801 = vdwg.mxu0
        %v3802 = vadd.f32 %v3124, %v3676
        %v3803 = vadd.f32 %v3125, %v3679
        %v3804 = vadd.f32 %v3126, %v3684
        %v3805 = vadd.f32 %v3127, %v3687
        %v3806 = vadd.f32 %v3128, %v3692
        %v3807 = vadd.f32 %v3129, %v3695
        %v3808 = vadd.f32 %v3130, %v3700
        %v3809 = vadd.f32 %v3131, %v3703
        %v3810 = vadd.f32 %v3132, %v3708
        %v3811 = vadd.f32 %v3133, %v3711
        %v3812 = vadd.f32 %v3134, %v3716
        %v3813 = vadd.f32 %v3135, %v3719
        %v3814 = vadd.f32 %v3136, %v3724
        %v3815 = vadd.f32 %v3137, %v3727
        %v3816 = vadd.f32 %v3138, %v3732
        %v3817 = vadd.f32 %v3139, %v3735
        %v3818 = vadd.f32 %v3140, %v3740
        %v3819 = vadd.f32 %v3141, %v3743
        %v3820 = vadd.f32 %v3142, %v3748
        %v3821 = vadd.f32 %v3143, %v3751
        %v3822 = vadd.f32 %v3144, %v3756
        %v3823 = vadd.f32 %v3145, %v3759
        %v3824 = vadd.f32 %v3146, %v3764
        %v3825 = vadd.f32 %v3147, %v3767
        %v3826 = vadd.f32 %v3148, %v3772
        %v3827 = vadd.f32 %v3149, %v3775
        %v3828 = vadd.f32 %v3150, %v3780
        %v3829 = vadd.f32 %v3151, %v3783
        %v3830 = vadd.f32 %v3152, %v3788
        %v3831 = vadd.f32 %v3153, %v3791
        %v3832 = vadd.f32 %v3154, %v3796
        %v3833 = vadd.f32 %v3155, %v3799
        %3834 = vst [vmem:[#allocation3] sm:$0xff] %v3802
        %3835 = vst [vmem:[#allocation3 + $0x8] sm:$0xff] %v3803
        %3836 = vst [vmem:[#allocation3 + $0x10] sm:$0xff] %v3804
        %3837 = vst [vmem:[#allocation3 + $0x18] sm:$0xff] %v3805
        %3838 = vst [vmem:[#allocation3 + $0x20] sm:$0xff] %v3806
        %3839 = vst [vmem:[#allocation3 + $0x28] sm:$0xff] %v3807
        %3840 = vst [vmem:[#allocation3 + $0x30] sm:$0xff] %v3808
        %3841 = vst [vmem:[#allocation3 + $0x38] sm:$0xff] %v3809
        %3842 = vst [vmem:[#allocation3 + $0x40] sm:$0xff] %v3810
        %3843 = vst [vmem:[#allocation3 + $0x48] sm:$0xff] %v3811
        %3844 = vst [vmem:[#allocation3 + $0x50] sm:$0xff] %v3812
        %3845 = vst [vmem:[#allocation3 + $0x58] sm:$0xff] %v3813
        %3846 = vst [vmem:[#allocation3 + $0x60] sm:$0xff] %v3814
        %3847 = vst [vmem:[#allocation3 + $0x68] sm:$0xff] %v3815
        %3848 = vst [vmem:[#allocation3 + $0x70] sm:$0xff] %v3816
        %3849 = vst [vmem:[#allocation3 + $0x78] sm:$0xff] %v3817
        %3850 = vst [vmem:[#allocation3 + $0x80] sm:$0xff] %v3818
        %3851 = vst [vmem:[#allocation3 + $0x88] sm:$0xff] %v3819
        %3852 = vst [vmem:[#allocation3 + $0x90] sm:$0xff] %v3820
        %3853 = vst [vmem:[#allocation3 + $0x98] sm:$0xff] %v3821
        %3854 = vst [vmem:[#allocation3 + $0xa0] sm:$0xff] %v3822
        %3855 = vst [vmem:[#allocation3 + $0xa8] sm:$0xff] %v3823
        %3856 = vst [vmem:[#allocation3 + $0xb0] sm:$0xff] %v3824
        %3857 = vst [vmem:[#allocation3 + $0xb8] sm:$0xff] %v3825
        %3858 = vst [vmem:[#allocation3 + $0xc0] sm:$0xff] %v3826
        %3859 = vst [vmem:[#allocation3 + $0xc8] sm:$0xff] %v3827
        %3860 = vst [vmem:[#allocation3 + $0xd0] sm:$0xff] %v3828
        %3861 = vst [vmem:[#allocation3 + $0xd8] sm:$0xff] %v3829
        %3862 = vst [vmem:[#allocation3 + $0xe0] sm:$0xff] %v3830
        %3863 = vst [vmem:[#allocation3 + $0xe8] sm:$0xff] %v3831
        %3864 = vst [vmem:[#allocation3 + $0xf0] sm:$0xff] %v3832
        %3865 = vst [vmem:[#allocation3 + $0xf8] sm:$0xff] %v3833
        %v3866 = vld [vmem:[%s751] sm:$0xe]
        %v3867 = vld [vmem:[%s751 + $0x4] sm:$0xf]
        %v3868 = vld [vmem:[%s751 + $0x8] sm:$0x1]
        %v3869 = vld [vmem:[%s751 + $0xc] sm:$0xe]
        %v3870 = vld [vmem:[%s751 + $0x10] sm:$0xf]
        %v3871 = vld [vmem:[%s751 + $0x14] sm:$0x1]
        %v3872 = vld [vmem:[%s751 + $0x18] sm:$0xe]
        %v3873 = vld [vmem:[%s751 + $0x1c] sm:$0xf]
        %v3874 = vld [vmem:[%s751 + $0x20] sm:$0x1]
        %v3875 = vld [vmem:[%s751 + $0x24] sm:$0xe]
        %v3876 = vld [vmem:[%s751 + $0x28] sm:$0xf]
        %v3877 = vld [vmem:[%s751 + $0x2c] sm:$0x1]
        %v3878 = vld [vmem:[%s751 + $0x30] sm:$0xe]
        %v3879 = vld [vmem:[%s751 + $0x34] sm:$0xf]
        %v3880 = vld [vmem:[%s751 + $0x38] sm:$0x1]
        %v3881 = vld [vmem:[%s751 + $0x3c] sm:$0xe]
        %v3882 = vld [vmem:[%s751 + $0x40] sm:$0xf]
        %v3883 = vld [vmem:[%s751 + $0x44] sm:$0x1]
        %v3884 = vld [vmem:[%s751 + $0x48] sm:$0xe]
        %v3885 = vld [vmem:[%s751 + $0x4c] sm:$0xf]
        %v3886 = vld [vmem:[%s751 + $0x50] sm:$0x1]
        %v3887 = vld [vmem:[%s751 + $0x54] sm:$0xe]
        %v3888 = vld [vmem:[%s751 + $0x58] sm:$0xf]
        %v3889 = vld [vmem:[%s751 + $0x5c] sm:$0x1]
        %v3890 = vld [vmem:[%s751 + $0x60] sm:$0xe]
        %v3891 = vld [vmem:[%s751 + $0x64] sm:$0xf]
        %v3892 = vld [vmem:[%s751 + $0x68] sm:$0x1]
        %v3893 = vld [vmem:[%s751 + $0x6c] sm:$0xe]
        %v3894 = vld [vmem:[%s751 + $0x70] sm:$0xf]
        %v3895 = vld [vmem:[%s751 + $0x74] sm:$0x1]
        %v3896 = vld [vmem:[%s751 + $0x78] sm:$0xe]
        %v3897 = vld [vmem:[%s751 + $0x7c] sm:$0xf]
        %v3898 = vld [vmem:[%s751 + $0x80] sm:$0x1]
        %v3899 = vld [vmem:[%s751 + $0x84] sm:$0xe]
        %v3900 = vld [vmem:[%s751 + $0x88] sm:$0xf]
        %v3901 = vld [vmem:[%s751 + $0x8c] sm:$0x1]
        %v3902 = vld [vmem:[%s751 + $0x90] sm:$0xe]
        %v3903 = vld [vmem:[%s751 + $0x94] sm:$0xf]
        %v3904 = vld [vmem:[%s751 + $0x98] sm:$0x1]
        %v3905 = vld [vmem:[%s751 + $0x9c] sm:$0xe]
        %v3906 = vld [vmem:[%s751 + $0xa0] sm:$0xf]
        %v3907 = vld [vmem:[%s751 + $0xa4] sm:$0x1]
        %v3908 = vld [vmem:[%s751 + $0xa8] sm:$0xe]
        %v3909 = vld [vmem:[%s751 + $0xac] sm:$0xf]
        %v3910 = vld [vmem:[%s751 + $0xb0] sm:$0x1]
        %v3911 = vld [vmem:[%s751 + $0xb4] sm:$0xe]
        %v3912 = vld [vmem:[%s751 + $0xb8] sm:$0xf]
        %v3913 = vld [vmem:[%s751 + $0xbc] sm:$0x1]
        %v3914 = vld [vmem:[#allocation3] sm:$0xff]
        %v3915 = vld [vmem:[#allocation3 + $0x8] sm:$0xff]
        %v3916 = vld [vmem:[#allocation3 + $0x10] sm:$0xff]
        %v3917 = vld [vmem:[#allocation3 + $0x18] sm:$0xff]
        %v3918 = vld [vmem:[#allocation3 + $0x20] sm:$0xff]
        %v3919 = vld [vmem:[#allocation3 + $0x28] sm:$0xff]
        %v3920 = vld [vmem:[#allocation3 + $0x30] sm:$0xff]
        %v3921 = vld [vmem:[#allocation3 + $0x38] sm:$0xff]
        %v3922 = vld [vmem:[#allocation3 + $0x40] sm:$0xff]
        %v3923 = vld [vmem:[#allocation3 + $0x48] sm:$0xff]
        %v3924 = vld [vmem:[#allocation3 + $0x50] sm:$0xff]
        %v3925 = vld [vmem:[#allocation3 + $0x58] sm:$0xff]
        %v3926 = vld [vmem:[#allocation3 + $0x60] sm:$0xff]
        %v3927 = vld [vmem:[#allocation3 + $0x68] sm:$0xff]
        %v3928 = vld [vmem:[#allocation3 + $0x70] sm:$0xff]
        %v3929 = vld [vmem:[#allocation3 + $0x78] sm:$0xff]
        %v3930 = vld [vmem:[#allocation3 + $0x80] sm:$0xff]
        %v3931 = vld [vmem:[#allocation3 + $0x88] sm:$0xff]
        %v3932 = vld [vmem:[#allocation3 + $0x90] sm:$0xff]
        %v3933 = vld [vmem:[#allocation3 + $0x98] sm:$0xff]
        %v3934 = vld [vmem:[#allocation3 + $0xa0] sm:$0xff]
        %v3935 = vld [vmem:[#allocation3 + $0xa8] sm:$0xff]
        %v3936 = vld [vmem:[#allocation3 + $0xb0] sm:$0xff]
        %v3937 = vld [vmem:[#allocation3 + $0xb8] sm:$0xff]
        %v3938 = vld [vmem:[#allocation3 + $0xc0] sm:$0xff]
        %v3939 = vld [vmem:[#allocation3 + $0xc8] sm:$0xff]
        %v3940 = vld [vmem:[#allocation3 + $0xd0] sm:$0xff]
        %v3941 = vld [vmem:[#allocation3 + $0xd8] sm:$0xff]
        %v3942 = vld [vmem:[#allocation3 + $0xe0] sm:$0xff]
        %v3943 = vld [vmem:[#allocation3 + $0xe8] sm:$0xff]
        %v3944 = vld [vmem:[#allocation3 + $0xf0] sm:$0xff]
        %v3945 = vld [vmem:[#allocation3 + $0xf8] sm:$0xff]
        %s3946 = scalar_lea.vmem %s302, 20
        %v3947 = vld [vmem:[%s3946] sm:$0xf]
        %v3996 = vrot.slane %v3866, 5
        %v3997 = vrot.slane %v3996, 4
        %v3998 = vrot.slane %v3867, 5
        %v3999 = vsel %vm2217, %v3997, %v3998
        %v4000 = vrot.slane %v3998, 4
        %v4001 = vrot.slane %v3868, 5
        %v4002 = vsel %vm2217, %v4000, %v4001
        %v4003 = vrot.slane %v3869, 5
        %v4004 = vrot.slane %v4003, 4
        %v4005 = vrot.slane %v3870, 5
        %v4006 = vsel %vm2217, %v4004, %v4005
        %v4007 = vrot.slane %v4005, 4
        %v4008 = vrot.slane %v3871, 5
        %v4009 = vsel %vm2217, %v4007, %v4008
        %v4010 = vrot.slane %v3872, 5
        %v4011 = vrot.slane %v4010, 4
        %v4012 = vrot.slane %v3873, 5
        %v4013 = vsel %vm2217, %v4011, %v4012
        %v4014 = vrot.slane %v4012, 4
        %v4015 = vrot.slane %v3874, 5
        %v4016 = vsel %vm2217, %v4014, %v4015
        %v4017 = vrot.slane %v3875, 5
        %v4018 = vrot.slane %v4017, 4
        %v4019 = vrot.slane %v3876, 5
        %v4020 = vsel %vm2217, %v4018, %v4019
        %v4021 = vrot.slane %v4019, 4
        %v4022 = vrot.slane %v3877, 5
        %v4023 = vsel %vm2217, %v4021, %v4022
        %v4024 = vrot.slane %v3878, 5
        %v4025 = vrot.slane %v4024, 4
        %v4026 = vrot.slane %v3879, 5
        %v4027 = vsel %vm2217, %v4025, %v4026
        %v4028 = vrot.slane %v4026, 4
        %v4029 = vrot.slane %v3880, 5
        %v4030 = vsel %vm2217, %v4028, %v4029
        %v4031 = vrot.slane %v3881, 5
        %v4032 = vrot.slane %v4031, 4
        %v4033 = vrot.slane %v3882, 5
        %v4034 = vsel %vm2217, %v4032, %v4033
        %v4035 = vrot.slane %v4033, 4
        %v4036 = vrot.slane %v3883, 5
        %v4037 = vsel %vm2217, %v4035, %v4036
        %v4038 = vrot.slane %v3884, 5
        %v4039 = vrot.slane %v4038, 4
        %v4040 = vrot.slane %v3885, 5
        %v4041 = vsel %vm2217, %v4039, %v4040
        %v4042 = vrot.slane %v4040, 4
        %v4043 = vrot.slane %v3886, 5
        %v4044 = vsel %vm2217, %v4042, %v4043
        %v4045 = vrot.slane %v3887, 5
        %v4046 = vrot.slane %v4045, 4
        %v4047 = vrot.slane %v3888, 5
        %v4048 = vsel %vm2217, %v4046, %v4047
        %v4049 = vrot.slane %v4047, 4
        %v4050 = vrot.slane %v3889, 5
        %v4051 = vsel %vm2217, %v4049, %v4050
        %v4052 = vrot.slane %v3890, 5
        %v4053 = vrot.slane %v4052, 4
        %v4054 = vrot.slane %v3891, 5
        %v4055 = vsel %vm2217, %v4053, %v4054
        %v4056 = vrot.slane %v4054, 4
        %v4057 = vrot.slane %v3892, 5
        %v4058 = vsel %vm2217, %v4056, %v4057
        %v4059 = vrot.slane %v3893, 5
        %v4060 = vrot.slane %v4059, 4
        %v4061 = vrot.slane %v3894, 5
        %v4062 = vsel %vm2217, %v4060, %v4061
        %v4063 = vrot.slane %v4061, 4
        %v4064 = vrot.slane %v3895, 5
        %v4065 = vsel %vm2217, %v4063, %v4064
        %v4066 = vrot.slane %v3896, 5
        %v4067 = vrot.slane %v4066, 4
        %v4068 = vrot.slane %v3897, 5
        %v4069 = vsel %vm2217, %v4067, %v4068
        %v4070 = vrot.slane %v4068, 4
        %v4071 = vrot.slane %v3898, 5
        %v4072 = vsel %vm2217, %v4070, %v4071
        %v4073 = vrot.slane %v3899, 5
        %v4074 = vrot.slane %v4073, 4
        %v4075 = vrot.slane %v3900, 5
        %v4076 = vsel %vm2217, %v4074, %v4075
        %v4077 = vrot.slane %v4075, 4
        %v4078 = vrot.slane %v3901, 5
        %v4079 = vsel %vm2217, %v4077, %v4078
        %v4080 = vrot.slane %v3902, 5
        %v4081 = vrot.slane %v4080, 4
        %v4082 = vrot.slane %v3903, 5
        %v4083 = vsel %vm2217, %v4081, %v4082
        %v4084 = vrot.slane %v4082, 4
        %v4085 = vrot.slane %v3904, 5
        %v4086 = vsel %vm2217, %v4084, %v4085
        %v4087 = vrot.slane %v3905, 5
        %v4088 = vrot.slane %v4087, 4
        %v4089 = vrot.slane %v3906, 5
        %v4090 = vsel %vm2217, %v4088, %v4089
        %v4091 = vrot.slane %v4089, 4
        %v4092 = vrot.slane %v3907, 5
        %v4093 = vsel %vm2217, %v4091, %v4092
        %v4094 = vrot.slane %v3908, 5
        %v4095 = vrot.slane %v4094, 4
        %v4096 = vrot.slane %v3909, 5
        %v4097 = vsel %vm2217, %v4095, %v4096
        %v4098 = vrot.slane %v4096, 4
        %v4099 = vrot.slane %v3910, 5
        %v4100 = vsel %vm2217, %v4098, %v4099
        %v4101 = vrot.slane %v3911, 5
        %v4102 = vrot.slane %v4101, 4
        %v4103 = vrot.slane %v3912, 5
        %v4104 = vsel %vm2217, %v4102, %v4103
        %v4105 = vrot.slane %v4103, 4
        %v4106 = vrot.slane %v3913, 5
        %v4107 = vsel %vm2217, %v4105, %v4106
        %v4108 = vunpack.c.l.b16 %v3999
        %v4109 = vunpack.c.l.b16 %v4002
        %v4110 = vunpack.c.l.b16 %v4006
        %v4111 = vunpack.c.l.b16 %v4009
        %v4112 = vunpack.c.l.b16 %v4013
        %v4113 = vunpack.c.l.b16 %v4016
        %v4114 = vunpack.c.l.b16 %v4020
        %v4115 = vunpack.c.l.b16 %v4023
        %v4116 = vunpack.c.l.b16 %v4027
        %v4117 = vunpack.c.l.b16 %v4030
        %v4118 = vunpack.c.l.b16 %v4034
        %v4119 = vunpack.c.l.b16 %v4037
        %v4120 = vunpack.c.l.b16 %v4041
        %v4121 = vunpack.c.l.b16 %v4044
        %v4122 = vunpack.c.l.b16 %v4048
        %v4123 = vunpack.c.l.b16 %v4051
        %v4124 = vunpack.c.l.b16 %v4055
        %v4125 = vunpack.c.l.b16 %v4058
        %v4126 = vunpack.c.l.b16 %v4062
        %v4127 = vunpack.c.l.b16 %v4065
        %v4128 = vunpack.c.l.b16 %v4069
        %v4129 = vunpack.c.l.b16 %v4072
        %v4130 = vunpack.c.l.b16 %v4076
        %v4131 = vunpack.c.l.b16 %v4079
        %v4132 = vunpack.c.l.b16 %v4083
        %v4133 = vunpack.c.l.b16 %v4086
        %v4134 = vunpack.c.l.b16 %v4090
        %v4135 = vunpack.c.l.b16 %v4093
        %v4136 = vunpack.c.l.b16 %v4097
        %v4137 = vunpack.c.l.b16 %v4100
        %v4138 = vunpack.c.l.b16 %v4104
        %v4139 = vunpack.c.l.b16 %v4107
        %v4140 = vpack.c.b16 %v4109, %v4108
        %v4141 = vpack.c.b16 %v4111, %v4110
        %v4142 = vpack.c.b16 %v4113, %v4112
        %v4143 = vpack.c.b16 %v4115, %v4114
        %v4144 = vpack.c.b16 %v4117, %v4116
        %v4145 = vpack.c.b16 %v4119, %v4118
        %v4146 = vpack.c.b16 %v4121, %v4120
        %v4147 = vpack.c.b16 %v4123, %v4122
        %v4148 = vpack.c.b16 %v4125, %v4124
        %v4149 = vpack.c.b16 %v4127, %v4126
        %v4150 = vpack.c.b16 %v4129, %v4128
        %v4151 = vpack.c.b16 %v4131, %v4130
        %v4152 = vpack.c.b16 %v4133, %v4132
        %v4153 = vpack.c.b16 %v4135, %v4134
        %v4154 = vpack.c.b16 %v4137, %v4136
        %v4155 = vpack.c.b16 %v4139, %v4138
        %v4157 = vsel %vm1014, %v4140, 0
        %v4160 = vsel %vm1014, %v4141, 0
        %v4163 = vsel %vm1014, %v4142, 0
        %v4166 = vsel %vm1014, %v4143, 0
        %v4169 = vsel %vm1014, %v4144, 0
        %v4172 = vsel %vm1014, %v4145, 0
        %v4175 = vsel %vm1014, %v4146, 0
        %v4178 = vsel %vm1014, %v4147, 0
        %v4181 = vsel %vm1014, %v4148, 0
        %v4184 = vsel %vm1014, %v4149, 0
        %v4187 = vsel %vm1014, %v4150, 0
        %v4190 = vsel %vm1014, %v4151, 0
        %v4193 = vsel %vm1014, %v4152, 0
        %v4196 = vsel %vm1014, %v4153, 0
        %v4199 = vsel %vm1014, %v4154, 0
        %v4202 = vsel %vm1014, %v4155, 0
        %v4205 = vsel %vm1063, %v3947, 0
        %4207 = vmatprep.subr.bf16.mxu0 0
        %4208 = vmatpush1.bf16.msra.mxu0 %v4205
        %4209 = vmatprep.subr.bf16.mxu0 0
        %4210 = vmatpush1.bf16.msra.mxu0 0
        %4211 = vmatprep.subr.bf16.mxu0 0
        %4212 = vmatpush1.bf16.msra.mxu0 0
        %4213 = vmatprep.subr.bf16.mxu0 0
        %4214 = vmatpush1.bf16.msra.mxu0 0
        %4215 = vmatprep.subr.bf16.mxu0 0
        %4216 = vmatpush1.bf16.msra.mxu0 0
        %4217 = vmatprep.subr.bf16.mxu0 0
        %4218 = vmatpush1.bf16.msra.mxu0 0
        %4219 = vmatprep.subr.bf16.mxu0 0
        %4220 = vmatpush1.bf16.msra.mxu0 0
        %4221 = vmatprep.subr.bf16.mxu0 0
        %4222 = vmatpush1.bf16.msra.mxu0 0
        %4223 = vmatprep.subr.bf16.mxu0 0
        %4224 = vmatpush1.bf16.msra.mxu0 0
        %4225 = vmatprep.subr.bf16.mxu0 0
        %4226 = vmatpush1.bf16.msra.mxu0 0
        %4227 = vmatprep.subr.bf16.mxu0 0
        %4228 = vmatpush1.bf16.msra.mxu0 0
        %4229 = vmatprep.subr.bf16.mxu0 0
        %4230 = vmatpush1.bf16.msra.mxu0 0
        %4231 = vmatprep.subr.bf16.mxu0 0
        %4232 = vmatpush1.bf16.msra.mxu0 0
        %4233 = vmatprep.subr.bf16.mxu0 0
        %4234 = vmatpush1.bf16.msra.mxu0 0
        %4235 = vmatprep.subr.bf16.mxu0 0
        %4236 = vmatpush1.bf16.msra.mxu0 0
        %4237 = vmatprep.subr.bf16.mxu0 0
        %4238 = vmatpush1.bf16.msra.mxu0 0
        %4239 = vmatprep.mubr.bf16.mxu0 0
        %4240 = vmatmul.mubr.bf16.gmra.mrb[0].mxu0 %v4157
        %v4241 = vpop.f32.mrb[0].mxu0
        %v4242 = vadd.f32 0.0, %v4241
        %v4243 = vpop.f32.mrb[0].mxu0
        %v4244 = vpop.f32.mrb[0].mxu0
        %v4245 = vadd.f32 0.0, %v4244
        %v4246 = vpop.f32.mrb[0].mxu0
        %4247 = vmatprep.mubr.bf16.mxu0 0
        %4248 = vmatmul.mubr.bf16.gmra.mrb[0].mxu0 %v4160
        %v4249 = vpop.f32.mrb[0].mxu0
        %v4250 = vadd.f32 0.0, %v4249
        %v4251 = vpop.f32.mrb[0].mxu0
        %v4252 = vpop.f32.mrb[0].mxu0
        %v4253 = vadd.f32 0.0, %v4252
        %v4254 = vpop.f32.mrb[0].mxu0
        %4255 = vmatprep.mubr.bf16.mxu0 0
        %4256 = vmatmul.mubr.bf16.gmra.mrb[0].mxu0 %v4163
        %v4257 = vpop.f32.mrb[0].mxu0
        %v4258 = vadd.f32 0.0, %v4257
        %v4259 = vpop.f32.mrb[0].mxu0
        %v4260 = vpop.f32.mrb[0].mxu0
        %v4261 = vadd.f32 0.0, %v4260
        %v4262 = vpop.f32.mrb[0].mxu0
        %4263 = vmatprep.mubr.bf16.mxu0 0
        %4264 = vmatmul.mubr.bf16.gmra.mrb[0].mxu0 %v4166
        %v4265 = vpop.f32.mrb[0].mxu0
        %v4266 = vadd.f32 0.0, %v4265
        %v4267 = vpop.f32.mrb[0].mxu0
        %v4268 = vpop.f32.mrb[0].mxu0
        %v4269 = vadd.f32 0.0, %v4268
        %v4270 = vpop.f32.mrb[0].mxu0
        %4271 = vmatprep.mubr.bf16.mxu0 0
        %4272 = vmatmul.mubr.bf16.gmra.mrb[0].mxu0 %v4169
        %v4273 = vpop.f32.mrb[0].mxu0
        %v4274 = vadd.f32 0.0, %v4273
        %v4275 = vpop.f32.mrb[0].mxu0
        %v4276 = vpop.f32.mrb[0].mxu0
        %v4277 = vadd.f32 0.0, %v4276
        %v4278 = vpop.f32.mrb[0].mxu0
        %4279 = vmatprep.mubr.bf16.mxu0 0
        %4280 = vmatmul.mubr.bf16.gmra.mrb[0].mxu0 %v4172
        %v4281 = vpop.f32.mrb[0].mxu0
        %v4282 = vadd.f32 0.0, %v4281
        %v4283 = vpop.f32.mrb[0].mxu0
        %v4284 = vpop.f32.mrb[0].mxu0
        %v4285 = vadd.f32 0.0, %v4284
        %v4286 = vpop.f32.mrb[0].mxu0
        %4287 = vmatprep.mubr.bf16.mxu0 0
        %4288 = vmatmul.mubr.bf16.gmra.mrb[0].mxu0 %v4175
        %v4289 = vpop.f32.mrb[0].mxu0
        %v4290 = vadd.f32 0.0, %v4289
        %v4291 = vpop.f32.mrb[0].mxu0
        %v4292 = vpop.f32.mrb[0].mxu0
        %v4293 = vadd.f32 0.0, %v4292
        %v4294 = vpop.f32.mrb[0].mxu0
        %4295 = vmatprep.mubr.bf16.mxu0 0
        %4296 = vmatmul.mubr.bf16.gmra.mrb[0].mxu0 %v4178
        %v4297 = vpop.f32.mrb[0].mxu0
        %v4298 = vadd.f32 0.0, %v4297
        %v4299 = vpop.f32.mrb[0].mxu0
        %v4300 = vpop.f32.mrb[0].mxu0
        %v4301 = vadd.f32 0.0, %v4300
        %v4302 = vpop.f32.mrb[0].mxu0
        %4303 = vmatprep.mubr.bf16.mxu0 0
        %4304 = vmatmul.mubr.bf16.gmra.mrb[0].mxu0 %v4181
        %v4305 = vpop.f32.mrb[0].mxu0
        %v4306 = vadd.f32 0.0, %v4305
        %v4307 = vpop.f32.mrb[0].mxu0
        %v4308 = vpop.f32.mrb[0].mxu0
        %v4309 = vadd.f32 0.0, %v4308
        %v4310 = vpop.f32.mrb[0].mxu0
        %4311 = vmatprep.mubr.bf16.mxu0 0
        %4312 = vmatmul.mubr.bf16.gmra.mrb[0].mxu0 %v4184
        %v4313 = vpop.f32.mrb[0].mxu0
        %v4314 = vadd.f32 0.0, %v4313
        %v4315 = vpop.f32.mrb[0].mxu0
        %v4316 = vpop.f32.mrb[0].mxu0
        %v4317 = vadd.f32 0.0, %v4316
        %v4318 = vpop.f32.mrb[0].mxu0
        %4319 = vmatprep.mubr.bf16.mxu0 0
        %4320 = vmatmul.mubr.bf16.gmra.mrb[0].mxu0 %v4187
        %v4321 = vpop.f32.mrb[0].mxu0
        %v4322 = vadd.f32 0.0, %v4321
        %v4323 = vpop.f32.mrb[0].mxu0
        %v4324 = vpop.f32.mrb[0].mxu0
        %v4325 = vadd.f32 0.0, %v4324
        %v4326 = vpop.f32.mrb[0].mxu0
        %4327 = vmatprep.mubr.bf16.mxu0 0
        %4328 = vmatmul.mubr.bf16.gmra.mrb[0].mxu0 %v4190
        %v4329 = vpop.f32.mrb[0].mxu0
        %v4330 = vadd.f32 0.0, %v4329
        %v4331 = vpop.f32.mrb[0].mxu0
        %v4332 = vpop.f32.mrb[0].mxu0
        %v4333 = vadd.f32 0.0, %v4332
        %v4334 = vpop.f32.mrb[0].mxu0
        %4335 = vmatprep.mubr.bf16.mxu0 0
        %4336 = vmatmul.mubr.bf16.gmra.mrb[0].mxu0 %v4193
        %v4337 = vpop.f32.mrb[0].mxu0
        %v4338 = vadd.f32 0.0, %v4337
        %v4339 = vpop.f32.mrb[0].mxu0
        %v4340 = vpop.f32.mrb[0].mxu0
        %v4341 = vadd.f32 0.0, %v4340
        %v4342 = vpop.f32.mrb[0].mxu0
        %4343 = vmatprep.mubr.bf16.mxu0 0
        %4344 = vmatmul.mubr.bf16.gmra.mrb[0].mxu0 %v4196
        %v4345 = vpop.f32.mrb[0].mxu0
        %v4346 = vadd.f32 0.0, %v4345
        %v4347 = vpop.f32.mrb[0].mxu0
        %v4348 = vpop.f32.mrb[0].mxu0
        %v4349 = vadd.f32 0.0, %v4348
        %v4350 = vpop.f32.mrb[0].mxu0
        %4351 = vmatprep.mubr.bf16.mxu0 0
        %4352 = vmatmul.mubr.bf16.gmra.mrb[0].mxu0 %v4199
        %v4353 = vpop.f32.mrb[0].mxu0
        %v4354 = vadd.f32 0.0, %v4353
        %v4355 = vpop.f32.mrb[0].mxu0
        %v4356 = vpop.f32.mrb[0].mxu0
        %v4357 = vadd.f32 0.0, %v4356
        %v4358 = vpop.f32.mrb[0].mxu0
        %4359 = vmatprep.mubr.bf16.mxu0 0
        %4360 = vmatmul.mubr.bf16.gmra.mrb[0].mxu0 %v4202
        %v4361 = vpop.f32.mrb[0].mxu0
        %v4362 = vadd.f32 0.0, %v4361
        %v4363 = vpop.f32.mrb[0].mxu0
        %v4364 = vpop.f32.mrb[0].mxu0
        %v4365 = vadd.f32 0.0, %v4364
        %v4366 = vpop.f32.mrb[0].mxu0
        %4367 = vdwg.mxu0
        %v4368 = vadd.f32 %v3914, %v4242
        %v4369 = vadd.f32 %v3915, %v4245
        %v4370 = vadd.f32 %v3916, %v4250
        %v4371 = vadd.f32 %v3917, %v4253
        %v4372 = vadd.f32 %v3918, %v4258
        %v4373 = vadd.f32 %v3919, %v4261
        %v4374 = vadd.f32 %v3920, %v4266
        %v4375 = vadd.f32 %v3921, %v4269
        %v4376 = vadd.f32 %v3922, %v4274
        %v4377 = vadd.f32 %v3923, %v4277
        %v4378 = vadd.f32 %v3924, %v4282
        %v4379 = vadd.f32 %v3925, %v4285
        %v4380 = vadd.f32 %v3926, %v4290
        %v4381 = vadd.f32 %v3927, %v4293
        %v4382 = vadd.f32 %v3928, %v4298
        %v4383 = vadd.f32 %v3929, %v4301
        %v4384 = vadd.f32 %v3930, %v4306
        %v4385 = vadd.f32 %v3931, %v4309
        %v4386 = vadd.f32 %v3932, %v4314
        %v4387 = vadd.f32 %v3933, %v4317
        %v4388 = vadd.f32 %v3934, %v4322
        %v4389 = vadd.f32 %v3935, %v4325
        %v4390 = vadd.f32 %v3936, %v4330
        %v4391 = vadd.f32 %v3937, %v4333
        %v4392 = vadd.f32 %v3938, %v4338
        %v4393 = vadd.f32 %v3939, %v4341
        %v4394 = vadd.f32 %v3940, %v4346
        %v4395 = vadd.f32 %v3941, %v4349
        %v4396 = vadd.f32 %v3942, %v4354
        %v4397 = vadd.f32 %v3943, %v4357
        %v4398 = vadd.f32 %v3944, %v4362
        %v4399 = vadd.f32 %v3945, %v4365
        %4400 = vst [vmem:[#allocation3] sm:$0xff] %v4368
        %4401 = vst [vmem:[#allocation3 + $0x8] sm:$0xff] %v4369
        %4402 = vst [vmem:[#allocation3 + $0x10] sm:$0xff] %v4370
        %4403 = vst [vmem:[#allocation3 + $0x18] sm:$0xff] %v4371
        %4404 = vst [vmem:[#allocation3 + $0x20] sm:$0xff] %v4372
        %4405 = vst [vmem:[#allocation3 + $0x28] sm:$0xff] %v4373
        %4406 = vst [vmem:[#allocation3 + $0x30] sm:$0xff] %v4374
        %4407 = vst [vmem:[#allocation3 + $0x38] sm:$0xff] %v4375
        %4408 = vst [vmem:[#allocation3 + $0x40] sm:$0xff] %v4376
        %4409 = vst [vmem:[#allocation3 + $0x48] sm:$0xff] %v4377
        %4410 = vst [vmem:[#allocation3 + $0x50] sm:$0xff] %v4378
        %4411 = vst [vmem:[#allocation3 + $0x58] sm:$0xff] %v4379
        %4412 = vst [vmem:[#allocation3 + $0x60] sm:$0xff] %v4380
        %4413 = vst [vmem:[#allocation3 + $0x68] sm:$0xff] %v4381
        %4414 = vst [vmem:[#allocation3 + $0x70] sm:$0xff] %v4382
        %4415 = vst [vmem:[#allocation3 + $0x78] sm:$0xff] %v4383
        %4416 = vst [vmem:[#allocation3 + $0x80] sm:$0xff] %v4384
        %4417 = vst [vmem:[#allocation3 + $0x88] sm:$0xff] %v4385
        %4418 = vst [vmem:[#allocation3 + $0x90] sm:$0xff] %v4386
        %4419 = vst [vmem:[#allocation3 + $0x98] sm:$0xff] %v4387
        %4420 = vst [vmem:[#allocation3 + $0xa0] sm:$0xff] %v4388
        %4421 = vst [vmem:[#allocation3 + $0xa8] sm:$0xff] %v4389
        %4422 = vst [vmem:[#allocation3 + $0xb0] sm:$0xff] %v4390
        %4423 = vst [vmem:[#allocation3 + $0xb8] sm:$0xff] %v4391
        %4424 = vst [vmem:[#allocation3 + $0xc0] sm:$0xff] %v4392
        %4425 = vst [vmem:[#allocation3 + $0xc8] sm:$0xff] %v4393
        %4426 = vst [vmem:[#allocation3 + $0xd0] sm:$0xff] %v4394
        %4427 = vst [vmem:[#allocation3 + $0xd8] sm:$0xff] %v4395
        %4428 = vst [vmem:[#allocation3 + $0xe0] sm:$0xff] %v4396
        %4429 = vst [vmem:[#allocation3 + $0xe8] sm:$0xff] %v4397
        %4430 = vst [vmem:[#allocation3 + $0xf0] sm:$0xff] %v4398
        %4431 = vst [vmem:[#allocation3 + $0xf8] sm:$0xff] %v4399
        %s4432 = scalar_lea.vmem [#allocation2], 24
        %v4433 = vld [vmem:[%s4432] sm:$0xf]
        %v4434 = vld [vmem:[%s4432 + $0x4] sm:$0xf]
        %v4435 = vld [vmem:[%s4432 + $0xc] sm:$0xf]
        %v4436 = vld [vmem:[%s4432 + $0x10] sm:$0xf]
        %v4437 = vld [vmem:[%s4432 + $0x18] sm:$0xf]
        %v4438 = vld [vmem:[%s4432 + $0x1c] sm:$0xf]
        %v4439 = vld [vmem:[%s4432 + $0x24] sm:$0xf]
        %v4440 = vld [vmem:[%s4432 + $0x28] sm:$0xf]
        %v4441 = vld [vmem:[%s4432 + $0x30] sm:$0xf]
        %v4442 = vld [vmem:[%s4432 + $0x34] sm:$0xf]
        %v4443 = vld [vmem:[%s4432 + $0x3c] sm:$0xf]
        %v4444 = vld [vmem:[%s4432 + $0x40] sm:$0xf]
        %v4445 = vld [vmem:[%s4432 + $0x48] sm:$0xf]
        %v4446 = vld [vmem:[%s4432 + $0x4c] sm:$0xf]
        %v4447 = vld [vmem:[%s4432 + $0x54] sm:$0xf]
        %v4448 = vld [vmem:[%s4432 + $0x58] sm:$0xf]
        %v4449 = vld [vmem:[%s4432 + $0x60] sm:$0xf]
        %v4450 = vld [vmem:[%s4432 + $0x64] sm:$0xf]
        %v4451 = vld [vmem:[%s4432 + $0x6c] sm:$0xf]
        %v4452 = vld [vmem:[%s4432 + $0x70] sm:$0xf]
        %v4453 = vld [vmem:[%s4432 + $0x78] sm:$0xf]
        %v4454 = vld [vmem:[%s4432 + $0x7c] sm:$0xf]
        %v4455 = vld [vmem:[%s4432 + $0x84] sm:$0xf]
        %v4456 = vld [vmem:[%s4432 + $0x88] sm:$0xf]
        %v4457 = vld [vmem:[%s4432 + $0x90] sm:$0xf]
        %v4458 = vld [vmem:[%s4432 + $0x94] sm:$0xf]
        %v4459 = vld [vmem:[%s4432 + $0x9c] sm:$0xf]
        %v4460 = vld [vmem:[%s4432 + $0xa0] sm:$0xf]
        %v4461 = vld [vmem:[%s4432 + $0xa8] sm:$0xf]
        %v4462 = vld [vmem:[%s4432 + $0xac] sm:$0xf]
        %v4463 = vld [vmem:[%s4432 + $0xb4] sm:$0xf]
        %v4464 = vld [vmem:[%s4432 + $0xb8] sm:$0xf]
        %v4465 = vld [vmem:[#allocation3] sm:$0xff]
        %v4466 = vld [vmem:[#allocation3 + $0x8] sm:$0xff]
        %v4467 = vld [vmem:[#allocation3 + $0x10] sm:$0xff]
        %v4468 = vld [vmem:[#allocation3 + $0x18] sm:$0xff]
        %v4469 = vld [vmem:[#allocation3 + $0x20] sm:$0xff]
        %v4470 = vld [vmem:[#allocation3 + $0x28] sm:$0xff]
        %v4471 = vld [vmem:[#allocation3 + $0x30] sm:$0xff]
        %v4472 = vld [vmem:[#allocation3 + $0x38] sm:$0xff]
        %v4473 = vld [vmem:[#allocation3 + $0x40] sm:$0xff]
        %v4474 = vld [vmem:[#allocation3 + $0x48] sm:$0xff]
        %v4475 = vld [vmem:[#allocation3 + $0x50] sm:$0xff]
        %v4476 = vld [vmem:[#allocation3 + $0x58] sm:$0xff]
        %v4477 = vld [vmem:[#allocation3 + $0x60] sm:$0xff]
        %v4478 = vld [vmem:[#allocation3 + $0x68] sm:$0xff]
        %v4479 = vld [vmem:[#allocation3 + $0x70] sm:$0xff]
        %v4480 = vld [vmem:[#allocation3 + $0x78] sm:$0xff]
        %v4481 = vld [vmem:[#allocation3 + $0x80] sm:$0xff]
        %v4482 = vld [vmem:[#allocation3 + $0x88] sm:$0xff]
        %v4483 = vld [vmem:[#allocation3 + $0x90] sm:$0xff]
        %v4484 = vld [vmem:[#allocation3 + $0x98] sm:$0xff]
        %v4485 = vld [vmem:[#allocation3 + $0xa0] sm:$0xff]
        %v4486 = vld [vmem:[#allocation3 + $0xa8] sm:$0xff]
        %v4487 = vld [vmem:[#allocation3 + $0xb0] sm:$0xff]
        %v4488 = vld [vmem:[#allocation3 + $0xb8] sm:$0xff]
        %v4489 = vld [vmem:[#allocation3 + $0xc0] sm:$0xff]
        %v4490 = vld [vmem:[#allocation3 + $0xc8] sm:$0xff]
        %v4491 = vld [vmem:[#allocation3 + $0xd0] sm:$0xff]
        %v4492 = vld [vmem:[#allocation3 + $0xd8] sm:$0xff]
        %v4493 = vld [vmem:[#allocation3 + $0xe0] sm:$0xff]
        %v4494 = vld [vmem:[#allocation3 + $0xe8] sm:$0xff]
        %v4495 = vld [vmem:[#allocation3 + $0xf0] sm:$0xff]
        %v4496 = vld [vmem:[#allocation3 + $0xf8] sm:$0xff]
        %s4497 = scalar_lea.vmem %s302, 24
        %v4498 = vld [vmem:[%s4497] sm:$0xf]
        %v4531 = vunpack.c.l.b16 %v4433
        %v4532 = vunpack.c.l.b16 %v4434
        %v4533 = vunpack.c.l.b16 %v4435
        %v4534 = vunpack.c.l.b16 %v4436
        %v4535 = vunpack.c.l.b16 %v4437
        %v4536 = vunpack.c.l.b16 %v4438
        %v4537 = vunpack.c.l.b16 %v4439
        %v4538 = vunpack.c.l.b16 %v4440
        %v4539 = vunpack.c.l.b16 %v4441
        %v4540 = vunpack.c.l.b16 %v4442
        %v4541 = vunpack.c.l.b16 %v4443
        %v4542 = vunpack.c.l.b16 %v4444
        %v4543 = vunpack.c.l.b16 %v4445
        %v4544 = vunpack.c.l.b16 %v4446
        %v4545 = vunpack.c.l.b16 %v4447
        %v4546 = vunpack.c.l.b16 %v4448
        %v4547 = vunpack.c.l.b16 %v4449
        %v4548 = vunpack.c.l.b16 %v4450
        %v4549 = vunpack.c.l.b16 %v4451
        %v4550 = vunpack.c.l.b16 %v4452
        %v4551 = vunpack.c.l.b16 %v4453
        %v4552 = vunpack.c.l.b16 %v4454
        %v4553 = vunpack.c.l.b16 %v4455
        %v4554 = vunpack.c.l.b16 %v4456
        %v4555 = vunpack.c.l.b16 %v4457
        %v4556 = vunpack.c.l.b16 %v4458
        %v4557 = vunpack.c.l.b16 %v4459
        %v4558 = vunpack.c.l.b16 %v4460
        %v4559 = vunpack.c.l.b16 %v4461
        %v4560 = vunpack.c.l.b16 %v4462
        %v4561 = vunpack.c.l.b16 %v4463
        %v4562 = vunpack.c.l.b16 %v4464
        %v4563 = vpack.c.b16 %v4532, %v4531
        %v4564 = vpack.c.b16 %v4534, %v4533
        %v4565 = vpack.c.b16 %v4536, %v4535
        %v4566 = vpack.c.b16 %v4538, %v4537
        %v4567 = vpack.c.b16 %v4540, %v4539
        %v4568 = vpack.c.b16 %v4542, %v4541
        %v4569 = vpack.c.b16 %v4544, %v4543
        %v4570 = vpack.c.b16 %v4546, %v4545
        %v4571 = vpack.c.b16 %v4548, %v4547
        %v4572 = vpack.c.b16 %v4550, %v4549
        %v4573 = vpack.c.b16 %v4552, %v4551
        %v4574 = vpack.c.b16 %v4554, %v4553
        %v4575 = vpack.c.b16 %v4556, %v4555
        %v4576 = vpack.c.b16 %v4558, %v4557
        %v4577 = vpack.c.b16 %v4560, %v4559
        %v4578 = vpack.c.b16 %v4562, %v4561
        %v4580 = vsel %vm1014, %v4563, 0
        %v4583 = vsel %vm1014, %v4564, 0
        %v4586 = vsel %vm1014, %v4565, 0
        %v4589 = vsel %vm1014, %v4566, 0
        %v4592 = vsel %vm1014, %v4567, 0
        %v4595 = vsel %vm1014, %v4568, 0
        %v4598 = vsel %vm1014, %v4569, 0
        %v4601 = vsel %vm1014, %v4570, 0
        %v4604 = vsel %vm1014, %v4571, 0
        %v4607 = vsel %vm1014, %v4572, 0
        %v4610 = vsel %vm1014, %v4573, 0
        %v4613 = vsel %vm1014, %v4574, 0
        %v4616 = vsel %vm1014, %v4575, 0
        %v4619 = vsel %vm1014, %v4576, 0
        %v4622 = vsel %vm1014, %v4577, 0
        %v4625 = vsel %vm1014, %v4578, 0
        %v4628 = vsel %vm1063, %v4498, 0
        %4630 = vmatprep.subr.bf16.mxu0 0
        %4631 = vmatpush1.bf16.msra.mxu0 %v4628
        %4632 = vmatprep.subr.bf16.mxu0 0
        %4633 = vmatpush1.bf16.msra.mxu0 0
        %4634 = vmatprep.subr.bf16.mxu0 0
        %4635 = vmatpush1.bf16.msra.mxu0 0
        %4636 = vmatprep.subr.bf16.mxu0 0
        %4637 = vmatpush1.bf16.msra.mxu0 0
        %4638 = vmatprep.subr.bf16.mxu0 0
        %4639 = vmatpush1.bf16.msra.mxu0 0
        %4640 = vmatprep.subr.bf16.mxu0 0
        %4641 = vmatpush1.bf16.msra.mxu0 0
        %4642 = vmatprep.subr.bf16.mxu0 0
        %4643 = vmatpush1.bf16.msra.mxu0 0
        %4644 = vmatprep.subr.bf16.mxu0 0
        %4645 = vmatpush1.bf16.msra.mxu0 0
        %4646 = vmatprep.subr.bf16.mxu0 0
        %4647 = vmatpush1.bf16.msra.mxu0 0
        %4648 = vmatprep.subr.bf16.mxu0 0
        %4649 = vmatpush1.bf16.msra.mxu0 0
        %4650 = vmatprep.subr.bf16.mxu0 0
        %4651 = vmatpush1.bf16.msra.mxu0 0
        %4652 = vmatprep.subr.bf16.mxu0 0
        %4653 = vmatpush1.bf16.msra.mxu0 0
        %4654 = vmatprep.subr.bf16.mxu0 0
        %4655 = vmatpush1.bf16.msra.mxu0 0
        %4656 = vmatprep.subr.bf16.mxu0 0
        %4657 = vmatpush1.bf16.msra.mxu0 0
        %4658 = vmatprep.subr.bf16.mxu0 0
        %4659 = vmatpush1.bf16.msra.mxu0 0
        %4660 = vmatprep.subr.bf16.mxu0 0
        %4661 = vmatpush1.bf16.msra.mxu0 0
        %4662 = vmatprep.mubr.bf16.mxu0 0
        %4663 = vmatmul.mubr.bf16.gmra.mrb[0].mxu0 %v4580
        %v4664 = vpop.f32.mrb[0].mxu0
        %v4665 = vadd.f32 0.0, %v4664
        %v4666 = vpop.f32.mrb[0].mxu0
        %v4667 = vpop.f32.mrb[0].mxu0
        %v4668 = vadd.f32 0.0, %v4667
        %v4669 = vpop.f32.mrb[0].mxu0
        %4670 = vmatprep.mubr.bf16.mxu0 0
        %4671 = vmatmul.mubr.bf16.gmra.mrb[0].mxu0 %v4583
        %v4672 = vpop.f32.mrb[0].mxu0
        %v4673 = vadd.f32 0.0, %v4672
        %v4674 = vpop.f32.mrb[0].mxu0
        %v4675 = vpop.f32.mrb[0].mxu0
        %v4676 = vadd.f32 0.0, %v4675
        %v4677 = vpop.f32.mrb[0].mxu0
        %4678 = vmatprep.mubr.bf16.mxu0 0
        %4679 = vmatmul.mubr.bf16.gmra.mrb[0].mxu0 %v4586
        %v4680 = vpop.f32.mrb[0].mxu0
        %v4681 = vadd.f32 0.0, %v4680
        %v4682 = vpop.f32.mrb[0].mxu0
        %v4683 = vpop.f32.mrb[0].mxu0
        %v4684 = vadd.f32 0.0, %v4683
        %v4685 = vpop.f32.mrb[0].mxu0
        %4686 = vmatprep.mubr.bf16.mxu0 0
        %4687 = vmatmul.mubr.bf16.gmra.mrb[0].mxu0 %v4589
        %v4688 = vpop.f32.mrb[0].mxu0
        %v4689 = vadd.f32 0.0, %v4688
        %v4690 = vpop.f32.mrb[0].mxu0
        %v4691 = vpop.f32.mrb[0].mxu0
        %v4692 = vadd.f32 0.0, %v4691
        %v4693 = vpop.f32.mrb[0].mxu0
        %4694 = vmatprep.mubr.bf16.mxu0 0
        %4695 = vmatmul.mubr.bf16.gmra.mrb[0].mxu0 %v4592
        %v4696 = vpop.f32.mrb[0].mxu0
        %v4697 = vadd.f32 0.0, %v4696
        %v4698 = vpop.f32.mrb[0].mxu0
        %v4699 = vpop.f32.mrb[0].mxu0
        %v4700 = vadd.f32 0.0, %v4699
        %v4701 = vpop.f32.mrb[0].mxu0
        %4702 = vmatprep.mubr.bf16.mxu0 0
        %4703 = vmatmul.mubr.bf16.gmra.mrb[0].mxu0 %v4595
        %v4704 = vpop.f32.mrb[0].mxu0
        %v4705 = vadd.f32 0.0, %v4704
        %v4706 = vpop.f32.mrb[0].mxu0
        %v4707 = vpop.f32.mrb[0].mxu0
        %v4708 = vadd.f32 0.0, %v4707
        %v4709 = vpop.f32.mrb[0].mxu0
        %4710 = vmatprep.mubr.bf16.mxu0 0
        %4711 = vmatmul.mubr.bf16.gmra.mrb[0].mxu0 %v4598
        %v4712 = vpop.f32.mrb[0].mxu0
        %v4713 = vadd.f32 0.0, %v4712
        %v4714 = vpop.f32.mrb[0].mxu0
        %v4715 = vpop.f32.mrb[0].mxu0
        %v4716 = vadd.f32 0.0, %v4715
        %v4717 = vpop.f32.mrb[0].mxu0
        %4718 = vmatprep.mubr.bf16.mxu0 0
        %4719 = vmatmul.mubr.bf16.gmra.mrb[0].mxu0 %v4601
        %v4720 = vpop.f32.mrb[0].mxu0
        %v4721 = vadd.f32 0.0, %v4720
        %v4722 = vpop.f32.mrb[0].mxu0
        %v4723 = vpop.f32.mrb[0].mxu0
        %v4724 = vadd.f32 0.0, %v4723
        %v4725 = vpop.f32.mrb[0].mxu0
        %4726 = vmatprep.mubr.bf16.mxu0 0
        %4727 = vmatmul.mubr.bf16.gmra.mrb[0].mxu0 %v4604
        %v4728 = vpop.f32.mrb[0].mxu0
        %v4729 = vadd.f32 0.0, %v4728
        %v4730 = vpop.f32.mrb[0].mxu0
        %v4731 = vpop.f32.mrb[0].mxu0
        %v4732 = vadd.f32 0.0, %v4731
        %v4733 = vpop.f32.mrb[0].mxu0
        %4734 = vmatprep.mubr.bf16.mxu0 0
        %4735 = vmatmul.mubr.bf16.gmra.mrb[0].mxu0 %v4607
        %v4736 = vpop.f32.mrb[0].mxu0
        %v4737 = vadd.f32 0.0, %v4736
        %v4738 = vpop.f32.mrb[0].mxu0
        %v4739 = vpop.f32.mrb[0].mxu0
        %v4740 = vadd.f32 0.0, %v4739
        %v4741 = vpop.f32.mrb[0].mxu0
        %4742 = vmatprep.mubr.bf16.mxu0 0
        %4743 = vmatmul.mubr.bf16.gmra.mrb[0].mxu0 %v4610
        %v4744 = vpop.f32.mrb[0].mxu0
        %v4745 = vadd.f32 0.0, %v4744
        %v4746 = vpop.f32.mrb[0].mxu0
        %v4747 = vpop.f32.mrb[0].mxu0
        %v4748 = vadd.f32 0.0, %v4747
        %v4749 = vpop.f32.mrb[0].mxu0
        %4750 = vmatprep.mubr.bf16.mxu0 0
        %4751 = vmatmul.mubr.bf16.gmra.mrb[0].mxu0 %v4613
        %v4752 = vpop.f32.mrb[0].mxu0
        %v4753 = vadd.f32 0.0, %v4752
        %v4754 = vpop.f32.mrb[0].mxu0
        %v4755 = vpop.f32.mrb[0].mxu0
        %v4756 = vadd.f32 0.0, %v4755
        %v4757 = vpop.f32.mrb[0].mxu0
        %4758 = vmatprep.mubr.bf16.mxu0 0
        %4759 = vmatmul.mubr.bf16.gmra.mrb[0].mxu0 %v4616
        %v4760 = vpop.f32.mrb[0].mxu0
        %v4761 = vadd.f32 0.0, %v4760
        %v4762 = vpop.f32.mrb[0].mxu0
        %v4763 = vpop.f32.mrb[0].mxu0
        %v4764 = vadd.f32 0.0, %v4763
        %v4765 = vpop.f32.mrb[0].mxu0
        %4766 = vmatprep.mubr.bf16.mxu0 0
        %4767 = vmatmul.mubr.bf16.gmra.mrb[0].mxu0 %v4619
        %v4768 = vpop.f32.mrb[0].mxu0
        %v4769 = vadd.f32 0.0, %v4768
        %v4770 = vpop.f32.mrb[0].mxu0
        %v4771 = vpop.f32.mrb[0].mxu0
        %v4772 = vadd.f32 0.0, %v4771
        %v4773 = vpop.f32.mrb[0].mxu0
        %4774 = vmatprep.mubr.bf16.mxu0 0
        %4775 = vmatmul.mubr.bf16.gmra.mrb[0].mxu0 %v4622
        %v4776 = vpop.f32.mrb[0].mxu0
        %v4777 = vadd.f32 0.0, %v4776
        %v4778 = vpop.f32.mrb[0].mxu0
        %v4779 = vpop.f32.mrb[0].mxu0
        %v4780 = vadd.f32 0.0, %v4779
        %v4781 = vpop.f32.mrb[0].mxu0
        %4782 = vmatprep.mubr.bf16.mxu0 0
        %4783 = vmatmul.mubr.bf16.gmra.mrb[0].mxu0 %v4625
        %v4784 = vpop.f32.mrb[0].mxu0
        %v4785 = vadd.f32 0.0, %v4784
        %v4786 = vpop.f32.mrb[0].mxu0
        %v4787 = vpop.f32.mrb[0].mxu0
        %v4788 = vadd.f32 0.0, %v4787
        %v4789 = vpop.f32.mrb[0].mxu0
        %4790 = vdwg.mxu0
        %v4791 = vadd.f32 %v4465, %v4665
        %v4792 = vadd.f32 %v4466, %v4668
        %v4793 = vadd.f32 %v4467, %v4673
        %v4794 = vadd.f32 %v4468, %v4676
        %v4795 = vadd.f32 %v4469, %v4681
        %v4796 = vadd.f32 %v4470, %v4684
        %v4797 = vadd.f32 %v4471, %v4689
        %v4798 = vadd.f32 %v4472, %v4692
        %v4799 = vadd.f32 %v4473, %v4697
        %v4800 = vadd.f32 %v4474, %v4700
        %v4801 = vadd.f32 %v4475, %v4705
        %v4802 = vadd.f32 %v4476, %v4708
        %v4803 = vadd.f32 %v4477, %v4713
        %v4804 = vadd.f32 %v4478, %v4716
        %v4805 = vadd.f32 %v4479, %v4721
        %v4806 = vadd.f32 %v4480, %v4724
        %v4807 = vadd.f32 %v4481, %v4729
        %v4808 = vadd.f32 %v4482, %v4732
        %v4809 = vadd.f32 %v4483, %v4737
        %v4810 = vadd.f32 %v4484, %v4740
        %v4811 = vadd.f32 %v4485, %v4745
        %v4812 = vadd.f32 %v4486, %v4748
        %v4813 = vadd.f32 %v4487, %v4753
        %v4814 = vadd.f32 %v4488, %v4756
        %v4815 = vadd.f32 %v4489, %v4761
        %v4816 = vadd.f32 %v4490, %v4764
        %v4817 = vadd.f32 %v4491, %v4769
        %v4818 = vadd.f32 %v4492, %v4772
        %v4819 = vadd.f32 %v4493, %v4777
        %v4820 = vadd.f32 %v4494, %v4780
        %v4821 = vadd.f32 %v4495, %v4785
        %v4822 = vadd.f32 %v4496, %v4788
        %4823 = vst [vmem:[#allocation3] sm:$0xff] %v4791
        %4824 = vst [vmem:[#allocation3 + $0x8] sm:$0xff] %v4792
        %4825 = vst [vmem:[#allocation3 + $0x10] sm:$0xff] %v4793
        %4826 = vst [vmem:[#allocation3 + $0x18] sm:$0xff] %v4794
        %4827 = vst [vmem:[#allocation3 + $0x20] sm:$0xff] %v4795
        %4828 = vst [vmem:[#allocation3 + $0x28] sm:$0xff] %v4796
        %4829 = vst [vmem:[#allocation3 + $0x30] sm:$0xff] %v4797
        %4830 = vst [vmem:[#allocation3 + $0x38] sm:$0xff] %v4798
        %4831 = vst [vmem:[#allocation3 + $0x40] sm:$0xff] %v4799
        %4832 = vst [vmem:[#allocation3 + $0x48] sm:$0xff] %v4800
        %4833 = vst [vmem:[#allocation3 + $0x50] sm:$0xff] %v4801
        %4834 = vst [vmem:[#allocation3 + $0x58] sm:$0xff] %v4802
        %4835 = vst [vmem:[#allocation3 + $0x60] sm:$0xff] %v4803
        %4836 = vst [vmem:[#allocation3 + $0x68] sm:$0xff] %v4804
        %4837 = vst [vmem:[#allocation3 + $0x70] sm:$0xff] %v4805
        %4838 = vst [vmem:[#allocation3 + $0x78] sm:$0xff] %v4806
        %4839 = vst [vmem:[#allocation3 + $0x80] sm:$0xff] %v4807
        %4840 = vst [vmem:[#allocation3 + $0x88] sm:$0xff] %v4808
        %4841 = vst [vmem:[#allocation3 + $0x90] sm:$0xff] %v4809
        %4842 = vst [vmem:[#allocation3 + $0x98] sm:$0xff] %v4810
        %4843 = vst [vmem:[#allocation3 + $0xa0] sm:$0xff] %v4811
        %4844 = vst [vmem:[#allocation3 + $0xa8] sm:$0xff] %v4812
        %4845 = vst [vmem:[#allocation3 + $0xb0] sm:$0xff] %v4813
        %4846 = vst [vmem:[#allocation3 + $0xb8] sm:$0xff] %v4814
        %4847 = vst [vmem:[#allocation3 + $0xc0] sm:$0xff] %v4815
        %4848 = vst [vmem:[#allocation3 + $0xc8] sm:$0xff] %v4816
        %4849 = vst [vmem:[#allocation3 + $0xd0] sm:$0xff] %v4817
        %4850 = vst [vmem:[#allocation3 + $0xd8] sm:$0xff] %v4818
        %4851 = vst [vmem:[#allocation3 + $0xe0] sm:$0xff] %v4819
        %4852 = vst [vmem:[#allocation3 + $0xe8] sm:$0xff] %v4820
        %4853 = vst [vmem:[#allocation3 + $0xf0] sm:$0xff] %v4821
        %4854 = vst [vmem:[#allocation3 + $0xf8] sm:$0xff] %v4822
        %v4855 = vld [vmem:[%s4432] sm:$0xf]
        %v4856 = vld [vmem:[%s4432 + $0x4] sm:$0xf]
        %v4857 = vld [vmem:[%s4432 + $0x8] sm:$0x1]
        %v4858 = vld [vmem:[%s4432 + $0xc] sm:$0xf]
        %v4859 = vld [vmem:[%s4432 + $0x10] sm:$0xf]
        %v4860 = vld [vmem:[%s4432 + $0x14] sm:$0x1]
        %v4861 = vld [vmem:[%s4432 + $0x18] sm:$0xf]
        %v4862 = vld [vmem:[%s4432 + $0x1c] sm:$0xf]
        %v4863 = vld [vmem:[%s4432 + $0x20] sm:$0x1]
        %v4864 = vld [vmem:[%s4432 + $0x24] sm:$0xf]
        %v4865 = vld [vmem:[%s4432 + $0x28] sm:$0xf]
        %v4866 = vld [vmem:[%s4432 + $0x2c] sm:$0x1]
        %v4867 = vld [vmem:[%s4432 + $0x30] sm:$0xf]
        %v4868 = vld [vmem:[%s4432 + $0x34] sm:$0xf]
        %v4869 = vld [vmem:[%s4432 + $0x38] sm:$0x1]
        %v4870 = vld [vmem:[%s4432 + $0x3c] sm:$0xf]
        %v4871 = vld [vmem:[%s4432 + $0x40] sm:$0xf]
        %v4872 = vld [vmem:[%s4432 + $0x44] sm:$0x1]
        %v4873 = vld [vmem:[%s4432 + $0x48] sm:$0xf]
        %v4874 = vld [vmem:[%s4432 + $0x4c] sm:$0xf]
        %v4875 = vld [vmem:[%s4432 + $0x50] sm:$0x1]
        %v4876 = vld [vmem:[%s4432 + $0x54] sm:$0xf]
        %v4877 = vld [vmem:[%s4432 + $0x58] sm:$0xf]
        %v4878 = vld [vmem:[%s4432 + $0x5c] sm:$0x1]
        %v4879 = vld [vmem:[%s4432 + $0x60] sm:$0xf]
        %v4880 = vld [vmem:[%s4432 + $0x64] sm:$0xf]
        %v4881 = vld [vmem:[%s4432 + $0x68] sm:$0x1]
        %v4882 = vld [vmem:[%s4432 + $0x6c] sm:$0xf]
        %v4883 = vld [vmem:[%s4432 + $0x70] sm:$0xf]
        %v4884 = vld [vmem:[%s4432 + $0x74] sm:$0x1]
        %v4885 = vld [vmem:[%s4432 + $0x78] sm:$0xf]
        %v4886 = vld [vmem:[%s4432 + $0x7c] sm:$0xf]
        %v4887 = vld [vmem:[%s4432 + $0x80] sm:$0x1]
        %v4888 = vld [vmem:[%s4432 + $0x84] sm:$0xf]
        %v4889 = vld [vmem:[%s4432 + $0x88] sm:$0xf]
        %v4890 = vld [vmem:[%s4432 + $0x8c] sm:$0x1]
        %v4891 = vld [vmem:[%s4432 + $0x90] sm:$0xf]
        %v4892 = vld [vmem:[%s4432 + $0x94] sm:$0xf]
        %v4893 = vld [vmem:[%s4432 + $0x98] sm:$0x1]
        %v4894 = vld [vmem:[%s4432 + $0x9c] sm:$0xf]
        %v4895 = vld [vmem:[%s4432 + $0xa0] sm:$0xf]
        %v4896 = vld [vmem:[%s4432 + $0xa4] sm:$0x1]
        %v4897 = vld [vmem:[%s4432 + $0xa8] sm:$0xf]
        %v4898 = vld [vmem:[%s4432 + $0xac] sm:$0xf]
        %v4899 = vld [vmem:[%s4432 + $0xb0] sm:$0x1]
        %v4900 = vld [vmem:[%s4432 + $0xb4] sm:$0xf]
        %v4901 = vld [vmem:[%s4432 + $0xb8] sm:$0xf]
        %v4902 = vld [vmem:[%s4432 + $0xbc] sm:$0x1]
        %v4903 = vld [vmem:[#allocation3] sm:$0xff]
        %v4904 = vld [vmem:[#allocation3 + $0x8] sm:$0xff]
        %v4905 = vld [vmem:[#allocation3 + $0x10] sm:$0xff]
        %v4906 = vld [vmem:[#allocation3 + $0x18] sm:$0xff]
        %v4907 = vld [vmem:[#allocation3 + $0x20] sm:$0xff]
        %v4908 = vld [vmem:[#allocation3 + $0x28] sm:$0xff]
        %v4909 = vld [vmem:[#allocation3 + $0x30] sm:$0xff]
        %v4910 = vld [vmem:[#allocation3 + $0x38] sm:$0xff]
        %v4911 = vld [vmem:[#allocation3 + $0x40] sm:$0xff]
        %v4912 = vld [vmem:[#allocation3 + $0x48] sm:$0xff]
        %v4913 = vld [vmem:[#allocation3 + $0x50] sm:$0xff]
        %v4914 = vld [vmem:[#allocation3 + $0x58] sm:$0xff]
        %v4915 = vld [vmem:[#allocation3 + $0x60] sm:$0xff]
        %v4916 = vld [vmem:[#allocation3 + $0x68] sm:$0xff]
        %v4917 = vld [vmem:[#allocation3 + $0x70] sm:$0xff]
        %v4918 = vld [vmem:[#allocation3 + $0x78] sm:$0xff]
        %v4919 = vld [vmem:[#allocation3 + $0x80] sm:$0xff]
        %v4920 = vld [vmem:[#allocation3 + $0x88] sm:$0xff]
        %v4921 = vld [vmem:[#allocation3 + $0x90] sm:$0xff]
        %v4922 = vld [vmem:[#allocation3 + $0x98] sm:$0xff]
        %v4923 = vld [vmem:[#allocation3 + $0xa0] sm:$0xff]
        %v4924 = vld [vmem:[#allocation3 + $0xa8] sm:$0xff]
        %v4925 = vld [vmem:[#allocation3 + $0xb0] sm:$0xff]
        %v4926 = vld [vmem:[#allocation3 + $0xb8] sm:$0xff]
        %v4927 = vld [vmem:[#allocation3 + $0xc0] sm:$0xff]
        %v4928 = vld [vmem:[#allocation3 + $0xc8] sm:$0xff]
        %v4929 = vld [vmem:[#allocation3 + $0xd0] sm:$0xff]
        %v4930 = vld [vmem:[#allocation3 + $0xd8] sm:$0xff]
        %v4931 = vld [vmem:[#allocation3 + $0xe0] sm:$0xff]
        %v4932 = vld [vmem:[#allocation3 + $0xe8] sm:$0xff]
        %v4933 = vld [vmem:[#allocation3 + $0xf0] sm:$0xff]
        %v4934 = vld [vmem:[#allocation3 + $0xf8] sm:$0xff]
        %s4935 = scalar_lea.vmem %s302, 28
        %v4936 = vld [vmem:[%s4935] sm:$0xf]
        %v4938 = vshrl.u32 %v4855, 16
        %v4940 = vrot.slane %v4938, 4
        %v4941 = vshll.u32 %v4855, 16
        %v4943 = vrot.slane %v4941, 5
        %v4944 = vor.u32 %v4940, %v4943
        %v4945 = vrot.slane %v4944, 4
        %v4947 = vshll.u32 %v4856, 16
        %v4949 = vrot.slane %v4947, 5
        %v4950 = vsel %vm1376, %v4945, %v4949
        %v4951 = vshrl.u32 %v4856, 16
        %v4953 = vrot.slane %v4951, 4
        %v4954 = vor.u32 %v4953, %v4949
        %v4955 = vrot.slane %v4954, 4
        %v4957 = vshll.u32 %v4857, 16
        %v4959 = vrot.slane %v4957, 5
        %v4960 = vsel %vm1376, %v4955, %v4959
        %v4962 = vshrl.u32 %v4858, 16
        %v4964 = vrot.slane %v4962, 4
        %v4965 = vshll.u32 %v4858, 16
        %v4967 = vrot.slane %v4965, 5
        %v4968 = vor.u32 %v4964, %v4967
        %v4969 = vrot.slane %v4968, 4
        %v4971 = vshll.u32 %v4859, 16
        %v4973 = vrot.slane %v4971, 5
        %v4974 = vsel %vm1376, %v4969, %v4973
        %v4975 = vshrl.u32 %v4859, 16
        %v4977 = vrot.slane %v4975, 4
        %v4978 = vor.u32 %v4977, %v4973
        %v4979 = vrot.slane %v4978, 4
        %v4981 = vshll.u32 %v4860, 16
        %v4983 = vrot.slane %v4981, 5
        %v4984 = vsel %vm1376, %v4979, %v4983
        %v4986 = vshrl.u32 %v4861, 16
        %v4988 = vrot.slane %v4986, 4
        %v4989 = vshll.u32 %v4861, 16
        %v4991 = vrot.slane %v4989, 5
        %v4992 = vor.u32 %v4988, %v4991
        %v4993 = vrot.slane %v4992, 4
        %v4995 = vshll.u32 %v4862, 16
        %v4997 = vrot.slane %v4995, 5
        %v4998 = vsel %vm1376, %v4993, %v4997
        %v4999 = vshrl.u32 %v4862, 16
        %v5001 = vrot.slane %v4999, 4
        %v5002 = vor.u32 %v5001, %v4997
        %v5003 = vrot.slane %v5002, 4
        %v5005 = vshll.u32 %v4863, 16
        %v5007 = vrot.slane %v5005, 5
        %v5008 = vsel %vm1376, %v5003, %v5007
        %v5010 = vshrl.u32 %v4864, 16
        %v5012 = vrot.slane %v5010, 4
        %v5013 = vshll.u32 %v4864, 16
        %v5015 = vrot.slane %v5013, 5
        %v5016 = vor.u32 %v5012, %v5015
        %v5017 = vrot.slane %v5016, 4
        %v5019 = vshll.u32 %v4865, 16
        %v5021 = vrot.slane %v5019, 5
        %v5022 = vsel %vm1376, %v5017, %v5021
        %v5023 = vshrl.u32 %v4865, 16
        %v5025 = vrot.slane %v5023, 4
        %v5026 = vor.u32 %v5025, %v5021
        %v5027 = vrot.slane %v5026, 4
        %v5029 = vshll.u32 %v4866, 16
        %v5031 = vrot.slane %v5029, 5
        %v5032 = vsel %vm1376, %v5027, %v5031
        %v5034 = vshrl.u32 %v4867, 16
        %v5036 = vrot.slane %v5034, 4
        %v5037 = vshll.u32 %v4867, 16
        %v5039 = vrot.slane %v5037, 5
        %v5040 = vor.u32 %v5036, %v5039
        %v5041 = vrot.slane %v5040, 4
        %v5043 = vshll.u32 %v4868, 16
        %v5045 = vrot.slane %v5043, 5
        %v5046 = vsel %vm1376, %v5041, %v5045
        %v5047 = vshrl.u32 %v4868, 16
        %v5049 = vrot.slane %v5047, 4
        %v5050 = vor.u32 %v5049, %v5045
        %v5051 = vrot.slane %v5050, 4
        %v5053 = vshll.u32 %v4869, 16
        %v5055 = vrot.slane %v5053, 5
        %v5056 = vsel %vm1376, %v5051, %v5055
        %v5058 = vshrl.u32 %v4870, 16
        %v5060 = vrot.slane %v5058, 4
        %v5061 = vshll.u32 %v4870, 16
        %v5063 = vrot.slane %v5061, 5
        %v5064 = vor.u32 %v5060, %v5063
        %v5065 = vrot.slane %v5064, 4
        %v5067 = vshll.u32 %v4871, 16
        %v5069 = vrot.slane %v5067, 5
        %v5070 = vsel %vm1376, %v5065, %v5069
        %v5071 = vshrl.u32 %v4871, 16
        %v5073 = vrot.slane %v5071, 4
        %v5074 = vor.u32 %v5073, %v5069
        %v5075 = vrot.slane %v5074, 4
        %v5077 = vshll.u32 %v4872, 16
        %v5079 = vrot.slane %v5077, 5
        %v5080 = vsel %vm1376, %v5075, %v5079
        %v5082 = vshrl.u32 %v4873, 16
        %v5084 = vrot.slane %v5082, 4
        %v5085 = vshll.u32 %v4873, 16
        %v5087 = vrot.slane %v5085, 5
        %v5088 = vor.u32 %v5084, %v5087
        %v5089 = vrot.slane %v5088, 4
        %v5091 = vshll.u32 %v4874, 16
        %v5093 = vrot.slane %v5091, 5
        %v5094 = vsel %vm1376, %v5089, %v5093
        %v5095 = vshrl.u32 %v4874, 16
        %v5097 = vrot.slane %v5095, 4
        %v5098 = vor.u32 %v5097, %v5093
        %v5099 = vrot.slane %v5098, 4
        %v5101 = vshll.u32 %v4875, 16
        %v5103 = vrot.slane %v5101, 5
        %v5104 = vsel %vm1376, %v5099, %v5103
        %v5106 = vshrl.u32 %v4876, 16
        %v5108 = vrot.slane %v5106, 4
        %v5109 = vshll.u32 %v4876, 16
        %v5111 = vrot.slane %v5109, 5
        %v5112 = vor.u32 %v5108, %v5111
        %v5113 = vrot.slane %v5112, 4
        %v5115 = vshll.u32 %v4877, 16
        %v5117 = vrot.slane %v5115, 5
        %v5118 = vsel %vm1376, %v5113, %v5117
        %v5119 = vshrl.u32 %v4877, 16
        %v5121 = vrot.slane %v5119, 4
        %v5122 = vor.u32 %v5121, %v5117
        %v5123 = vrot.slane %v5122, 4
        %v5125 = vshll.u32 %v4878, 16
        %v5127 = vrot.slane %v5125, 5
        %v5128 = vsel %vm1376, %v5123, %v5127
        %v5130 = vshrl.u32 %v4879, 16
        %v5132 = vrot.slane %v5130, 4
        %v5133 = vshll.u32 %v4879, 16
        %v5135 = vrot.slane %v5133, 5
        %v5136 = vor.u32 %v5132, %v5135
        %v5137 = vrot.slane %v5136, 4
        %v5139 = vshll.u32 %v4880, 16
        %v5141 = vrot.slane %v5139, 5
        %v5142 = vsel %vm1376, %v5137, %v5141
        %v5143 = vshrl.u32 %v4880, 16
        %v5145 = vrot.slane %v5143, 4
        %v5146 = vor.u32 %v5145, %v5141
        %v5147 = vrot.slane %v5146, 4
        %v5149 = vshll.u32 %v4881, 16
        %v5151 = vrot.slane %v5149, 5
        %v5152 = vsel %vm1376, %v5147, %v5151
        %v5154 = vshrl.u32 %v4882, 16
        %v5156 = vrot.slane %v5154, 4
        %v5157 = vshll.u32 %v4882, 16
        %v5159 = vrot.slane %v5157, 5
        %v5160 = vor.u32 %v5156, %v5159
        %v5161 = vrot.slane %v5160, 4
        %v5163 = vshll.u32 %v4883, 16
        %v5165 = vrot.slane %v5163, 5
        %v5166 = vsel %vm1376, %v5161, %v5165
        %v5167 = vshrl.u32 %v4883, 16
        %v5169 = vrot.slane %v5167, 4
        %v5170 = vor.u32 %v5169, %v5165
        %v5171 = vrot.slane %v5170, 4
        %v5173 = vshll.u32 %v4884, 16
        %v5175 = vrot.slane %v5173, 5
        %v5176 = vsel %vm1376, %v5171, %v5175
        %v5178 = vshrl.u32 %v4885, 16
        %v5180 = vrot.slane %v5178, 4
        %v5181 = vshll.u32 %v4885, 16
        %v5183 = vrot.slane %v5181, 5
        %v5184 = vor.u32 %v5180, %v5183
        %v5185 = vrot.slane %v5184, 4
        %v5187 = vshll.u32 %v4886, 16
        %v5189 = vrot.slane %v5187, 5
        %v5190 = vsel %vm1376, %v5185, %v5189
        %v5191 = vshrl.u32 %v4886, 16
        %v5193 = vrot.slane %v5191, 4
        %v5194 = vor.u32 %v5193, %v5189
        %v5195 = vrot.slane %v5194, 4
        %v5197 = vshll.u32 %v4887, 16
        %v5199 = vrot.slane %v5197, 5
        %v5200 = vsel %vm1376, %v5195, %v5199
        %v5202 = vshrl.u32 %v4888, 16
        %v5204 = vrot.slane %v5202, 4
        %v5205 = vshll.u32 %v4888, 16
        %v5207 = vrot.slane %v5205, 5
        %v5208 = vor.u32 %v5204, %v5207
        %v5209 = vrot.slane %v5208, 4
        %v5211 = vshll.u32 %v4889, 16
        %v5213 = vrot.slane %v5211, 5
        %v5214 = vsel %vm1376, %v5209, %v5213
        %v5215 = vshrl.u32 %v4889, 16
        %v5217 = vrot.slane %v5215, 4
        %v5218 = vor.u32 %v5217, %v5213
        %v5219 = vrot.slane %v5218, 4
        %v5221 = vshll.u32 %v4890, 16
        %v5223 = vrot.slane %v5221, 5
        %v5224 = vsel %vm1376, %v5219, %v5223
        %v5226 = vshrl.u32 %v4891, 16
        %v5228 = vrot.slane %v5226, 4
        %v5229 = vshll.u32 %v4891, 16
        %v5231 = vrot.slane %v5229, 5
        %v5232 = vor.u32 %v5228, %v5231
        %v5233 = vrot.slane %v5232, 4
        %v5235 = vshll.u32 %v4892, 16
        %v5237 = vrot.slane %v5235, 5
        %v5238 = vsel %vm1376, %v5233, %v5237
        %v5239 = vshrl.u32 %v4892, 16
        %v5241 = vrot.slane %v5239, 4
        %v5242 = vor.u32 %v5241, %v5237
        %v5243 = vrot.slane %v5242, 4
        %v5245 = vshll.u32 %v4893, 16
        %v5247 = vrot.slane %v5245, 5
        %v5248 = vsel %vm1376, %v5243, %v5247
        %v5250 = vshrl.u32 %v4894, 16
        %v5252 = vrot.slane %v5250, 4
        %v5253 = vshll.u32 %v4894, 16
        %v5255 = vrot.slane %v5253, 5
        %v5256 = vor.u32 %v5252, %v5255
        %v5257 = vrot.slane %v5256, 4
        %v5259 = vshll.u32 %v4895, 16
        %v5261 = vrot.slane %v5259, 5
        %v5262 = vsel %vm1376, %v5257, %v5261
        %v5263 = vshrl.u32 %v4895, 16
        %v5265 = vrot.slane %v5263, 4
        %v5266 = vor.u32 %v5265, %v5261
        %v5267 = vrot.slane %v5266, 4
        %v5269 = vshll.u32 %v4896, 16
        %v5271 = vrot.slane %v5269, 5
        %v5272 = vsel %vm1376, %v5267, %v5271
        %v5274 = vshrl.u32 %v4897, 16
        %v5276 = vrot.slane %v5274, 4
        %v5277 = vshll.u32 %v4897, 16
        %v5279 = vrot.slane %v5277, 5
        %v5280 = vor.u32 %v5276, %v5279
        %v5281 = vrot.slane %v5280, 4
        %v5283 = vshll.u32 %v4898, 16
        %v5285 = vrot.slane %v5283, 5
        %v5286 = vsel %vm1376, %v5281, %v5285
        %v5287 = vshrl.u32 %v4898, 16
        %v5289 = vrot.slane %v5287, 4
        %v5290 = vor.u32 %v5289, %v5285
        %v5291 = vrot.slane %v5290, 4
        %v5293 = vshll.u32 %v4899, 16
        %v5295 = vrot.slane %v5293, 5
        %v5296 = vsel %vm1376, %v5291, %v5295
        %v5298 = vshrl.u32 %v4900, 16
        %v5300 = vrot.slane %v5298, 4
        %v5301 = vshll.u32 %v4900, 16
        %v5303 = vrot.slane %v5301, 5
        %v5304 = vor.u32 %v5300, %v5303
        %v5305 = vrot.slane %v5304, 4
        %v5307 = vshll.u32 %v4901, 16
        %v5309 = vrot.slane %v5307, 5
        %v5310 = vsel %vm1376, %v5305, %v5309
        %v5311 = vshrl.u32 %v4901, 16
        %v5313 = vrot.slane %v5311, 4
        %v5314 = vor.u32 %v5313, %v5309
        %v5315 = vrot.slane %v5314, 4
        %v5317 = vshll.u32 %v4902, 16
        %v5319 = vrot.slane %v5317, 5
        %v5320 = vsel %vm1376, %v5315, %v5319
        %v5321 = vunpack.c.l.b16 %v4950
        %v5322 = vunpack.c.l.b16 %v4960
        %v5323 = vunpack.c.l.b16 %v4974
        %v5324 = vunpack.c.l.b16 %v4984
        %v5325 = vunpack.c.l.b16 %v4998
        %v5326 = vunpack.c.l.b16 %v5008
        %v5327 = vunpack.c.l.b16 %v5022
        %v5328 = vunpack.c.l.b16 %v5032
        %v5329 = vunpack.c.l.b16 %v5046
        %v5330 = vunpack.c.l.b16 %v5056
        %v5331 = vunpack.c.l.b16 %v5070
        %v5332 = vunpack.c.l.b16 %v5080
        %v5333 = vunpack.c.l.b16 %v5094
        %v5334 = vunpack.c.l.b16 %v5104
        %v5335 = vunpack.c.l.b16 %v5118
        %v5336 = vunpack.c.l.b16 %v5128
        %v5337 = vunpack.c.l.b16 %v5142
        %v5338 = vunpack.c.l.b16 %v5152
        %v5339 = vunpack.c.l.b16 %v5166
        %v5340 = vunpack.c.l.b16 %v5176
        %v5341 = vunpack.c.l.b16 %v5190
        %v5342 = vunpack.c.l.b16 %v5200
        %v5343 = vunpack.c.l.b16 %v5214
        %v5344 = vunpack.c.l.b16 %v5224
        %v5345 = vunpack.c.l.b16 %v5238
        %v5346 = vunpack.c.l.b16 %v5248
        %v5347 = vunpack.c.l.b16 %v5262
        %v5348 = vunpack.c.l.b16 %v5272
        %v5349 = vunpack.c.l.b16 %v5286
        %v5350 = vunpack.c.l.b16 %v5296
        %v5351 = vunpack.c.l.b16 %v5310
        %v5352 = vunpack.c.l.b16 %v5320
        %v5353 = vpack.c.b16 %v5322, %v5321
        %v5354 = vpack.c.b16 %v5324, %v5323
        %v5355 = vpack.c.b16 %v5326, %v5325
        %v5356 = vpack.c.b16 %v5328, %v5327
        %v5357 = vpack.c.b16 %v5330, %v5329
        %v5358 = vpack.c.b16 %v5332, %v5331
        %v5359 = vpack.c.b16 %v5334, %v5333
        %v5360 = vpack.c.b16 %v5336, %v5335
        %v5361 = vpack.c.b16 %v5338, %v5337
        %v5362 = vpack.c.b16 %v5340, %v5339
        %v5363 = vpack.c.b16 %v5342, %v5341
        %v5364 = vpack.c.b16 %v5344, %v5343
        %v5365 = vpack.c.b16 %v5346, %v5345
        %v5366 = vpack.c.b16 %v5348, %v5347
        %v5367 = vpack.c.b16 %v5350, %v5349
        %v5368 = vpack.c.b16 %v5352, %v5351
        %v5370 = vsel %vm1014, %v5353, 0
        %v5373 = vsel %vm1014, %v5354, 0
        %v5376 = vsel %vm1014, %v5355, 0
        %v5379 = vsel %vm1014, %v5356, 0
        %v5382 = vsel %vm1014, %v5357, 0
        %v5385 = vsel %vm1014, %v5358, 0
        %v5388 = vsel %vm1014, %v5359, 0
        %v5391 = vsel %vm1014, %v5360, 0
        %v5394 = vsel %vm1014, %v5361, 0
        %v5397 = vsel %vm1014, %v5362, 0
        %v5400 = vsel %vm1014, %v5363, 0
        %v5403 = vsel %vm1014, %v5364, 0
        %v5406 = vsel %vm1014, %v5365, 0
        %v5409 = vsel %vm1014, %v5366, 0
        %v5412 = vsel %vm1014, %v5367, 0
        %v5415 = vsel %vm1014, %v5368, 0
        %v5418 = vsel %vm1063, %v4936, 0
        %5420 = vmatprep.subr.bf16.mxu0 0
        %5421 = vmatpush1.bf16.msra.mxu0 %v5418
        %5422 = vmatprep.subr.bf16.mxu0 0
        %5423 = vmatpush1.bf16.msra.mxu0 0
        %5424 = vmatprep.subr.bf16.mxu0 0
        %5425 = vmatpush1.bf16.msra.mxu0 0
        %5426 = vmatprep.subr.bf16.mxu0 0
        %5427 = vmatpush1.bf16.msra.mxu0 0
        %5428 = vmatprep.subr.bf16.mxu0 0
        %5429 = vmatpush1.bf16.msra.mxu0 0
        %5430 = vmatprep.subr.bf16.mxu0 0
        %5431 = vmatpush1.bf16.msra.mxu0 0
        %5432 = vmatprep.subr.bf16.mxu0 0
        %5433 = vmatpush1.bf16.msra.mxu0 0
        %5434 = vmatprep.subr.bf16.mxu0 0
        %5435 = vmatpush1.bf16.msra.mxu0 0
        %5436 = vmatprep.subr.bf16.mxu0 0
        %5437 = vmatpush1.bf16.msra.mxu0 0
        %5438 = vmatprep.subr.bf16.mxu0 0
        %5439 = vmatpush1.bf16.msra.mxu0 0
        %5440 = vmatprep.subr.bf16.mxu0 0
        %5441 = vmatpush1.bf16.msra.mxu0 0
        %5442 = vmatprep.subr.bf16.mxu0 0
        %5443 = vmatpush1.bf16.msra.mxu0 0
        %5444 = vmatprep.subr.bf16.mxu0 0
        %5445 = vmatpush1.bf16.msra.mxu0 0
        %5446 = vmatprep.subr.bf16.mxu0 0
        %5447 = vmatpush1.bf16.msra.mxu0 0
        %5448 = vmatprep.subr.bf16.mxu0 0
        %5449 = vmatpush1.bf16.msra.mxu0 0
        %5450 = vmatprep.subr.bf16.mxu0 0
        %5451 = vmatpush1.bf16.msra.mxu0 0
        %5452 = vmatprep.mubr.bf16.mxu0 0
        %5453 = vmatmul.mubr.bf16.gmra.mrb[0].mxu0 %v5370
        %v5454 = vpop.f32.mrb[0].mxu0
        %v5455 = vadd.f32 0.0, %v5454
        %v5456 = vpop.f32.mrb[0].mxu0
        %v5457 = vpop.f32.mrb[0].mxu0
        %v5458 = vadd.f32 0.0, %v5457
        %v5459 = vpop.f32.mrb[0].mxu0
        %5460 = vmatprep.mubr.bf16.mxu0 0
        %5461 = vmatmul.mubr.bf16.gmra.mrb[0].mxu0 %v5373
        %v5462 = vpop.f32.mrb[0].mxu0
        %v5463 = vadd.f32 0.0, %v5462
        %v5464 = vpop.f32.mrb[0].mxu0
        %v5465 = vpop.f32.mrb[0].mxu0
        %v5466 = vadd.f32 0.0, %v5465
        %v5467 = vpop.f32.mrb[0].mxu0
        %5468 = vmatprep.mubr.bf16.mxu0 0
        %5469 = vmatmul.mubr.bf16.gmra.mrb[0].mxu0 %v5376
        %v5470 = vpop.f32.mrb[0].mxu0
        %v5471 = vadd.f32 0.0, %v5470
        %v5472 = vpop.f32.mrb[0].mxu0
        %v5473 = vpop.f32.mrb[0].mxu0
        %v5474 = vadd.f32 0.0, %v5473
        %v5475 = vpop.f32.mrb[0].mxu0
        %5476 = vmatprep.mubr.bf16.mxu0 0
        %5477 = vmatmul.mubr.bf16.gmra.mrb[0].mxu0 %v5379
        %v5478 = vpop.f32.mrb[0].mxu0
        %v5479 = vadd.f32 0.0, %v5478
        %v5480 = vpop.f32.mrb[0].mxu0
        %v5481 = vpop.f32.mrb[0].mxu0
        %v5482 = vadd.f32 0.0, %v5481
        %v5483 = vpop.f32.mrb[0].mxu0
        %5484 = vmatprep.mubr.bf16.mxu0 0
        %5485 = vmatmul.mubr.bf16.gmra.mrb[0].mxu0 %v5382
        %v5486 = vpop.f32.mrb[0].mxu0
        %v5487 = vadd.f32 0.0, %v5486
        %v5488 = vpop.f32.mrb[0].mxu0
        %v5489 = vpop.f32.mrb[0].mxu0
        %v5490 = vadd.f32 0.0, %v5489
        %v5491 = vpop.f32.mrb[0].mxu0
        %5492 = vmatprep.mubr.bf16.mxu0 0
        %5493 = vmatmul.mubr.bf16.gmra.mrb[0].mxu0 %v5385
        %v5494 = vpop.f32.mrb[0].mxu0
        %v5495 = vadd.f32 0.0, %v5494
        %v5496 = vpop.f32.mrb[0].mxu0
        %v5497 = vpop.f32.mrb[0].mxu0
        %v5498 = vadd.f32 0.0, %v5497
        %v5499 = vpop.f32.mrb[0].mxu0
        %5500 = vmatprep.mubr.bf16.mxu0 0
        %5501 = vmatmul.mubr.bf16.gmra.mrb[0].mxu0 %v5388
        %v5502 = vpop.f32.mrb[0].mxu0
        %v5503 = vadd.f32 0.0, %v5502
        %v5504 = vpop.f32.mrb[0].mxu0
        %v5505 = vpop.f32.mrb[0].mxu0
        %v5506 = vadd.f32 0.0, %v5505
        %v5507 = vpop.f32.mrb[0].mxu0
        %5508 = vmatprep.mubr.bf16.mxu0 0
        %5509 = vmatmul.mubr.bf16.gmra.mrb[0].mxu0 %v5391
        %v5510 = vpop.f32.mrb[0].mxu0
        %v5511 = vadd.f32 0.0, %v5510
        %v5512 = vpop.f32.mrb[0].mxu0
        %v5513 = vpop.f32.mrb[0].mxu0
        %v5514 = vadd.f32 0.0, %v5513
        %v5515 = vpop.f32.mrb[0].mxu0
        %5516 = vmatprep.mubr.bf16.mxu0 0
        %5517 = vmatmul.mubr.bf16.gmra.mrb[0].mxu0 %v5394
        %v5518 = vpop.f32.mrb[0].mxu0
        %v5519 = vadd.f32 0.0, %v5518
        %v5520 = vpop.f32.mrb[0].mxu0
        %v5521 = vpop.f32.mrb[0].mxu0
        %v5522 = vadd.f32 0.0, %v5521
        %v5523 = vpop.f32.mrb[0].mxu0
        %5524 = vmatprep.mubr.bf16.mxu0 0
        %5525 = vmatmul.mubr.bf16.gmra.mrb[0].mxu0 %v5397
        %v5526 = vpop.f32.mrb[0].mxu0
        %v5527 = vadd.f32 0.0, %v5526
        %v5528 = vpop.f32.mrb[0].mxu0
        %v5529 = vpop.f32.mrb[0].mxu0
        %v5530 = vadd.f32 0.0, %v5529
        %v5531 = vpop.f32.mrb[0].mxu0
        %5532 = vmatprep.mubr.bf16.mxu0 0
        %5533 = vmatmul.mubr.bf16.gmra.mrb[0].mxu0 %v5400
        %v5534 = vpop.f32.mrb[0].mxu0
        %v5535 = vadd.f32 0.0, %v5534
        %v5536 = vpop.f32.mrb[0].mxu0
        %v5537 = vpop.f32.mrb[0].mxu0
        %v5538 = vadd.f32 0.0, %v5537
        %v5539 = vpop.f32.mrb[0].mxu0
        %5540 = vmatprep.mubr.bf16.mxu0 0
        %5541 = vmatmul.mubr.bf16.gmra.mrb[0].mxu0 %v5403
        %v5542 = vpop.f32.mrb[0].mxu0
        %v5543 = vadd.f32 0.0, %v5542
        %v5544 = vpop.f32.mrb[0].mxu0
        %v5545 = vpop.f32.mrb[0].mxu0
        %v5546 = vadd.f32 0.0, %v5545
        %v5547 = vpop.f32.mrb[0].mxu0
        %5548 = vmatprep.mubr.bf16.mxu0 0
        %5549 = vmatmul.mubr.bf16.gmra.mrb[0].mxu0 %v5406
        %v5550 = vpop.f32.mrb[0].mxu0
        %v5551 = vadd.f32 0.0, %v5550
        %v5552 = vpop.f32.mrb[0].mxu0
        %v5553 = vpop.f32.mrb[0].mxu0
        %v5554 = vadd.f32 0.0, %v5553
        %v5555 = vpop.f32.mrb[0].mxu0
        %5556 = vmatprep.mubr.bf16.mxu0 0
        %5557 = vmatmul.mubr.bf16.gmra.mrb[0].mxu0 %v5409
        %v5558 = vpop.f32.mrb[0].mxu0
        %v5559 = vadd.f32 0.0, %v5558
        %v5560 = vpop.f32.mrb[0].mxu0
        %v5561 = vpop.f32.mrb[0].mxu0
        %v5562 = vadd.f32 0.0, %v5561
        %v5563 = vpop.f32.mrb[0].mxu0
        %5564 = vmatprep.mubr.bf16.mxu0 0
        %5565 = vmatmul.mubr.bf16.gmra.mrb[0].mxu0 %v5412
        %v5566 = vpop.f32.mrb[0].mxu0
        %v5567 = vadd.f32 0.0, %v5566
        %v5568 = vpop.f32.mrb[0].mxu0
        %v5569 = vpop.f32.mrb[0].mxu0
        %v5570 = vadd.f32 0.0, %v5569
        %v5571 = vpop.f32.mrb[0].mxu0
        %5572 = vmatprep.mubr.bf16.mxu0 0
        %5573 = vmatmul.mubr.bf16.gmra.mrb[0].mxu0 %v5415
        %v5574 = vpop.f32.mrb[0].mxu0
        %v5575 = vadd.f32 0.0, %v5574
        %v5576 = vpop.f32.mrb[0].mxu0
        %v5577 = vpop.f32.mrb[0].mxu0
        %v5578 = vadd.f32 0.0, %v5577
        %v5579 = vpop.f32.mrb[0].mxu0
        %5580 = vdwg.mxu0
        %v5581 = vadd.f32 %v4903, %v5455
        %v5582 = vadd.f32 %v4904, %v5458
        %v5583 = vadd.f32 %v4905, %v5463
        %v5584 = vadd.f32 %v4906, %v5466
        %v5585 = vadd.f32 %v4907, %v5471
        %v5586 = vadd.f32 %v4908, %v5474
        %v5587 = vadd.f32 %v4909, %v5479
        %v5588 = vadd.f32 %v4910, %v5482
        %v5589 = vadd.f32 %v4911, %v5487
        %v5590 = vadd.f32 %v4912, %v5490
        %v5591 = vadd.f32 %v4913, %v5495
        %v5592 = vadd.f32 %v4914, %v5498
        %v5593 = vadd.f32 %v4915, %v5503
        %v5594 = vadd.f32 %v4916, %v5506
        %v5595 = vadd.f32 %v4917, %v5511
        %v5596 = vadd.f32 %v4918, %v5514
        %v5597 = vadd.f32 %v4919, %v5519
        %v5598 = vadd.f32 %v4920, %v5522
        %v5599 = vadd.f32 %v4921, %v5527
        %v5600 = vadd.f32 %v4922, %v5530
        %v5601 = vadd.f32 %v4923, %v5535
        %v5602 = vadd.f32 %v4924, %v5538
        %v5603 = vadd.f32 %v4925, %v5543
        %v5604 = vadd.f32 %v4926, %v5546
        %v5605 = vadd.f32 %v4927, %v5551
        %v5606 = vadd.f32 %v4928, %v5554
        %v5607 = vadd.f32 %v4929, %v5559
        %v5608 = vadd.f32 %v4930, %v5562
        %v5609 = vadd.f32 %v4931, %v5567
        %v5610 = vadd.f32 %v4932, %v5570
        %v5611 = vadd.f32 %v4933, %v5575
        %v5612 = vadd.f32 %v4934, %v5578
        %5613 = vst [vmem:[#allocation3] sm:$0xff] %v5581
        %5614 = vst [vmem:[#allocation3 + $0x8] sm:$0xff] %v5582
        %5615 = vst [vmem:[#allocation3 + $0x10] sm:$0xff] %v5583
        %5616 = vst [vmem:[#allocation3 + $0x18] sm:$0xff] %v5584
        %5617 = vst [vmem:[#allocation3 + $0x20] sm:$0xff] %v5585
        %5618 = vst [vmem:[#allocation3 + $0x28] sm:$0xff] %v5586
        %5619 = vst [vmem:[#allocation3 + $0x30] sm:$0xff] %v5587
        %5620 = vst [vmem:[#allocation3 + $0x38] sm:$0xff] %v5588
        %5621 = vst [vmem:[#allocation3 + $0x40] sm:$0xff] %v5589
        %5622 = vst [vmem:[#allocation3 + $0x48] sm:$0xff] %v5590
        %5623 = vst [vmem:[#allocation3 + $0x50] sm:$0xff] %v5591
        %5624 = vst [vmem:[#allocation3 + $0x58] sm:$0xff] %v5592
        %5625 = vst [vmem:[#allocation3 + $0x60] sm:$0xff] %v5593
        %5626 = vst [vmem:[#allocation3 + $0x68] sm:$0xff] %v5594
        %5627 = vst [vmem:[#allocation3 + $0x70] sm:$0xff] %v5595
        %5628 = vst [vmem:[#allocation3 + $0x78] sm:$0xff] %v5596
        %5629 = vst [vmem:[#allocation3 + $0x80] sm:$0xff] %v5597
        %5630 = vst [vmem:[#allocation3 + $0x88] sm:$0xff] %v5598
        %5631 = vst [vmem:[#allocation3 + $0x90] sm:$0xff] %v5599
        %5632 = vst [vmem:[#allocation3 + $0x98] sm:$0xff] %v5600
        %5633 = vst [vmem:[#allocation3 + $0xa0] sm:$0xff] %v5601
        %5634 = vst [vmem:[#allocation3 + $0xa8] sm:$0xff] %v5602
        %5635 = vst [vmem:[#allocation3 + $0xb0] sm:$0xff] %v5603
        %5636 = vst [vmem:[#allocation3 + $0xb8] sm:$0xff] %v5604
        %5637 = vst [vmem:[#allocation3 + $0xc0] sm:$0xff] %v5605
        %5638 = vst [vmem:[#allocation3 + $0xc8] sm:$0xff] %v5606
        %5639 = vst [vmem:[#allocation3 + $0xd0] sm:$0xff] %v5607
        %5640 = vst [vmem:[#allocation3 + $0xd8] sm:$0xff] %v5608
        %5641 = vst [vmem:[#allocation3 + $0xe0] sm:$0xff] %v5609
        %5642 = vst [vmem:[#allocation3 + $0xe8] sm:$0xff] %v5610
        %5643 = vst [vmem:[#allocation3 + $0xf0] sm:$0xff] %v5611
        %5644 = vst [vmem:[#allocation3 + $0xf8] sm:$0xff] %v5612
        %v5645 = vld [vmem:[%s4432] sm:$0xe]
        %v5646 = vld [vmem:[%s4432 + $0x4] sm:$0xf]
        %v5647 = vld [vmem:[%s4432 + $0x8] sm:$0x1]
        %v5648 = vld [vmem:[%s4432 + $0xc] sm:$0xe]
        %v5649 = vld [vmem:[%s4432 + $0x10] sm:$0xf]
        %v5650 = vld [vmem:[%s4432 + $0x14] sm:$0x1]
        %v5651 = vld [vmem:[%s4432 + $0x18] sm:$0xe]
        %v5652 = vld [vmem:[%s4432 + $0x1c] sm:$0xf]
        %v5653 = vld [vmem:[%s4432 + $0x20] sm:$0x1]
        %v5654 = vld [vmem:[%s4432 + $0x24] sm:$0xe]
        %v5655 = vld [vmem:[%s4432 + $0x28] sm:$0xf]
        %v5656 = vld [vmem:[%s4432 + $0x2c] sm:$0x1]
        %v5657 = vld [vmem:[%s4432 + $0x30] sm:$0xe]
        %v5658 = vld [vmem:[%s4432 + $0x34] sm:$0xf]
        %v5659 = vld [vmem:[%s4432 + $0x38] sm:$0x1]
        %v5660 = vld [vmem:[%s4432 + $0x3c] sm:$0xe]
        %v5661 = vld [vmem:[%s4432 + $0x40] sm:$0xf]
        %v5662 = vld [vmem:[%s4432 + $0x44] sm:$0x1]
        %v5663 = vld [vmem:[%s4432 + $0x48] sm:$0xe]
        %v5664 = vld [vmem:[%s4432 + $0x4c] sm:$0xf]
        %v5665 = vld [vmem:[%s4432 + $0x50] sm:$0x1]
        %v5666 = vld [vmem:[%s4432 + $0x54] sm:$0xe]
        %v5667 = vld [vmem:[%s4432 + $0x58] sm:$0xf]
        %v5668 = vld [vmem:[%s4432 + $0x5c] sm:$0x1]
        %v5669 = vld [vmem:[%s4432 + $0x60] sm:$0xe]
        %v5670 = vld [vmem:[%s4432 + $0x64] sm:$0xf]
        %v5671 = vld [vmem:[%s4432 + $0x68] sm:$0x1]
        %v5672 = vld [vmem:[%s4432 + $0x6c] sm:$0xe]
        %v5673 = vld [vmem:[%s4432 + $0x70] sm:$0xf]
        %v5674 = vld [vmem:[%s4432 + $0x74] sm:$0x1]
        %v5675 = vld [vmem:[%s4432 + $0x78] sm:$0xe]
        %v5676 = vld [vmem:[%s4432 + $0x7c] sm:$0xf]
        %v5677 = vld [vmem:[%s4432 + $0x80] sm:$0x1]
        %v5678 = vld [vmem:[%s4432 + $0x84] sm:$0xe]
        %v5679 = vld [vmem:[%s4432 + $0x88] sm:$0xf]
        %v5680 = vld [vmem:[%s4432 + $0x8c] sm:$0x1]
        %v5681 = vld [vmem:[%s4432 + $0x90] sm:$0xe]
        %v5682 = vld [vmem:[%s4432 + $0x94] sm:$0xf]
        %v5683 = vld [vmem:[%s4432 + $0x98] sm:$0x1]
        %v5684 = vld [vmem:[%s4432 + $0x9c] sm:$0xe]
        %v5685 = vld [vmem:[%s4432 + $0xa0] sm:$0xf]
        %v5686 = vld [vmem:[%s4432 + $0xa4] sm:$0x1]
        %v5687 = vld [vmem:[%s4432 + $0xa8] sm:$0xe]
        %v5688 = vld [vmem:[%s4432 + $0xac] sm:$0xf]
        %v5689 = vld [vmem:[%s4432 + $0xb0] sm:$0x1]
        %v5690 = vld [vmem:[%s4432 + $0xb4] sm:$0xe]
        %v5691 = vld [vmem:[%s4432 + $0xb8] sm:$0xf]
        %v5692 = vld [vmem:[%s4432 + $0xbc] sm:$0x1]
        %v5693 = vld [vmem:[#allocation3] sm:$0xff]
        %v5694 = vld [vmem:[#allocation3 + $0x8] sm:$0xff]
        %v5695 = vld [vmem:[#allocation3 + $0x10] sm:$0xff]
        %v5696 = vld [vmem:[#allocation3 + $0x18] sm:$0xff]
        %v5697 = vld [vmem:[#allocation3 + $0x20] sm:$0xff]
        %v5698 = vld [vmem:[#allocation3 + $0x28] sm:$0xff]
        %v5699 = vld [vmem:[#allocation3 + $0x30] sm:$0xff]
        %v5700 = vld [vmem:[#allocation3 + $0x38] sm:$0xff]
        %v5701 = vld [vmem:[#allocation3 + $0x40] sm:$0xff]
        %v5702 = vld [vmem:[#allocation3 + $0x48] sm:$0xff]
        %v5703 = vld [vmem:[#allocation3 + $0x50] sm:$0xff]
        %v5704 = vld [vmem:[#allocation3 + $0x58] sm:$0xff]
        %v5705 = vld [vmem:[#allocation3 + $0x60] sm:$0xff]
        %v5706 = vld [vmem:[#allocation3 + $0x68] sm:$0xff]
        %v5707 = vld [vmem:[#allocation3 + $0x70] sm:$0xff]
        %v5708 = vld [vmem:[#allocation3 + $0x78] sm:$0xff]
        %v5709 = vld [vmem:[#allocation3 + $0x80] sm:$0xff]
        %v5710 = vld [vmem:[#allocation3 + $0x88] sm:$0xff]
        %v5711 = vld [vmem:[#allocation3 + $0x90] sm:$0xff]
        %v5712 = vld [vmem:[#allocation3 + $0x98] sm:$0xff]
        %v5713 = vld [vmem:[#allocation3 + $0xa0] sm:$0xff]
        %v5714 = vld [vmem:[#allocation3 + $0xa8] sm:$0xff]
        %v5715 = vld [vmem:[#allocation3 + $0xb0] sm:$0xff]
        %v5716 = vld [vmem:[#allocation3 + $0xb8] sm:$0xff]
        %v5717 = vld [vmem:[#allocation3 + $0xc0] sm:$0xff]
        %v5718 = vld [vmem:[#allocation3 + $0xc8] sm:$0xff]
        %v5719 = vld [vmem:[#allocation3 + $0xd0] sm:$0xff]
        %v5720 = vld [vmem:[#allocation3 + $0xd8] sm:$0xff]
        %v5721 = vld [vmem:[#allocation3 + $0xe0] sm:$0xff]
        %v5722 = vld [vmem:[#allocation3 + $0xe8] sm:$0xff]
        %v5723 = vld [vmem:[#allocation3 + $0xf0] sm:$0xff]
        %v5724 = vld [vmem:[#allocation3 + $0xf8] sm:$0xff]
        %s5725 = scalar_lea.vmem %s302, 32
        %v5726 = vld [vmem:[%s5725] sm:$0xf]
        %v5775 = vrot.slane %v5645, 5
        %v5776 = vrot.slane %v5775, 4
        %v5777 = vrot.slane %v5646, 5
        %v5778 = vsel %vm2217, %v5776, %v5777
        %v5779 = vrot.slane %v5777, 4
        %v5780 = vrot.slane %v5647, 5
        %v5781 = vsel %vm2217, %v5779, %v5780
        %v5782 = vrot.slane %v5648, 5
        %v5783 = vrot.slane %v5782, 4
        %v5784 = vrot.slane %v5649, 5
        %v5785 = vsel %vm2217, %v5783, %v5784
        %v5786 = vrot.slane %v5784, 4
        %v5787 = vrot.slane %v5650, 5
        %v5788 = vsel %vm2217, %v5786, %v5787
        %v5789 = vrot.slane %v5651, 5
        %v5790 = vrot.slane %v5789, 4
        %v5791 = vrot.slane %v5652, 5
        %v5792 = vsel %vm2217, %v5790, %v5791
        %v5793 = vrot.slane %v5791, 4
        %v5794 = vrot.slane %v5653, 5
        %v5795 = vsel %vm2217, %v5793, %v5794
        %v5796 = vrot.slane %v5654, 5
        %v5797 = vrot.slane %v5796, 4
        %v5798 = vrot.slane %v5655, 5
        %v5799 = vsel %vm2217, %v5797, %v5798
        %v5800 = vrot.slane %v5798, 4
        %v5801 = vrot.slane %v5656, 5
        %v5802 = vsel %vm2217, %v5800, %v5801
        %v5803 = vrot.slane %v5657, 5
        %v5804 = vrot.slane %v5803, 4
        %v5805 = vrot.slane %v5658, 5
        %v5806 = vsel %vm2217, %v5804, %v5805
        %v5807 = vrot.slane %v5805, 4
        %v5808 = vrot.slane %v5659, 5
        %v5809 = vsel %vm2217, %v5807, %v5808
        %v5810 = vrot.slane %v5660, 5
        %v5811 = vrot.slane %v5810, 4
        %v5812 = vrot.slane %v5661, 5
        %v5813 = vsel %vm2217, %v5811, %v5812
        %v5814 = vrot.slane %v5812, 4
        %v5815 = vrot.slane %v5662, 5
        %v5816 = vsel %vm2217, %v5814, %v5815
        %v5817 = vrot.slane %v5663, 5
        %v5818 = vrot.slane %v5817, 4
        %v5819 = vrot.slane %v5664, 5
        %v5820 = vsel %vm2217, %v5818, %v5819
        %v5821 = vrot.slane %v5819, 4
        %v5822 = vrot.slane %v5665, 5
        %v5823 = vsel %vm2217, %v5821, %v5822
        %v5824 = vrot.slane %v5666, 5
        %v5825 = vrot.slane %v5824, 4
        %v5826 = vrot.slane %v5667, 5
        %v5827 = vsel %vm2217, %v5825, %v5826
        %v5828 = vrot.slane %v5826, 4
        %v5829 = vrot.slane %v5668, 5
        %v5830 = vsel %vm2217, %v5828, %v5829
        %v5831 = vrot.slane %v5669, 5
        %v5832 = vrot.slane %v5831, 4
        %v5833 = vrot.slane %v5670, 5
        %v5834 = vsel %vm2217, %v5832, %v5833
        %v5835 = vrot.slane %v5833, 4
        %v5836 = vrot.slane %v5671, 5
        %v5837 = vsel %vm2217, %v5835, %v5836
        %v5838 = vrot.slane %v5672, 5
        %v5839 = vrot.slane %v5838, 4
        %v5840 = vrot.slane %v5673, 5
        %v5841 = vsel %vm2217, %v5839, %v5840
        %v5842 = vrot.slane %v5840, 4
        %v5843 = vrot.slane %v5674, 5
        %v5844 = vsel %vm2217, %v5842, %v5843
        %v5845 = vrot.slane %v5675, 5
        %v5846 = vrot.slane %v5845, 4
        %v5847 = vrot.slane %v5676, 5
        %v5848 = vsel %vm2217, %v5846, %v5847
        %v5849 = vrot.slane %v5847, 4
        %v5850 = vrot.slane %v5677, 5
        %v5851 = vsel %vm2217, %v5849, %v5850
        %v5852 = vrot.slane %v5678, 5
        %v5853 = vrot.slane %v5852, 4
        %v5854 = vrot.slane %v5679, 5
        %v5855 = vsel %vm2217, %v5853, %v5854
        %v5856 = vrot.slane %v5854, 4
        %v5857 = vrot.slane %v5680, 5
        %v5858 = vsel %vm2217, %v5856, %v5857
        %v5859 = vrot.slane %v5681, 5
        %v5860 = vrot.slane %v5859, 4
        %v5861 = vrot.slane %v5682, 5
        %v5862 = vsel %vm2217, %v5860, %v5861
        %v5863 = vrot.slane %v5861, 4
        %v5864 = vrot.slane %v5683, 5
        %v5865 = vsel %vm2217, %v5863, %v5864
        %v5866 = vrot.slane %v5684, 5
        %v5867 = vrot.slane %v5866, 4
        %v5868 = vrot.slane %v5685, 5
        %v5869 = vsel %vm2217, %v5867, %v5868
        %v5870 = vrot.slane %v5868, 4
        %v5871 = vrot.slane %v5686, 5
        %v5872 = vsel %vm2217, %v5870, %v5871
        %v5873 = vrot.slane %v5687, 5
        %v5874 = vrot.slane %v5873, 4
        %v5875 = vrot.slane %v5688, 5
        %v5876 = vsel %vm2217, %v5874, %v5875
        %v5877 = vrot.slane %v5875, 4
        %v5878 = vrot.slane %v5689, 5
        %v5879 = vsel %vm2217, %v5877, %v5878
        %v5880 = vrot.slane %v5690, 5
        %v5881 = vrot.slane %v5880, 4
        %v5882 = vrot.slane %v5691, 5
        %v5883 = vsel %vm2217, %v5881, %v5882
        %v5884 = vrot.slane %v5882, 4
        %v5885 = vrot.slane %v5692, 5
        %v5886 = vsel %vm2217, %v5884, %v5885
        %v5887 = vunpack.c.l.b16 %v5778
        %v5888 = vunpack.c.l.b16 %v5781
        %v5889 = vunpack.c.l.b16 %v5785
        %v5890 = vunpack.c.l.b16 %v5788
        %v5891 = vunpack.c.l.b16 %v5792
        %v5892 = vunpack.c.l.b16 %v5795
        %v5893 = vunpack.c.l.b16 %v5799
        %v5894 = vunpack.c.l.b16 %v5802
        %v5895 = vunpack.c.l.b16 %v5806
        %v5896 = vunpack.c.l.b16 %v5809
        %v5897 = vunpack.c.l.b16 %v5813
        %v5898 = vunpack.c.l.b16 %v5816
        %v5899 = vunpack.c.l.b16 %v5820
        %v5900 = vunpack.c.l.b16 %v5823
        %v5901 = vunpack.c.l.b16 %v5827
        %v5902 = vunpack.c.l.b16 %v5830
        %v5903 = vunpack.c.l.b16 %v5834
        %v5904 = vunpack.c.l.b16 %v5837
        %v5905 = vunpack.c.l.b16 %v5841
        %v5906 = vunpack.c.l.b16 %v5844
        %v5907 = vunpack.c.l.b16 %v5848
        %v5908 = vunpack.c.l.b16 %v5851
        %v5909 = vunpack.c.l.b16 %v5855
        %v5910 = vunpack.c.l.b16 %v5858
        %v5911 = vunpack.c.l.b16 %v5862
        %v5912 = vunpack.c.l.b16 %v5865
        %v5913 = vunpack.c.l.b16 %v5869
        %v5914 = vunpack.c.l.b16 %v5872
        %v5915 = vunpack.c.l.b16 %v5876
        %v5916 = vunpack.c.l.b16 %v5879
        %v5917 = vunpack.c.l.b16 %v5883
        %v5918 = vunpack.c.l.b16 %v5886
        %v5919 = vpack.c.b16 %v5888, %v5887
        %v5920 = vpack.c.b16 %v5890, %v5889
        %v5921 = vpack.c.b16 %v5892, %v5891
        %v5922 = vpack.c.b16 %v5894, %v5893
        %v5923 = vpack.c.b16 %v5896, %v5895
        %v5924 = vpack.c.b16 %v5898, %v5897
        %v5925 = vpack.c.b16 %v5900, %v5899
        %v5926 = vpack.c.b16 %v5902, %v5901
        %v5927 = vpack.c.b16 %v5904, %v5903
        %v5928 = vpack.c.b16 %v5906, %v5905
        %v5929 = vpack.c.b16 %v5908, %v5907
        %v5930 = vpack.c.b16 %v5910, %v5909
        %v5931 = vpack.c.b16 %v5912, %v5911
        %v5932 = vpack.c.b16 %v5914, %v5913
        %v5933 = vpack.c.b16 %v5916, %v5915
        %v5934 = vpack.c.b16 %v5918, %v5917
        %v5936 = vsel %vm1014, %v5919, 0
        %v5939 = vsel %vm1014, %v5920, 0
        %v5942 = vsel %vm1014, %v5921, 0
        %v5945 = vsel %vm1014, %v5922, 0
        %v5948 = vsel %vm1014, %v5923, 0
        %v5951 = vsel %vm1014, %v5924, 0
        %v5954 = vsel %vm1014, %v5925, 0
        %v5957 = vsel %vm1014, %v5926, 0
        %v5960 = vsel %vm1014, %v5927, 0
        %v5963 = vsel %vm1014, %v5928, 0
        %v5966 = vsel %vm1014, %v5929, 0
        %v5969 = vsel %vm1014, %v5930, 0
        %v5972 = vsel %vm1014, %v5931, 0
        %v5975 = vsel %vm1014, %v5932, 0
        %v5978 = vsel %vm1014, %v5933, 0
        %v5981 = vsel %vm1014, %v5934, 0
        %v5984 = vsel %vm1063, %v5726, 0
        %5986 = vmatprep.subr.bf16.mxu0 0
        %5987 = vmatpush1.bf16.msra.mxu0 %v5984
        %5988 = vmatprep.subr.bf16.mxu0 0
        %5989 = vmatpush1.bf16.msra.mxu0 0
        %5990 = vmatprep.subr.bf16.mxu0 0
        %5991 = vmatpush1.bf16.msra.mxu0 0
        %5992 = vmatprep.subr.bf16.mxu0 0
        %5993 = vmatpush1.bf16.msra.mxu0 0
        %5994 = vmatprep.subr.bf16.mxu0 0
        %5995 = vmatpush1.bf16.msra.mxu0 0
        %5996 = vmatprep.subr.bf16.mxu0 0
        %5997 = vmatpush1.bf16.msra.mxu0 0
        %5998 = vmatprep.subr.bf16.mxu0 0
        %5999 = vmatpush1.bf16.msra.mxu0 0
        %6000 = vmatprep.subr.bf16.mxu0 0
        %6001 = vmatpush1.bf16.msra.mxu0 0
        %6002 = vmatprep.subr.bf16.mxu0 0
        %6003 = vmatpush1.bf16.msra.mxu0 0
        %6004 = vmatprep.subr.bf16.mxu0 0
        %6005 = vmatpush1.bf16.msra.mxu0 0
        %6006 = vmatprep.subr.bf16.mxu0 0
        %6007 = vmatpush1.bf16.msra.mxu0 0
        %6008 = vmatprep.subr.bf16.mxu0 0
        %6009 = vmatpush1.bf16.msra.mxu0 0
        %6010 = vmatprep.subr.bf16.mxu0 0
        %6011 = vmatpush1.bf16.msra.mxu0 0
        %6012 = vmatprep.subr.bf16.mxu0 0
        %6013 = vmatpush1.bf16.msra.mxu0 0
        %6014 = vmatprep.subr.bf16.mxu0 0
        %6015 = vmatpush1.bf16.msra.mxu0 0
        %6016 = vmatprep.subr.bf16.mxu0 0
        %6017 = vmatpush1.bf16.msra.mxu0 0
        %6018 = vmatprep.mubr.bf16.mxu0 0
        %6019 = vmatmul.mubr.bf16.gmra.mrb[0].mxu0 %v5936
        %v6020 = vpop.f32.mrb[0].mxu0
        %v6021 = vadd.f32 0.0, %v6020
        %v6022 = vpop.f32.mrb[0].mxu0
        %v6023 = vpop.f32.mrb[0].mxu0
        %v6024 = vadd.f32 0.0, %v6023
        %v6025 = vpop.f32.mrb[0].mxu0
        %6026 = vmatprep.mubr.bf16.mxu0 0
        %6027 = vmatmul.mubr.bf16.gmra.mrb[0].mxu0 %v5939
        %v6028 = vpop.f32.mrb[0].mxu0
        %v6029 = vadd.f32 0.0, %v6028
        %v6030 = vpop.f32.mrb[0].mxu0
        %v6031 = vpop.f32.mrb[0].mxu0
        %v6032 = vadd.f32 0.0, %v6031
        %v6033 = vpop.f32.mrb[0].mxu0
        %6034 = vmatprep.mubr.bf16.mxu0 0
        %6035 = vmatmul.mubr.bf16.gmra.mrb[0].mxu0 %v5942
        %v6036 = vpop.f32.mrb[0].mxu0
        %v6037 = vadd.f32 0.0, %v6036
        %v6038 = vpop.f32.mrb[0].mxu0
        %v6039 = vpop.f32.mrb[0].mxu0
        %v6040 = vadd.f32 0.0, %v6039
        %v6041 = vpop.f32.mrb[0].mxu0
        %6042 = vmatprep.mubr.bf16.mxu0 0
        %6043 = vmatmul.mubr.bf16.gmra.mrb[0].mxu0 %v5945
        %v6044 = vpop.f32.mrb[0].mxu0
        %v6045 = vadd.f32 0.0, %v6044
        %v6046 = vpop.f32.mrb[0].mxu0
        %v6047 = vpop.f32.mrb[0].mxu0
        %v6048 = vadd.f32 0.0, %v6047
        %v6049 = vpop.f32.mrb[0].mxu0
        %6050 = vmatprep.mubr.bf16.mxu0 0
        %6051 = vmatmul.mubr.bf16.gmra.mrb[0].mxu0 %v5948
        %v6052 = vpop.f32.mrb[0].mxu0
        %v6053 = vadd.f32 0.0, %v6052
        %v6054 = vpop.f32.mrb[0].mxu0
        %v6055 = vpop.f32.mrb[0].mxu0
        %v6056 = vadd.f32 0.0, %v6055
        %v6057 = vpop.f32.mrb[0].mxu0
        %6058 = vmatprep.mubr.bf16.mxu0 0
        %6059 = vmatmul.mubr.bf16.gmra.mrb[0].mxu0 %v5951
        %v6060 = vpop.f32.mrb[0].mxu0
        %v6061 = vadd.f32 0.0, %v6060
        %v6062 = vpop.f32.mrb[0].mxu0
        %v6063 = vpop.f32.mrb[0].mxu0
        %v6064 = vadd.f32 0.0, %v6063
        %v6065 = vpop.f32.mrb[0].mxu0
        %6066 = vmatprep.mubr.bf16.mxu0 0
        %6067 = vmatmul.mubr.bf16.gmra.mrb[0].mxu0 %v5954
        %v6068 = vpop.f32.mrb[0].mxu0
        %v6069 = vadd.f32 0.0, %v6068
        %v6070 = vpop.f32.mrb[0].mxu0
        %v6071 = vpop.f32.mrb[0].mxu0
        %v6072 = vadd.f32 0.0, %v6071
        %v6073 = vpop.f32.mrb[0].mxu0
        %6074 = vmatprep.mubr.bf16.mxu0 0
        %6075 = vmatmul.mubr.bf16.gmra.mrb[0].mxu0 %v5957
        %v6076 = vpop.f32.mrb[0].mxu0
        %v6077 = vadd.f32 0.0, %v6076
        %v6078 = vpop.f32.mrb[0].mxu0
        %v6079 = vpop.f32.mrb[0].mxu0
        %v6080 = vadd.f32 0.0, %v6079
        %v6081 = vpop.f32.mrb[0].mxu0
        %6082 = vmatprep.mubr.bf16.mxu0 0
        %6083 = vmatmul.mubr.bf16.gmra.mrb[0].mxu0 %v5960
        %v6084 = vpop.f32.mrb[0].mxu0
        %v6085 = vadd.f32 0.0, %v6084
        %v6086 = vpop.f32.mrb[0].mxu0
        %v6087 = vpop.f32.mrb[0].mxu0
        %v6088 = vadd.f32 0.0, %v6087
        %v6089 = vpop.f32.mrb[0].mxu0
        %6090 = vmatprep.mubr.bf16.mxu0 0
        %6091 = vmatmul.mubr.bf16.gmra.mrb[0].mxu0 %v5963
        %v6092 = vpop.f32.mrb[0].mxu0
        %v6093 = vadd.f32 0.0, %v6092
        %v6094 = vpop.f32.mrb[0].mxu0
        %v6095 = vpop.f32.mrb[0].mxu0
        %v6096 = vadd.f32 0.0, %v6095
        %v6097 = vpop.f32.mrb[0].mxu0
        %6098 = vmatprep.mubr.bf16.mxu0 0
        %6099 = vmatmul.mubr.bf16.gmra.mrb[0].mxu0 %v5966
        %v6100 = vpop.f32.mrb[0].mxu0
        %v6101 = vadd.f32 0.0, %v6100
        %v6102 = vpop.f32.mrb[0].mxu0
        %v6103 = vpop.f32.mrb[0].mxu0
        %v6104 = vadd.f32 0.0, %v6103
        %v6105 = vpop.f32.mrb[0].mxu0
        %6106 = vmatprep.mubr.bf16.mxu0 0
        %6107 = vmatmul.mubr.bf16.gmra.mrb[0].mxu0 %v5969
        %v6108 = vpop.f32.mrb[0].mxu0
        %v6109 = vadd.f32 0.0, %v6108
        %v6110 = vpop.f32.mrb[0].mxu0
        %v6111 = vpop.f32.mrb[0].mxu0
        %v6112 = vadd.f32 0.0, %v6111
        %v6113 = vpop.f32.mrb[0].mxu0
        %6114 = vmatprep.mubr.bf16.mxu0 0
        %6115 = vmatmul.mubr.bf16.gmra.mrb[0].mxu0 %v5972
        %v6116 = vpop.f32.mrb[0].mxu0
        %v6117 = vadd.f32 0.0, %v6116
        %v6118 = vpop.f32.mrb[0].mxu0
        %v6119 = vpop.f32.mrb[0].mxu0
        %v6120 = vadd.f32 0.0, %v6119
        %v6121 = vpop.f32.mrb[0].mxu0
        %6122 = vmatprep.mubr.bf16.mxu0 0
        %6123 = vmatmul.mubr.bf16.gmra.mrb[0].mxu0 %v5975
        %v6124 = vpop.f32.mrb[0].mxu0
        %v6125 = vadd.f32 0.0, %v6124
        %v6126 = vpop.f32.mrb[0].mxu0
        %v6127 = vpop.f32.mrb[0].mxu0
        %v6128 = vadd.f32 0.0, %v6127
        %v6129 = vpop.f32.mrb[0].mxu0
        %6130 = vmatprep.mubr.bf16.mxu0 0
        %6131 = vmatmul.mubr.bf16.gmra.mrb[0].mxu0 %v5978
        %v6132 = vpop.f32.mrb[0].mxu0
        %v6133 = vadd.f32 0.0, %v6132
        %v6134 = vpop.f32.mrb[0].mxu0
        %v6135 = vpop.f32.mrb[0].mxu0
        %v6136 = vadd.f32 0.0, %v6135
        %v6137 = vpop.f32.mrb[0].mxu0
        %6138 = vmatprep.mubr.bf16.mxu0 0
        %6139 = vmatmul.mubr.bf16.gmra.mrb[0].mxu0 %v5981
        %v6140 = vpop.f32.mrb[0].mxu0
        %v6141 = vadd.f32 0.0, %v6140
        %v6142 = vpop.f32.mrb[0].mxu0
        %v6143 = vpop.f32.mrb[0].mxu0
        %v6144 = vadd.f32 0.0, %v6143
        %v6145 = vpop.f32.mrb[0].mxu0
        %6146 = vdwg.mxu0
        %v6147 = vadd.f32 %v5693, %v6021
        %v6148 = vadd.f32 %v5694, %v6024
        %v6149 = vadd.f32 %v5695, %v6029
        %v6150 = vadd.f32 %v5696, %v6032
        %v6151 = vadd.f32 %v5697, %v6037
        %v6152 = vadd.f32 %v5698, %v6040
        %v6153 = vadd.f32 %v5699, %v6045
        %v6154 = vadd.f32 %v5700, %v6048
        %v6155 = vadd.f32 %v5701, %v6053
        %v6156 = vadd.f32 %v5702, %v6056
        %v6157 = vadd.f32 %v5703, %v6061
        %v6158 = vadd.f32 %v5704, %v6064
        %v6159 = vadd.f32 %v5705, %v6069
        %v6160 = vadd.f32 %v5706, %v6072
        %v6161 = vadd.f32 %v5707, %v6077
        %v6162 = vadd.f32 %v5708, %v6080
        %v6163 = vadd.f32 %v5709, %v6085
        %v6164 = vadd.f32 %v5710, %v6088
        %v6165 = vadd.f32 %v5711, %v6093
        %v6166 = vadd.f32 %v5712, %v6096
        %v6167 = vadd.f32 %v5713, %v6101
        %v6168 = vadd.f32 %v5714, %v6104
        %v6169 = vadd.f32 %v5715, %v6109
        %v6170 = vadd.f32 %v5716, %v6112
        %v6171 = vadd.f32 %v5717, %v6117
        %v6172 = vadd.f32 %v5718, %v6120
        %v6173 = vadd.f32 %v5719, %v6125
        %v6174 = vadd.f32 %v5720, %v6128
        %v6175 = vadd.f32 %v5721, %v6133
        %v6176 = vadd.f32 %v5722, %v6136
        %v6177 = vadd.f32 %v5723, %v6141
        %v6178 = vadd.f32 %v5724, %v6144
        %6179 = vst [vmem:[#allocation3] sm:$0xff] %v6147
        %6180 = vst [vmem:[#allocation3 + $0x8] sm:$0xff] %v6148
        %6181 = vst [vmem:[#allocation3 + $0x10] sm:$0xff] %v6149
        %6182 = vst [vmem:[#allocation3 + $0x18] sm:$0xff] %v6150
        %6183 = vst [vmem:[#allocation3 + $0x20] sm:$0xff] %v6151
        %6184 = vst [vmem:[#allocation3 + $0x28] sm:$0xff] %v6152
        %6185 = vst [vmem:[#allocation3 + $0x30] sm:$0xff] %v6153
        %6186 = vst [vmem:[#allocation3 + $0x38] sm:$0xff] %v6154
        %6187 = vst [vmem:[#allocation3 + $0x40] sm:$0xff] %v6155
        %6188 = vst [vmem:[#allocation3 + $0x48] sm:$0xff] %v6156
        %6189 = vst [vmem:[#allocation3 + $0x50] sm:$0xff] %v6157
        %6190 = vst [vmem:[#allocation3 + $0x58] sm:$0xff] %v6158
        %6191 = vst [vmem:[#allocation3 + $0x60] sm:$0xff] %v6159
        %6192 = vst [vmem:[#allocation3 + $0x68] sm:$0xff] %v6160
        %6193 = vst [vmem:[#allocation3 + $0x70] sm:$0xff] %v6161
        %6194 = vst [vmem:[#allocation3 + $0x78] sm:$0xff] %v6162
        %6195 = vst [vmem:[#allocation3 + $0x80] sm:$0xff] %v6163
        %6196 = vst [vmem:[#allocation3 + $0x88] sm:$0xff] %v6164
        %6197 = vst [vmem:[#allocation3 + $0x90] sm:$0xff] %v6165
        %6198 = vst [vmem:[#allocation3 + $0x98] sm:$0xff] %v6166
        %6199 = vst [vmem:[#allocation3 + $0xa0] sm:$0xff] %v6167
        %6200 = vst [vmem:[#allocation3 + $0xa8] sm:$0xff] %v6168
        %6201 = vst [vmem:[#allocation3 + $0xb0] sm:$0xff] %v6169
        %6202 = vst [vmem:[#allocation3 + $0xb8] sm:$0xff] %v6170
        %6203 = vst [vmem:[#allocation3 + $0xc0] sm:$0xff] %v6171
        %6204 = vst [vmem:[#allocation3 + $0xc8] sm:$0xff] %v6172
        %6205 = vst [vmem:[#allocation3 + $0xd0] sm:$0xff] %v6173
        %6206 = vst [vmem:[#allocation3 + $0xd8] sm:$0xff] %v6174
        %6207 = vst [vmem:[#allocation3 + $0xe0] sm:$0xff] %v6175
        %6208 = vst [vmem:[#allocation3 + $0xe8] sm:$0xff] %v6176
        %6209 = vst [vmem:[#allocation3 + $0xf0] sm:$0xff] %v6177
        %6210 = vst [vmem:[#allocation3 + $0xf8] sm:$0xff] %v6178
        // Predicated region
        $region49: #{tpu_custom_call.1} parent=39 // pred_check
          %p6211 = pneg %p304
        $region50: #{tpu_custom_call.1} parent=39 // pred_check_branch
          %6213 = sbr.rel (%p6211) target = $region52
        $region51: #{tpu_custom_call.1} parent=39 // pred_region
          %v6214 = vld [vmem:[#allocation3] sm:$0xff]
          %v6215 = vld [vmem:[#allocation3 + $0x8] sm:$0xff]
          %v6216 = vld [vmem:[#allocation3 + $0x10] sm:$0xff]
          %v6217 = vld [vmem:[#allocation3 + $0x18] sm:$0xff]
          %v6218 = vld [vmem:[#allocation3 + $0x20] sm:$0xff]
          %v6219 = vld [vmem:[#allocation3 + $0x28] sm:$0xff]
          %v6220 = vld [vmem:[#allocation3 + $0x30] sm:$0xff]
          %v6221 = vld [vmem:[#allocation3 + $0x38] sm:$0xff]
          %v6222 = vld [vmem:[#allocation3 + $0x40] sm:$0xff]
          %v6223 = vld [vmem:[#allocation3 + $0x48] sm:$0xff]
          %v6224 = vld [vmem:[#allocation3 + $0x50] sm:$0xff]
          %v6225 = vld [vmem:[#allocation3 + $0x58] sm:$0xff]
          %v6226 = vld [vmem:[#allocation3 + $0x60] sm:$0xff]
          %v6227 = vld [vmem:[#allocation3 + $0x68] sm:$0xff]
          %v6228 = vld [vmem:[#allocation3 + $0x70] sm:$0xff]
          %v6229 = vld [vmem:[#allocation3 + $0x78] sm:$0xff]
          %v6230 = vld [vmem:[#allocation3 + $0x80] sm:$0xff]
          %v6231 = vld [vmem:[#allocation3 + $0x88] sm:$0xff]
          %v6232 = vld [vmem:[#allocation3 + $0x90] sm:$0xff]
          %v6233 = vld [vmem:[#allocation3 + $0x98] sm:$0xff]
          %v6234 = vld [vmem:[#allocation3 + $0xa0] sm:$0xff]
          %v6235 = vld [vmem:[#allocation3 + $0xa8] sm:$0xff]
          %v6236 = vld [vmem:[#allocation3 + $0xb0] sm:$0xff]
          %v6237 = vld [vmem:[#allocation3 + $0xb8] sm:$0xff]
          %v6238 = vld [vmem:[#allocation3 + $0xc0] sm:$0xff]
          %v6239 = vld [vmem:[#allocation3 + $0xc8] sm:$0xff]
          %v6240 = vld [vmem:[#allocation3 + $0xd0] sm:$0xff]
          %v6241 = vld [vmem:[#allocation3 + $0xd8] sm:$0xff]
          %v6242 = vld [vmem:[#allocation3 + $0xe0] sm:$0xff]
          %v6243 = vld [vmem:[#allocation3 + $0xe8] sm:$0xff]
          %v6244 = vld [vmem:[#allocation3 + $0xf0] sm:$0xff]
          %v6245 = vld [vmem:[#allocation3 + $0xf8] sm:$0xff]
          %v6246 = vld [vmem:[%s252] sm:$0xff]
          %v6247 = vld [vmem:[%s252 + $0x8] sm:$0xff]
          %v6248 = vld [vmem:[%s252 + $0x10] sm:$0xff]
          %v6249 = vld [vmem:[%s252 + $0x18] sm:$0xff]
          %v6250 = vld [vmem:[%s252 + $0x20] sm:$0xff]
          %v6251 = vld [vmem:[%s252 + $0x28] sm:$0xff]
          %v6252 = vld [vmem:[%s252 + $0x30] sm:$0xff]
          %v6253 = vld [vmem:[%s252 + $0x38] sm:$0xff]
          %v6254 = vld [vmem:[%s252 + $0x40] sm:$0xff]
          %v6255 = vld [vmem:[%s252 + $0x48] sm:$0xff]
          %v6256 = vld [vmem:[%s252 + $0x50] sm:$0xff]
          %v6257 = vld [vmem:[%s252 + $0x58] sm:$0xff]
          %v6258 = vld [vmem:[%s252 + $0x60] sm:$0xff]
          %v6259 = vld [vmem:[%s252 + $0x68] sm:$0xff]
          %v6260 = vld [vmem:[%s252 + $0x70] sm:$0xff]
          %v6261 = vld [vmem:[%s252 + $0x78] sm:$0xff]
          %v6262 = vld [vmem:[%s252 + $0x80] sm:$0xff]
          %v6263 = vld [vmem:[%s252 + $0x88] sm:$0xff]
          %v6264 = vld [vmem:[%s252 + $0x90] sm:$0xff]
          %v6265 = vld [vmem:[%s252 + $0x98] sm:$0xff]
          %v6266 = vld [vmem:[%s252 + $0xa0] sm:$0xff]
          %v6267 = vld [vmem:[%s252 + $0xa8] sm:$0xff]
          %v6268 = vld [vmem:[%s252 + $0xb0] sm:$0xff]
          %v6269 = vld [vmem:[%s252 + $0xb8] sm:$0xff]
          %v6270 = vld [vmem:[%s252 + $0xc0] sm:$0xff]
          %v6271 = vld [vmem:[%s252 + $0xc8] sm:$0xff]
          %v6272 = vld [vmem:[%s252 + $0xd0] sm:$0xff]
          %v6273 = vld [vmem:[%s252 + $0xd8] sm:$0xff]
          %v6274 = vld [vmem:[%s252 + $0xe0] sm:$0xff]
          %v6275 = vld [vmem:[%s252 + $0xe8] sm:$0xff]
          %v6276 = vld [vmem:[%s252 + $0xf0] sm:$0xff]
          %v6277 = vld [vmem:[%s252 + $0xf8] sm:$0xff]
          %v6278 = vadd.f32 %v6214, %v6246
          %v6279 = vadd.f32 %v6215, %v6247
          %v6280 = vadd.f32 %v6216, %v6248
          %v6281 = vadd.f32 %v6217, %v6249
          %v6282 = vadd.f32 %v6218, %v6250
          %v6283 = vadd.f32 %v6219, %v6251
          %v6284 = vadd.f32 %v6220, %v6252
          %v6285 = vadd.f32 %v6221, %v6253
          %v6286 = vadd.f32 %v6222, %v6254
          %v6287 = vadd.f32 %v6223, %v6255
          %v6288 = vadd.f32 %v6224, %v6256
          %v6289 = vadd.f32 %v6225, %v6257
          %v6290 = vadd.f32 %v6226, %v6258
          %v6291 = vadd.f32 %v6227, %v6259
          %v6292 = vadd.f32 %v6228, %v6260
          %v6293 = vadd.f32 %v6229, %v6261
          %v6294 = vadd.f32 %v6230, %v6262
          %v6295 = vadd.f32 %v6231, %v6263
          %v6296 = vadd.f32 %v6232, %v6264
          %v6297 = vadd.f32 %v6233, %v6265
          %v6298 = vadd.f32 %v6234, %v6266
          %v6299 = vadd.f32 %v6235, %v6267
          %v6300 = vadd.f32 %v6236, %v6268
          %v6301 = vadd.f32 %v6237, %v6269
          %v6302 = vadd.f32 %v6238, %v6270
          %v6303 = vadd.f32 %v6239, %v6271
          %v6304 = vadd.f32 %v6240, %v6272
          %v6305 = vadd.f32 %v6241, %v6273
          %v6306 = vadd.f32 %v6242, %v6274
          %v6307 = vadd.f32 %v6243, %v6275
          %v6308 = vadd.f32 %v6244, %v6276
          %v6309 = vadd.f32 %v6245, %v6277
          %v6310 = vld [vmem:[%s2] sm:$0x1]
          %v6312 = vlaneseq
          %v6313 = vshrl.u32 %v6312, 7
          %v6314 = vsub.s32 0, %v6313
          %v6315 = vrot.slane %v6310, %v6314
          %v6317 = vmul.f32 %v6278, %v6315
          %v6318 = vmul.f32 %v6279, %v6315
          %v6319 = vmul.f32 %v6280, %v6315
          %v6320 = vmul.f32 %v6281, %v6315
          %v6321 = vmul.f32 %v6282, %v6315
          %v6322 = vmul.f32 %v6283, %v6315
          %v6323 = vmul.f32 %v6284, %v6315
          %v6324 = vmul.f32 %v6285, %v6315
          %v6325 = vmul.f32 %v6286, %v6315
          %v6326 = vmul.f32 %v6287, %v6315
          %v6327 = vmul.f32 %v6288, %v6315
          %v6328 = vmul.f32 %v6289, %v6315
          %v6329 = vmul.f32 %v6290, %v6315
          %v6330 = vmul.f32 %v6291, %v6315
          %v6331 = vmul.f32 %v6292, %v6315
          %v6332 = vmul.f32 %v6293, %v6315
          %v6333 = vmul.f32 %v6294, %v6315
          %v6334 = vmul.f32 %v6295, %v6315
          %v6335 = vmul.f32 %v6296, %v6315
          %v6336 = vmul.f32 %v6297, %v6315
          %v6337 = vmul.f32 %v6298, %v6315
          %v6338 = vmul.f32 %v6299, %v6315
          %v6339 = vmul.f32 %v6300, %v6315
          %v6340 = vmul.f32 %v6301, %v6315
          %v6341 = vmul.f32 %v6302, %v6315
          %v6342 = vmul.f32 %v6303, %v6315
          %v6343 = vmul.f32 %v6304, %v6315
          %v6344 = vmul.f32 %v6305, %v6315
          %v6345 = vmul.f32 %v6306, %v6315
          %v6346 = vmul.f32 %v6307, %v6315
          %v6347 = vmul.f32 %v6308, %v6315
          %v6348 = vmul.f32 %v6309, %v6315
          %v6349 = vld [vmem:[%s3] sm:$0x1]
          %v6351 = vlaneseq
          %v6352 = vshrl.u32 %v6351, 7
          %v6353 = vsub.s32 0, %v6352
          %v6354 = vrot.slane %v6349, %v6353
          %v6356 = vadd.f32 %v6317, %v6354
          %v6357 = vadd.f32 %v6318, %v6354
          %v6358 = vadd.f32 %v6319, %v6354
          %v6359 = vadd.f32 %v6320, %v6354
          %v6360 = vadd.f32 %v6321, %v6354
          %v6361 = vadd.f32 %v6322, %v6354
          %v6362 = vadd.f32 %v6323, %v6354
          %v6363 = vadd.f32 %v6324, %v6354
          %v6364 = vadd.f32 %v6325, %v6354
          %v6365 = vadd.f32 %v6326, %v6354
          %v6366 = vadd.f32 %v6327, %v6354
          %v6367 = vadd.f32 %v6328, %v6354
          %v6368 = vadd.f32 %v6329, %v6354
          %v6369 = vadd.f32 %v6330, %v6354
          %v6370 = vadd.f32 %v6331, %v6354
          %v6371 = vadd.f32 %v6332, %v6354
          %v6372 = vadd.f32 %v6333, %v6354
          %v6373 = vadd.f32 %v6334, %v6354
          %v6374 = vadd.f32 %v6335, %v6354
          %v6375 = vadd.f32 %v6336, %v6354
          %v6376 = vadd.f32 %v6337, %v6354
          %v6377 = vadd.f32 %v6338, %v6354
          %v6378 = vadd.f32 %v6339, %v6354
          %v6379 = vadd.f32 %v6340, %v6354
          %v6380 = vadd.f32 %v6341, %v6354
          %v6381 = vadd.f32 %v6342, %v6354
          %v6382 = vadd.f32 %v6343, %v6354
          %v6383 = vadd.f32 %v6344, %v6354
          %v6384 = vadd.f32 %v6345, %v6354
          %v6385 = vadd.f32 %v6346, %v6354
          %v6386 = vadd.f32 %v6347, %v6354
          %v6387 = vadd.f32 %v6348, %v6354
          %v6388 = vmax.f32 %v6356, 0.0
          %v6389 = vmax.f32 %v6357, 0.0
          %v6390 = vmax.f32 %v6358, 0.0
          %v6391 = vmax.f32 %v6359, 0.0
          %v6392 = vmax.f32 %v6360, 0.0
          %v6393 = vmax.f32 %v6361, 0.0
          %v6394 = vmax.f32 %v6362, 0.0
          %v6395 = vmax.f32 %v6363, 0.0
          %v6396 = vmax.f32 %v6364, 0.0
          %v6397 = vmax.f32 %v6365, 0.0
          %v6398 = vmax.f32 %v6366, 0.0
          %v6399 = vmax.f32 %v6367, 0.0
          %v6400 = vmax.f32 %v6368, 0.0
          %v6401 = vmax.f32 %v6369, 0.0
          %v6402 = vmax.f32 %v6370, 0.0
          %v6403 = vmax.f32 %v6371, 0.0
          %v6404 = vmax.f32 %v6372, 0.0
          %v6405 = vmax.f32 %v6373, 0.0
          %v6406 = vmax.f32 %v6374, 0.0
          %v6407 = vmax.f32 %v6375, 0.0
          %v6408 = vmax.f32 %v6376, 0.0
          %v6409 = vmax.f32 %v6377, 0.0
          %v6410 = vmax.f32 %v6378, 0.0
          %v6411 = vmax.f32 %v6379, 0.0
          %v6412 = vmax.f32 %v6380, 0.0
          %v6413 = vmax.f32 %v6381, 0.0
          %v6414 = vmax.f32 %v6382, 0.0
          %v6415 = vmax.f32 %v6383, 0.0
          %v6416 = vmax.f32 %v6384, 0.0
          %v6417 = vmax.f32 %v6385, 0.0
          %v6418 = vmax.f32 %v6386, 0.0
          %v6419 = vmax.f32 %v6387, 0.0
          %6420 = vst [vmem:[%s290] sm:$0xff] %v6388
          %6421 = vst [vmem:[%s290 + $0x8] sm:$0xff] %v6389
          %6422 = vst [vmem:[%s290 + $0x10] sm:$0xff] %v6390
          %6423 = vst [vmem:[%s290 + $0x18] sm:$0xff] %v6391
          %6424 = vst [vmem:[%s290 + $0x20] sm:$0xff] %v6392
          %6425 = vst [vmem:[%s290 + $0x28] sm:$0xff] %v6393
          %6426 = vst [vmem:[%s290 + $0x30] sm:$0xff] %v6394
          %6427 = vst [vmem:[%s290 + $0x38] sm:$0xff] %v6395
          %6428 = vst [vmem:[%s290 + $0x40] sm:$0xff] %v6396
          %6429 = vst [vmem:[%s290 + $0x48] sm:$0xff] %v6397
          %6430 = vst [vmem:[%s290 + $0x50] sm:$0xff] %v6398
          %6431 = vst [vmem:[%s290 + $0x58] sm:$0xff] %v6399
          %6432 = vst [vmem:[%s290 + $0x60] sm:$0xff] %v6400
          %6433 = vst [vmem:[%s290 + $0x68] sm:$0xff] %v6401
          %6434 = vst [vmem:[%s290 + $0x70] sm:$0xff] %v6402
          %6435 = vst [vmem:[%s290 + $0x78] sm:$0xff] %v6403
          %6436 = vst [vmem:[%s290 + $0x80] sm:$0xff] %v6404
          %6437 = vst [vmem:[%s290 + $0x88] sm:$0xff] %v6405
          %6438 = vst [vmem:[%s290 + $0x90] sm:$0xff] %v6406
          %6439 = vst [vmem:[%s290 + $0x98] sm:$0xff] %v6407
          %6440 = vst [vmem:[%s290 + $0xa0] sm:$0xff] %v6408
          %6441 = vst [vmem:[%s290 + $0xa8] sm:$0xff] %v6409
          %6442 = vst [vmem:[%s290 + $0xb0] sm:$0xff] %v6410
          %6443 = vst [vmem:[%s290 + $0xb8] sm:$0xff] %v6411
          %6444 = vst [vmem:[%s290 + $0xc0] sm:$0xff] %v6412
          %6445 = vst [vmem:[%s290 + $0xc8] sm:$0xff] %v6413
          %6446 = vst [vmem:[%s290 + $0xd0] sm:$0xff] %v6414
          %6447 = vst [vmem:[%s290 + $0xd8] sm:$0xff] %v6415
          %6448 = vst [vmem:[%s290 + $0xe0] sm:$0xff] %v6416
          %6449 = vst [vmem:[%s290 + $0xe8] sm:$0xff] %v6417
          %6450 = vst [vmem:[%s290 + $0xf0] sm:$0xff] %v6418
          %6451 = vst [vmem:[%s290 + $0xf8] sm:$0xff] %v6419
        $region52: #{tpu_custom_call.1} parent=39 // pred_fallthru
          _
        %s6452 = sand.u32 %s164, 1
        %s6453 = scalar_lea.sflag [#allocation6], %s6452
        %s6454 = sand.u32 %s164, 1
        %s6455 = smul.addr %s6454, 256
        %s6456 = scalar_lea.vmem [#allocation7], %s6455
        // Predicated region
        $region53: #{tpu_custom_call.1} parent=39 // pred_check
          %p6457 = pneg %p174
        $region54: #{tpu_custom_call.1} parent=39 // pred_check_branch
          %6459 = sbr.rel (%p6457) target = $region56
        $region55: #{tpu_custom_call.1} parent=39 // pred_region
          %s6461 = ssub.s32 4096, 4096
          %6462 = vsyncadd %s6453, %s6461
          %s6463 = smul.addr %s26, 32
          %s6464 = smul.addr %s6463, 128
          %s6465 = scalar_lea.hbm %s5, %s6464
          %s6466 = sshll.u32 %s6456, 4
          %s6467 = int_to_ptr.vmem [resolvable:$true] %s6466
          %6472 = dma.vmem_to_hbm [thread:$0]  %s6467, 4096, %s6465, %s6453, 128, 128, 8
        $region56: #{tpu_custom_call.1} parent=39 // pred_fallthru
          _
      $region40: #{tpu_custom_call.1} parent=5 // pred_fallthru
        _
      %p6473 = scmp.le.s32.totalorder 2, %s17
      // Predicated region
      $region57: #{tpu_custom_call.1} parent=5 // pred_check
        %p6474 = pneg %p6473
      $region58: #{tpu_custom_call.1} parent=5 // pred_check_branch
        %6476 = sbr.rel (%p6474) target = $region60
      $region59: #{tpu_custom_call.1} parent=5 // pred_region
        %s6477 = ssub.s32 %s17, 2
        // Predicated region
        $region61: #{tpu_custom_call.1} parent=59 // pred_check
          %p6478 = pneg %p180
        $region62: #{tpu_custom_call.1} parent=59 // pred_check_branch
          %6480 = sbr.rel (%p6478) target = $region64
        $region63: #{tpu_custom_call.1} parent=59 // pred_region
          %s6481 = sand.u32 %s165, 1
          %s6482 = scalar_lea.sflag [#allocation6], %s6481
          %s6483 = sand.u32 %s165, 1
          %s6484 = smul.addr %s6483, 256
          %s6485 = scalar_lea.vmem [#allocation7], %s6484
          %6486 = dma.done %s6482, 4096
        $region64: #{tpu_custom_call.1} parent=59 // pred_fallthru
          _
      $region60: #{tpu_custom_call.1} parent=5 // pred_fallthru
        _
    $region6: #{tpu_custom_call.1} parent=1 // loop_footer
      %s21 = sadd.s32 1, %s17
    $region7: #{tpu_custom_call.1} parent=1 // loop_footer_branch
      %16 = sbr.rel target = $region3
    $region8: #{tpu_custom_call.1} parent=1 // loop_exit
      _
    %6487 = vsyncpa [#allocation5], 1
    %s6488 = scalar_lea.sflag [#allocation5], 1
    %6489 = vsyncpa %s6488, 1
    %6490 = vsyncpa [#allocation6], 1
    %s6491 = scalar_lea.sflag [#allocation6], 1
    %6492 = vsyncpa %s6491, 1

</llo_original>
